<compile_context>
chip_gen: v7x
topology: tpu7x:2x2x1
jax: 0.10.0
libtpu: 0.0.40
codegen_flags: <defaults>
</compile_context>

<pallas_src>
import math

import jax
import jax.numpy as jnp
from jax import lax
from jax.experimental import pallas as pl
from jax.experimental.pallas import tpu as pltpu


# --------------------------------- config ------------------------------------

HIDDEN = 32
NUM_HEADS = 4
HEAD_DIM = HIDDEN // NUM_HEADS
NUM_LAYERS = 2
INTERMEDIATE = 64
VOCAB = 64
VOCAB_PAD = 128          # lane-dense classifier width (pad lanes masked with -1e9 bias)
MAX_POS = 16
TYPE_VOCAB = 2

_GELU_C = math.sqrt(2.0 / math.pi)


# ------------------------- in-kernel math helpers -----------------------------

def _gelu(x):
    # TODO(synk): exact erf-based GELU (BERT "gelu") if lax.erf lowers on this Pallas
    # version; tanh approximation used for lowering portability (max |diff| ~3e-3).
    return 0.5 * x * (1.0 + jnp.tanh(_GELU_C * (x + 0.044715 * x * x * x)))


def _layernorm(x, g, b, eps=1e-12):
    mu = jnp.mean(x, axis=-1, keepdims=True)
    var = jnp.mean(jnp.square(x - mu), axis=-1, keepdims=True)
    return (x - mu) * lax.rsqrt(var + eps) * g + b


def _const_map(ndim):
    zeros = (0,) * ndim
    return lambda b: zeros


# ------------------------------ fused kernel ----------------------------------

def _make_kernel(causal, with_loss, S):
    """One grid step == one batch element; everything lives in VMEM/vregs."""

    def kernel(*refs):
        it = iter(refs)
        emb_ref = next(it)                          # (1, S, H)  word+pos+type embeddings
        yoh_ref = next(it) if with_loss else None   # (1, S, 128) label one-hot
        qkvw_ref = next(it)                         # (L, H, 3H)  (q already scaled)
        ow_ref = next(it)                           # (L, H, H)
        fiw_ref = next(it)                          # (L, H, I)
        fow_ref = next(it)                          # (L, I, H)
        vec_ref = next(it)                          # (L, 8, 3H)  biases / LN vectors
        clsw_ref = next(it)                         # (H, 128)
        glob_ref = next(it)                         # (8, 128)    emb LN g/b, cls bias
        o_ref = next(it)

        glob = glob_ref[...]
        emb_g = glob[0:1, :HIDDEN]
        emb_b = glob[1:2, :HIDDEN]
        cls_b = glob[2:3, :]                        # (1, 128), pad lanes = -1e9

        # Embedding LayerNorm (lookup + adds already done in the wrapper).
        h = _layernorm(emb_ref[0], emb_g, emb_b)    # (S, H)

        # Causal additive mask, built once and shared by every layer / head.
        if causal:
            row = lax.broadcasted_iota(jnp.int32, (S, S), 0)
            col = lax.broadcasted_iota(jnp.int32, (S, S), 1)
            mask_add = jnp.where(col <= row, 0.0, -10000.0)[None]   # (1, S, S)
        else:
            mask_add = None

        for l in range(NUM_LAYERS):
            vec = vec_ref[l]                         # (8, 3H)
            qkv_b = vec[0:1, :]
            o_b = vec[1:2, :HIDDEN]
            a_g = vec[2:3, :HIDDEN]
            a_b = vec[3:4, :HIDDEN]
            fi_b = vec[4:5, :INTERMEDIATE]
            fo_b = vec[5:6, :HIDDEN]
            f_g = vec[6:7, :HIDDEN]
            f_b = vec[7:8, :HIDDEN]

            # Fused QKV projection; 1/sqrt(Dh) folded into the Q weights/bias.
            qkv = jnp.dot(h, qkvw_ref[l], preferred_element_type=jnp.float32) + qkv_b
            q = qkv[:, 0 * HIDDEN:1 * HIDDEN].reshape(S, NUM_HEADS, HEAD_DIM)
            k = qkv[:, 1 * HIDDEN:2 * HIDDEN].reshape(S, NUM_HEADS, HEAD_DIM)
            v = qkv[:, 2 * HIDDEN:3 * HIDDEN].reshape(S, NUM_HEADS, HEAD_DIM)

            # All heads at once via batched contractions (no per-head unrolling).
            s = jnp.einsum('qhd,khd->hqk', q, k,
                           preferred_element_type=jnp.float32)        # (NH, S, S)
            if mask_add is not None:
                s = s + mask_add
            m = jnp.max(s, axis=-1, keepdims=True)
            p = jnp.exp(s - m)
            p = p * pl.reciprocal(jnp.sum(p, axis=-1, keepdims=True), approx=True)
            ctx = jnp.einsum('hqk,khd->qhd', p, v,
                             preferred_element_type=jnp.float32)      # (S, NH, Dh)
            ctx = ctx.reshape(S, HIDDEN)

            attn_out = jnp.dot(ctx, ow_ref[l], preferred_element_type=jnp.float32) + o_b
            h = _layernorm(attn_out + h, a_g, a_b)          # residual folded into LN

            ffn = jnp.dot(h, fiw_ref[l], preferred_element_type=jnp.float32) + fi_b
            ffn = _gelu(ffn)
            ffn = jnp.dot(ffn, fow_ref[l], preferred_element_type=jnp.float32) + fo_b
            h = _layernorm(ffn + h, f_g, f_b)               # residual folded into LN

        # Classifier head (lane-dense: N = 128, pad logits pinned to -1e9 via bias).
        logits = jnp.dot(h, clsw_ref[...], preferred_element_type=jnp.float32) + cls_b

        if with_loss:
            yoh = yoh_ref[0]                                # (S, 128)
            m = jnp.max(logits, axis=-1, keepdims=True)
            lse = m + jnp.log(jnp.sum(jnp.exp(logits - m), axis=-1, keepdims=True))
            picked = jnp.sum(logits * yoh, axis=-1, keepdims=True)
            # Per-batch CE sum -> scalar SMEM slot; wrapper finishes the mean.
            o_ref[pl.program_id(0), 0] = jnp.sum(lse - picked)
        else:
            m = jnp.max(logits, axis=-1, keepdims=True)
            p = jnp.exp(logits - m)
            p = p * pl.reciprocal(jnp.sum(p, axis=-1, keepdims=True), approx=True)
            o_ref[0] = p                                    # unmasked lane-dense store

    return kernel


# ----------------------- wrapper (param packing + call) -----------------------

def _forward_impl(params, x, y, with_loss):
    B, S = x.shape
    causal = with_loss  # mirrors the PyTorch module: tril mask only when y is given

    # Embedding gather + adds done here (tiny XLA glue); LN happens in the kernel.
    emb = (params["word_emb"][x]
           + params["pos_emb"][:S][None, :, :]
           + params["type_emb"][0][None, None, :]).astype(jnp.float32)    # (B, S, H)

    scale = 1.0 / math.sqrt(HEAD_DIM)
    layers = params["layers"]

    # Packed parameter slabs (few inputs -> few DMA descriptors).
    qkvw = jnp.stack([jnp.concatenate([l["q_w"] * scale, l["k_w"], l["v_w"]], axis=1)
                      for l in layers])                                    # (L, H, 3H)
    ow = jnp.stack([l["o_w"] for l in layers])                             # (L, H, H)
    fiw = jnp.stack([l["ffn_in_w"] for l in layers])                       # (L, H, I)
    fow = jnp.stack([l["ffn_out_w"] for l in layers])                      # (L, I, H)

    def pad_row(v, n=3 * HIDDEN):
        return jnp.pad(v, (0, n - v.shape[0]))

    vecs = jnp.stack([
        jnp.stack([
            jnp.concatenate([l["q_b"] * scale, l["k_b"], l["v_b"]]),
            pad_row(l["o_b"]),
            pad_row(l["attn_ln_g"]),
            pad_row(l["attn_ln_b"]),
            pad_row(l["ffn_in_b"]),
            pad_row(l["ffn_out_b"]),
            pad_row(l["ffn_ln_g"]),
            pad_row(l["ffn_ln_b"]),
        ])
        for l in layers
    ])                                                                     # (L, 8, 3H)

    clsw = jnp.pad(params["cls_w"], ((0, 0), (0, VOCAB_PAD - VOCAB)))      # (H, 128)
    clsb = jnp.concatenate([params["cls_b"],
                            jnp.full((VOCAB_PAD - VOCAB,), -1e9, jnp.float32)])
    glob = jnp.stack([
        jnp.pad(params["emb_ln_g"], (0, VOCAB_PAD - HIDDEN)),
        jnp.pad(params["emb_ln_b"], (0, VOCAB_PAD - HIDDEN)),
        clsb,
    ] + [jnp.zeros((VOCAB_PAD,), jnp.float32)] * 5)                        # (8, 128)

    inputs = [emb]
    in_specs = [pl.BlockSpec((1, S, HIDDEN), lambda b: (b, 0, 0))]
    if with_loss:
        yoh = jax.nn.one_hot(y.astype(jnp.int32), VOCAB_PAD, dtype=jnp.float32)
        inputs.append(yoh)
        in_specs.append(pl.BlockSpec((1, S, VOCAB_PAD), lambda b: (b, 0, 0)))

    for arr in (qkvw, ow, fiw, fow, vecs, clsw, glob):
        inputs.append(arr)
        in_specs.append(pl.BlockSpec(arr.shape, _const_map(arr.ndim)))

    if with_loss:
        # Per-batch loss sums as scalars in SMEM (no padded VMEM tile / masked vst).
        out_shape = jax.ShapeDtypeStruct((B, 1), jnp.float32)
        out_spec = pl.BlockSpec(memory_space=pltpu.MemorySpace.SMEM)
        dims = ("arbitrary",)            # single resident SMEM output across the grid
    else:
        out_shape = jax.ShapeDtypeStruct((B, S, VOCAB_PAD), jnp.float32)
        out_spec = pl.BlockSpec((1, S, VOCAB_PAD), lambda b: (b, 0, 0))
        dims = ("parallel",)             # batch-parallel: uses both TCs on v7x

    kernel = _make_kernel(causal, with_loss, S)
    out = pl.pallas_call(
        kernel,
        out_shape=out_shape,
        grid=(B,),
        in_specs=in_specs,
        out_specs=out_spec,
        compiler_params=pltpu.CompilerParams(dimension_semantics=dims),
    )(*inputs)

    if with_loss:
        return jnp.sum(out) / (B * S)
    return out[:, :, :VOCAB]


@jax.jit
def _forward_train(params, x, y):
    return _forward_impl(params, x, y, True)


@jax.jit
def _forward_infer(params, x):
    return _forward_impl(params, x, None, False)


def language_model_forward(params, x, y=None):
    """Mirrors LanguageModel.forward:
       - y given: causal (tril) attention mask, returns mean cross-entropy loss (scalar)
       - y None : full attention, returns softmax probs [B, S, VOCAB]"""
    if y is not None:
        return _forward_train(params, x, y)
    return _forward_infer(params, x)


# --------------------------------- params ------------------------------------

def init_params():
    key = jax.random.PRNGKey(0)
    ks = iter(jax.random.split(key, 128))
    std = 0.02

    def norm(shape):
        return (std * jax.random.normal(next(ks), shape)).astype(jnp.float32)

    p = {
        "word_emb": norm((VOCAB, HIDDEN)),
        "pos_emb": norm((MAX_POS, HIDDEN)),
        "type_emb": norm((TYPE_VOCAB, HIDDEN)),
        "emb_ln_g": jnp.ones((HIDDEN,), jnp.float32),
        "emb_ln_b": jnp.zeros((HIDDEN,), jnp.float32),
        "cls_w": norm((HIDDEN, VOCAB)),
        "cls_b": jnp.zeros((VOCAB,), jnp.float32),
        "layers": [],
    }
    for _ in range(NUM_LAYERS):
        p["layers"].append({
            "q_w": norm((HIDDEN, HIDDEN)), "q_b": jnp.zeros((HIDDEN,), jnp.float32),
            "k_w": norm((HIDDEN, HIDDEN)), "k_b": jnp.zeros((HIDDEN,), jnp.float32),
            "v_w": norm((HIDDEN, HIDDEN)), "v_b": jnp.zeros((HIDDEN,), jnp.float32),
            "o_w": norm((HIDDEN, HIDDEN)), "o_b": jnp.zeros((HIDDEN,), jnp.float32),
            "attn_ln_g": jnp.ones((HIDDEN,), jnp.float32),
            "attn_ln_b": jnp.zeros((HIDDEN,), jnp.float32),
            "ffn_in_w": norm((HIDDEN, INTERMEDIATE)),
            "ffn_in_b": jnp.zeros((INTERMEDIATE,), jnp.float32),
            "ffn_out_w": norm((INTERMEDIATE, HIDDEN)),
            "ffn_out_b": jnp.zeros((HIDDEN,), jnp.float32),
            "ffn_ln_g": jnp.ones((HIDDEN,), jnp.float32),
            "ffn_ln_b": jnp.zeros((HIDDEN,), jnp.float32),
        })
    return p


# --------------------------------- main --------------------------------------

if __name__ == "__main__":
    params = init_params()

    key = jax.random.PRNGKey(0)
    kx, ky = jax.random.split(key)
    B, S = 2, 8
    x = jax.random.randint(kx, (B, S), 0, VOCAB, dtype=jnp.int32)
    y = jax.random.randint(ky, (B, S), 0, VOCAB, dtype=jnp.int32)

    # Training-style call: returns scalar CE loss (causal-masked BERT).
    loss = jax.block_until_ready(language_model_forward(params, x, y))

    # Inference-style call: returns softmax probabilities over the vocab.
    probs = jax.block_until_ready(language_model_forward(params, x, None))

    assert loss.shape == ()
    assert probs.shape == (B, S, VOCAB)
    assert bool(jnp.isfinite(loss))
    assert bool(jnp.all(jnp.isfinite(probs)))
    # approx-reciprocal softmax denominators -> tolerate small deviation from 1.0
    assert bool(jnp.allclose(jnp.sum(probs, axis=-1), 1.0, atol=5e-3))

    print("KERNEL_OK")
</pallas_src>

<mosaic_0001>
module attributes {stable_mosaic.version = 11 : i64} {
  func.func @kernel(%arg0: i32, %arg1: memref<1x8x32xf32, #tpu.memory_space<vmem>>, %arg2: memref<1x8x128xf32, #tpu.memory_space<vmem>>, %arg3: memref<2x32x96xf32, #tpu.memory_space<vmem>>, %arg4: memref<2x32x32xf32, #tpu.memory_space<vmem>>, %arg5: memref<2x32x64xf32, #tpu.memory_space<vmem>>, %arg6: memref<2x64x32xf32, #tpu.memory_space<vmem>>, %arg7: memref<2x8x96xf32, #tpu.memory_space<vmem>>, %arg8: memref<32x128xf32, #tpu.memory_space<vmem>>, %arg9: memref<8x128xf32, #tpu.memory_space<vmem>>, %arg10: memref<2x1xf32, #tpu.memory_space<smem>>) attributes {dimension_semantics = [#tpu.dimension_semantics<arbitrary>], iteration_bounds = array<i64: 2>, scalar_prefetch = 0 : i64, scratch_operands = 0 : i64, tpu.core_type = #tpu.core_type<tc>, window_params = [{transform_indices = @transform_0, window_bounds = array<i64: 1, 8, 32>}, {transform_indices = @transform_1, window_bounds = array<i64: 1, 8, 128>}, {pipeline_mode = #tpu.pipeline_mode<synchronous>, transform_indices = @transform_2, window_bounds = array<i64: 2, 32, 96>}, {pipeline_mode = #tpu.pipeline_mode<synchronous>, transform_indices = @transform_3, window_bounds = array<i64: 2, 32, 32>}, {pipeline_mode = #tpu.pipeline_mode<synchronous>, transform_indices = @transform_4, window_bounds = array<i64: 2, 32, 64>}, {pipeline_mode = #tpu.pipeline_mode<synchronous>, transform_indices = @transform_5, window_bounds = array<i64: 2, 64, 32>}, {pipeline_mode = #tpu.pipeline_mode<synchronous>, transform_indices = @transform_6, window_bounds = array<i64: 2, 8, 96>}, {pipeline_mode = #tpu.pipeline_mode<synchronous>, transform_indices = @transform_7, window_bounds = array<i64: 32, 128>}, {pipeline_mode = #tpu.pipeline_mode<synchronous>, transform_indices = @transform_8, window_bounds = array<i64: 8, 128>}, {transform_indices = @transform_9, window_bounds = array<i64: 2, 1>}]} {
    %c0 = arith.constant 0 : index
    %c0_0 = arith.constant 0 : index
    %0 = vector.load %arg9[%c0, %c0_0] : memref<8x128xf32, #tpu.memory_space<vmem>>, vector<8x128xf32>
    %1 = vector.extract_strided_slice %0 {offsets = [0, 0], sizes = [1, 32], strides = [1, 1]} : vector<8x128xf32> to vector<1x32xf32>
    %2 = vector.extract_strided_slice %0 {offsets = [1, 0], sizes = [1, 32], strides = [1, 1]} : vector<8x128xf32> to vector<1x32xf32>
    %3 = vector.extract_strided_slice %0 {offsets = [2, 0], sizes = [1, 128], strides = [1, 1]} : vector<8x128xf32> to vector<1x128xf32>
    %c0_1 = arith.constant 0 : index
    %c0_2 = arith.constant 0 : index
    %c0_3 = arith.constant 0 : index
    %4 = vector.load %arg1[%c0_1, %c0_2, %c0_3] : memref<1x8x32xf32, #tpu.memory_space<vmem>>, vector<1x8x32xf32>
    %5 = vector.shape_cast %4 : vector<1x8x32xf32> to vector<8x32xf32>
    %cst = arith.constant dense<0.000000e+00> : vector<8xf32>
    %6 = vector.multi_reduction <add>, %5, %cst [1] : vector<8x32xf32> to vector<8xf32>
    %7 = vector.shape_cast %6 : vector<8xf32> to vector<8x1xf32>
    %cst_4 = arith.constant 3.200000e+01 : f32
    %8 = vector.broadcast %cst_4 : f32 to vector<8x1xf32>
    %9 = arith.divf %7, %8 : vector<8x1xf32>
    %10 = vector.broadcast %9 : vector<8x1xf32> to vector<8x32xf32>
    %11 = arith.subf %5, %10 : vector<8x32xf32>
    %12 = arith.mulf %11, %11 : vector<8x32xf32>
    %cst_5 = arith.constant dense<0.000000e+00> : vector<8xf32>
    %13 = vector.multi_reduction <add>, %12, %cst_5 [1] : vector<8x32xf32> to vector<8xf32>
    %14 = vector.shape_cast %13 : vector<8xf32> to vector<8x1xf32>
    %cst_6 = arith.constant 3.200000e+01 : f32
    %15 = vector.broadcast %cst_6 : f32 to vector<8x1xf32>
    %16 = arith.divf %14, %15 : vector<8x1xf32>
    %17 = vector.broadcast %9 : vector<8x1xf32> to vector<8x32xf32>
    %18 = arith.subf %5, %17 : vector<8x32xf32>
    %cst_7 = arith.constant 9.99999996E-13 : f32
    %19 = vector.broadcast %cst_7 : f32 to vector<8x1xf32>
    %20 = arith.addf %16, %19 : vector<8x1xf32>
    %21 = math.rsqrt %20 : vector<8x1xf32>
    %22 = vector.broadcast %21 : vector<8x1xf32> to vector<8x32xf32>
    %23 = arith.mulf %18, %22 : vector<8x32xf32>
    %24 = vector.broadcast %1 : vector<1x32xf32> to vector<8x32xf32>
    %25 = arith.mulf %23, %24 : vector<8x32xf32>
    %26 = vector.broadcast %2 : vector<1x32xf32> to vector<8x32xf32>
    %27 = arith.addf %25, %26 : vector<8x32xf32>
    %28 = tpu.iota {dimensions = array<i32: 0>} : vector<8x8xi32>
    %29 = tpu.iota {dimensions = array<i32: 1>} : vector<8x8xi32>
    %30 = arith.cmpi sle, %29, %28 : vector<8x8xi32>
    %cst_8 = arith.constant 0.000000e+00 : f32
    %cst_9 = arith.constant -1.000000e+04 : f32
    %31 = vector.broadcast %cst_8 : f32 to vector<8x8xf32>
    %32 = vector.broadcast %cst_9 : f32 to vector<8x8xf32>
    %33 = arith.select %30, %31, %32 : vector<8x8xi1>, vector<8x8xf32>
    %34 = vector.shape_cast %33 : vector<8x8xf32> to vector<1x8x8xf32>
    %c0_10 = arith.constant 0 : index
    %c0_11 = arith.constant 0 : index
    %c0_12 = arith.constant 0 : index
    %35 = vector.load %arg7[%c0_10, %c0_11, %c0_12] : memref<2x8x96xf32, #tpu.memory_space<vmem>>, vector<1x8x96xf32>
    %36 = vector.shape_cast %35 : vector<1x8x96xf32> to vector<8x96xf32>
    %37 = vector.extract_strided_slice %36 {offsets = [0, 0], sizes = [1, 96], strides = [1, 1]} : vector<8x96xf32> to vector<1x96xf32>
    %38 = vector.extract_strided_slice %36 {offsets = [1, 0], sizes = [1, 32], strides = [1, 1]} : vector<8x96xf32> to vector<1x32xf32>
    %39 = vector.extract_strided_slice %36 {offsets = [2, 0], sizes = [1, 32], strides = [1, 1]} : vector<8x96xf32> to vector<1x32xf32>
    %40 = vector.extract_strided_slice %36 {offsets = [3, 0], sizes = [1, 32], strides = [1, 1]} : vector<8x96xf32> to vector<1x32xf32>
    %41 = vector.extract_strided_slice %36 {offsets = [4, 0], sizes = [1, 64], strides = [1, 1]} : vector<8x96xf32> to vector<1x64xf32>
    %42 = vector.extract_strided_slice %36 {offsets = [5, 0], sizes = [1, 32], strides = [1, 1]} : vector<8x96xf32> to vector<1x32xf32>
    %43 = vector.extract_strided_slice %36 {offsets = [6, 0], sizes = [1, 32], strides = [1, 1]} : vector<8x96xf32> to vector<1x32xf32>
    %44 = vector.extract_strided_slice %36 {offsets = [7, 0], sizes = [1, 32], strides = [1, 1]} : vector<8x96xf32> to vector<1x32xf32>
    %c0_13 = arith.constant 0 : index
    %c0_14 = arith.constant 0 : index
    %c0_15 = arith.constant 0 : index
    %45 = vector.load %arg3[%c0_13, %c0_14, %c0_15] : memref<2x32x96xf32, #tpu.memory_space<vmem>>, vector<1x32x96xf32>
    %46 = vector.shape_cast %45 : vector<1x32x96xf32> to vector<32x96xf32>
    %cst_16 = arith.constant dense<0.000000e+00> : vector<8x96xf32>
    %47 = tpu.matmul %27, %46, %cst_16 {dimension_numbers = #tpu.dot_dimension_numbers<[1], [0], [0], [1], [0, 0, 1, 1], [], []>} : vector<8x32xf32>, vector<32x96xf32>, vector<8x96xf32> -> vector<8x96xf32>
    %48 = vector.broadcast %37 : vector<1x96xf32> to vector<8x96xf32>
    %49 = arith.addf %47, %48 : vector<8x96xf32>
    %50 = vector.extract_strided_slice %49 {offsets = [0, 0], sizes = [8, 32], strides = [1, 1]} : vector<8x96xf32> to vector<8x32xf32>
    %51 = vector.shape_cast %50 : vector<8x32xf32> to vector<8x4x8xf32>
    %52 = vector.extract_strided_slice %49 {offsets = [0, 32], sizes = [8, 32], strides = [1, 1]} : vector<8x96xf32> to vector<8x32xf32>
    %53 = vector.shape_cast %52 : vector<8x32xf32> to vector<8x4x8xf32>
    %54 = vector.extract_strided_slice %49 {offsets = [0, 64], sizes = [8, 32], strides = [1, 1]} : vector<8x96xf32> to vector<8x32xf32>
    %55 = vector.shape_cast %54 : vector<8x32xf32> to vector<8x4x8xf32>
    "tpu.trace_start"() <{level = 10 : i32, message = "qhd,khd->hqk"}> : () -> ()
    %cst_17 = arith.constant dense<0.000000e+00> : vector<4x8x8xf32>
    %56 = tpu.matmul %51, %53, %cst_17 {dimension_numbers = #tpu.dot_dimension_numbers<[2], [2], [0], [0], [0, 1, 0, 0, 1, 0], [1], [1]>} : vector<8x4x8xf32>, vector<8x4x8xf32>, vector<4x8x8xf32> -> vector<4x8x8xf32>
    "tpu.trace_stop"() : () -> ()
    %57 = vector.broadcast %34 : vector<1x8x8xf32> to vector<4x8x8xf32>
    %58 = arith.addf %56, %57 : vector<4x8x8xf32>
    %cst_18 = arith.constant dense<0xFF800000> : vector<4x8xf32>
    %59 = vector.multi_reduction <maximumf>, %58, %cst_18 [2] : vector<4x8x8xf32> to vector<4x8xf32>
    %60 = vector.shape_cast %59 : vector<4x8xf32> to vector<4x8x1xf32>
    %61 = vector.broadcast %60 : vector<4x8x1xf32> to vector<4x8x8xf32>
    %62 = arith.subf %58, %61 : vector<4x8x8xf32>
    %63 = math.exp %62 : vector<4x8x8xf32>
    %cst_19 = arith.constant dense<0.000000e+00> : vector<4x8xf32>
    %64 = vector.multi_reduction <add>, %63, %cst_19 [2] : vector<4x8x8xf32> to vector<4x8xf32>
    %65 = vector.shape_cast %64 : vector<4x8xf32> to vector<4x8x1xf32>
    %66 = tpu.reciprocal %65 {approx = true} : vector<4x8x1xf32> -> vector<4x8x1xf32>
    %67 = vector.broadcast %66 : vector<4x8x1xf32> to vector<4x8x8xf32>
    %68 = arith.mulf %63, %67 : vector<4x8x8xf32>
    "tpu.trace_start"() <{level = 10 : i32, message = "hqk,khd->qhd"}> : () -> ()
    %cst_20 = arith.constant dense<0.000000e+00> : vector<4x8x8xf32>
    %69 = tpu.matmul %55, %68, %cst_20 {dimension_numbers = #tpu.dot_dimension_numbers<[0], [2], [2], [1], [0, 1, 0, 2, 1, 1], [1], [0]>} : vector<8x4x8xf32>, vector<4x8x8xf32>, vector<4x8x8xf32> -> vector<4x8x8xf32>
    %70 = tpu.transpose %69, [2, 0, 1] : vector<4x8x8xf32> -> vector<8x4x8xf32>
    "tpu.trace_stop"() : () -> ()
    %71 = vector.shape_cast %70 : vector<8x4x8xf32> to vector<8x32xf32>
    %c0_21 = arith.constant 0 : index
    %c0_22 = arith.constant 0 : index
    %c0_23 = arith.constant 0 : index
    %72 = vector.load %arg4[%c0_21, %c0_22, %c0_23] : memref<2x32x32xf32, #tpu.memory_space<vmem>>, vector<1x32x32xf32>
    %73 = vector.shape_cast %72 : vector<1x32x32xf32> to vector<32x32xf32>
    %cst_24 = arith.constant dense<0.000000e+00> : vector<8x32xf32>
    %74 = tpu.matmul %71, %73, %cst_24 {dimension_numbers = #tpu.dot_dimension_numbers<[1], [0], [0], [1], [0, 0, 1, 1], [], []>} : vector<8x32xf32>, vector<32x32xf32>, vector<8x32xf32> -> vector<8x32xf32>
    %75 = vector.broadcast %38 : vector<1x32xf32> to vector<8x32xf32>
    %76 = arith.addf %74, %75 : vector<8x32xf32>
    %77 = arith.addf %76, %27 : vector<8x32xf32>
    %cst_25 = arith.constant dense<0.000000e+00> : vector<8xf32>
    %78 = vector.multi_reduction <add>, %77, %cst_25 [1] : vector<8x32xf32> to vector<8xf32>
    %79 = vector.shape_cast %78 : vector<8xf32> to vector<8x1xf32>
    %cst_26 = arith.constant 3.200000e+01 : f32
    %80 = vector.broadcast %cst_26 : f32 to vector<8x1xf32>
    %81 = arith.divf %79, %80 : vector<8x1xf32>
    %82 = vector.broadcast %81 : vector<8x1xf32> to vector<8x32xf32>
    %83 = arith.subf %77, %82 : vector<8x32xf32>
    %84 = arith.mulf %83, %83 : vector<8x32xf32>
    %cst_27 = arith.constant dense<0.000000e+00> : vector<8xf32>
    %85 = vector.multi_reduction <add>, %84, %cst_27 [1] : vector<8x32xf32> to vector<8xf32>
    %86 = vector.shape_cast %85 : vector<8xf32> to vector<8x1xf32>
    %cst_28 = arith.constant 3.200000e+01 : f32
    %87 = vector.broadcast %cst_28 : f32 to vector<8x1xf32>
    %88 = arith.divf %86, %87 : vector<8x1xf32>
    %89 = vector.broadcast %81 : vector<8x1xf32> to vector<8x32xf32>
    %90 = arith.subf %77, %89 : vector<8x32xf32>
    %cst_29 = arith.constant 9.99999996E-13 : f32
    %91 = vector.broadcast %cst_29 : f32 to vector<8x1xf32>
    %92 = arith.addf %88, %91 : vector<8x1xf32>
    %93 = math.rsqrt %92 : vector<8x1xf32>
    %94 = vector.broadcast %93 : vector<8x1xf32> to vector<8x32xf32>
    %95 = arith.mulf %90, %94 : vector<8x32xf32>
    %96 = vector.broadcast %39 : vector<1x32xf32> to vector<8x32xf32>
    %97 = arith.mulf %95, %96 : vector<8x32xf32>
    %98 = vector.broadcast %40 : vector<1x32xf32> to vector<8x32xf32>
    %99 = arith.addf %97, %98 : vector<8x32xf32>
    %c0_30 = arith.constant 0 : index
    %c0_31 = arith.constant 0 : index
    %c0_32 = arith.constant 0 : index
    %100 = vector.load %arg5[%c0_30, %c0_31, %c0_32] : memref<2x32x64xf32, #tpu.memory_space<vmem>>, vector<1x32x64xf32>
    %101 = vector.shape_cast %100 : vector<1x32x64xf32> to vector<32x64xf32>
    %cst_33 = arith.constant dense<0.000000e+00> : vector<8x64xf32>
    %102 = tpu.matmul %99, %101, %cst_33 {dimension_numbers = #tpu.dot_dimension_numbers<[1], [0], [0], [1], [0, 0, 1, 1], [], []>} : vector<8x32xf32>, vector<32x64xf32>, vector<8x64xf32> -> vector<8x64xf32>
    %103 = vector.broadcast %41 : vector<1x64xf32> to vector<8x64xf32>
    %104 = arith.addf %102, %103 : vector<8x64xf32>
    %cst_34 = arith.constant 5.000000e-01 : f32
    %105 = vector.broadcast %cst_34 : f32 to vector<8x64xf32>
    %106 = arith.mulf %105, %104 : vector<8x64xf32>
    %cst_35 = arith.constant 4.471500e-02 : f32
    %107 = vector.broadcast %cst_35 : f32 to vector<8x64xf32>
    %108 = arith.mulf %107, %104 : vector<8x64xf32>
    %109 = arith.mulf %108, %104 : vector<8x64xf32>
    %110 = arith.mulf %109, %104 : vector<8x64xf32>
    %111 = arith.addf %104, %110 : vector<8x64xf32>
    %cst_36 = arith.constant 0.797884583 : f32
    %112 = vector.broadcast %cst_36 : f32 to vector<8x64xf32>
    %113 = arith.mulf %112, %111 : vector<8x64xf32>
    %114 = math.tanh %113 : vector<8x64xf32>
    %cst_37 = arith.constant 1.000000e+00 : f32
    %115 = vector.broadcast %cst_37 : f32 to vector<8x64xf32>
    %116 = arith.addf %115, %114 : vector<8x64xf32>
    %117 = arith.mulf %106, %116 : vector<8x64xf32>
    %c0_38 = arith.constant 0 : index
    %c0_39 = arith.constant 0 : index
    %c0_40 = arith.constant 0 : index
    %118 = vector.load %arg6[%c0_38, %c0_39, %c0_40] : memref<2x64x32xf32, #tpu.memory_space<vmem>>, vector<1x64x32xf32>
    %119 = vector.shape_cast %118 : vector<1x64x32xf32> to vector<64x32xf32>
    %cst_41 = arith.constant dense<0.000000e+00> : vector<8x32xf32>
    %120 = tpu.matmul %117, %119, %cst_41 {dimension_numbers = #tpu.dot_dimension_numbers<[1], [0], [0], [1], [0, 0, 1, 1], [], []>} : vector<8x64xf32>, vector<64x32xf32>, vector<8x32xf32> -> vector<8x32xf32>
    %121 = vector.broadcast %42 : vector<1x32xf32> to vector<8x32xf32>
    %122 = arith.addf %120, %121 : vector<8x32xf32>
    %123 = arith.addf %122, %99 : vector<8x32xf32>
    %cst_42 = arith.constant dense<0.000000e+00> : vector<8xf32>
    %124 = vector.multi_reduction <add>, %123, %cst_42 [1] : vector<8x32xf32> to vector<8xf32>
    %125 = vector.shape_cast %124 : vector<8xf32> to vector<8x1xf32>
    %cst_43 = arith.constant 3.200000e+01 : f32
    %126 = vector.broadcast %cst_43 : f32 to vector<8x1xf32>
    %127 = arith.divf %125, %126 : vector<8x1xf32>
    %128 = vector.broadcast %127 : vector<8x1xf32> to vector<8x32xf32>
    %129 = arith.subf %123, %128 : vector<8x32xf32>
    %130 = arith.mulf %129, %129 : vector<8x32xf32>
    %cst_44 = arith.constant dense<0.000000e+00> : vector<8xf32>
    %131 = vector.multi_reduction <add>, %130, %cst_44 [1] : vector<8x32xf32> to vector<8xf32>
    %132 = vector.shape_cast %131 : vector<8xf32> to vector<8x1xf32>
    %cst_45 = arith.constant 3.200000e+01 : f32
    %133 = vector.broadcast %cst_45 : f32 to vector<8x1xf32>
    %134 = arith.divf %132, %133 : vector<8x1xf32>
    %135 = vector.broadcast %127 : vector<8x1xf32> to vector<8x32xf32>
    %136 = arith.subf %123, %135 : vector<8x32xf32>
    %cst_46 = arith.constant 9.99999996E-13 : f32
    %137 = vector.broadcast %cst_46 : f32 to vector<8x1xf32>
    %138 = arith.addf %134, %137 : vector<8x1xf32>
    %139 = math.rsqrt %138 : vector<8x1xf32>
    %140 = vector.broadcast %139 : vector<8x1xf32> to vector<8x32xf32>
    %141 = arith.mulf %136, %140 : vector<8x32xf32>
    %142 = vector.broadcast %43 : vector<1x32xf32> to vector<8x32xf32>
    %143 = arith.mulf %141, %142 : vector<8x32xf32>
    %144 = vector.broadcast %44 : vector<1x32xf32> to vector<8x32xf32>
    %145 = arith.addf %143, %144 : vector<8x32xf32>
    %c1 = arith.constant 1 : index
    %c0_47 = arith.constant 0 : index
    %c0_48 = arith.constant 0 : index
    %146 = vector.load %arg7[%c1, %c0_47, %c0_48] : memref<2x8x96xf32, #tpu.memory_space<vmem>>, vector<1x8x96xf32>
    %147 = vector.shape_cast %146 : vector<1x8x96xf32> to vector<8x96xf32>
    %148 = vector.extract_strided_slice %147 {offsets = [0, 0], sizes = [1, 96], strides = [1, 1]} : vector<8x96xf32> to vector<1x96xf32>
    %149 = vector.extract_strided_slice %147 {offsets = [1, 0], sizes = [1, 32], strides = [1, 1]} : vector<8x96xf32> to vector<1x32xf32>
    %150 = vector.extract_strided_slice %147 {offsets = [2, 0], sizes = [1, 32], strides = [1, 1]} : vector<8x96xf32> to vector<1x32xf32>
    %151 = vector.extract_strided_slice %147 {offsets = [3, 0], sizes = [1, 32], strides = [1, 1]} : vector<8x96xf32> to vector<1x32xf32>
    %152 = vector.extract_strided_slice %147 {offsets = [4, 0], sizes = [1, 64], strides = [1, 1]} : vector<8x96xf32> to vector<1x64xf32>
    %153 = vector.extract_strided_slice %147 {offsets = [5, 0], sizes = [1, 32], strides = [1, 1]} : vector<8x96xf32> to vector<1x32xf32>
    %154 = vector.extract_strided_slice %147 {offsets = [6, 0], sizes = [1, 32], strides = [1, 1]} : vector<8x96xf32> to vector<1x32xf32>
    %155 = vector.extract_strided_slice %147 {offsets = [7, 0], sizes = [1, 32], strides = [1, 1]} : vector<8x96xf32> to vector<1x32xf32>
    %c1_49 = arith.constant 1 : index
    %c0_50 = arith.constant 0 : index
    %c0_51 = arith.constant 0 : index
    %156 = vector.load %arg3[%c1_49, %c0_50, %c0_51] : memref<2x32x96xf32, #tpu.memory_space<vmem>>, vector<1x32x96xf32>
    %157 = vector.shape_cast %156 : vector<1x32x96xf32> to vector<32x96xf32>
    %cst_52 = arith.constant dense<0.000000e+00> : vector<8x96xf32>
    %158 = tpu.matmul %145, %157, %cst_52 {dimension_numbers = #tpu.dot_dimension_numbers<[1], [0], [0], [1], [0, 0, 1, 1], [], []>} : vector<8x32xf32>, vector<32x96xf32>, vector<8x96xf32> -> vector<8x96xf32>
    %159 = vector.broadcast %148 : vector<1x96xf32> to vector<8x96xf32>
    %160 = arith.addf %158, %159 : vector<8x96xf32>
    %161 = vector.extract_strided_slice %160 {offsets = [0, 0], sizes = [8, 32], strides = [1, 1]} : vector<8x96xf32> to vector<8x32xf32>
    %162 = vector.shape_cast %161 : vector<8x32xf32> to vector<8x4x8xf32>
    %163 = vector.extract_strided_slice %160 {offsets = [0, 32], sizes = [8, 32], strides = [1, 1]} : vector<8x96xf32> to vector<8x32xf32>
    %164 = vector.shape_cast %163 : vector<8x32xf32> to vector<8x4x8xf32>
    %165 = vector.extract_strided_slice %160 {offsets = [0, 64], sizes = [8, 32], strides = [1, 1]} : vector<8x96xf32> to vector<8x32xf32>
    %166 = vector.shape_cast %165 : vector<8x32xf32> to vector<8x4x8xf32>
    "tpu.trace_start"() <{level = 10 : i32, message = "qhd,khd->hqk"}> : () -> ()
    %cst_53 = arith.constant dense<0.000000e+00> : vector<4x8x8xf32>
    %167 = tpu.matmul %162, %164, %cst_53 {dimension_numbers = #tpu.dot_dimension_numbers<[2], [2], [0], [0], [0, 1, 0, 0, 1, 0], [1], [1]>} : vector<8x4x8xf32>, vector<8x4x8xf32>, vector<4x8x8xf32> -> vector<4x8x8xf32>
    "tpu.trace_stop"() : () -> ()
    %168 = vector.broadcast %34 : vector<1x8x8xf32> to vector<4x8x8xf32>
    %169 = arith.addf %167, %168 : vector<4x8x8xf32>
    %cst_54 = arith.constant dense<0xFF800000> : vector<4x8xf32>
    %170 = vector.multi_reduction <maximumf>, %169, %cst_54 [2] : vector<4x8x8xf32> to vector<4x8xf32>
    %171 = vector.shape_cast %170 : vector<4x8xf32> to vector<4x8x1xf32>
    %172 = vector.broadcast %171 : vector<4x8x1xf32> to vector<4x8x8xf32>
    %173 = arith.subf %169, %172 : vector<4x8x8xf32>
    %174 = math.exp %173 : vector<4x8x8xf32>
    %cst_55 = arith.constant dense<0.000000e+00> : vector<4x8xf32>
    %175 = vector.multi_reduction <add>, %174, %cst_55 [2] : vector<4x8x8xf32> to vector<4x8xf32>
    %176 = vector.shape_cast %175 : vector<4x8xf32> to vector<4x8x1xf32>
    %177 = tpu.reciprocal %176 {approx = true} : vector<4x8x1xf32> -> vector<4x8x1xf32>
    %178 = vector.broadcast %177 : vector<4x8x1xf32> to vector<4x8x8xf32>
    %179 = arith.mulf %174, %178 : vector<4x8x8xf32>
    "tpu.trace_start"() <{level = 10 : i32, message = "hqk,khd->qhd"}> : () -> ()
    %cst_56 = arith.constant dense<0.000000e+00> : vector<4x8x8xf32>
    %180 = tpu.matmul %166, %179, %cst_56 {dimension_numbers = #tpu.dot_dimension_numbers<[0], [2], [2], [1], [0, 1, 0, 2, 1, 1], [1], [0]>} : vector<8x4x8xf32>, vector<4x8x8xf32>, vector<4x8x8xf32> -> vector<4x8x8xf32>
    %181 = tpu.transpose %180, [2, 0, 1] : vector<4x8x8xf32> -> vector<8x4x8xf32>
    "tpu.trace_stop"() : () -> ()
    %182 = vector.shape_cast %181 : vector<8x4x8xf32> to vector<8x32xf32>
    %c1_57 = arith.constant 1 : index
    %c0_58 = arith.constant 0 : index
    %c0_59 = arith.constant 0 : index
    %183 = vector.load %arg4[%c1_57, %c0_58, %c0_59] : memref<2x32x32xf32, #tpu.memory_space<vmem>>, vector<1x32x32xf32>
    %184 = vector.shape_cast %183 : vector<1x32x32xf32> to vector<32x32xf32>
    %cst_60 = arith.constant dense<0.000000e+00> : vector<8x32xf32>
    %185 = tpu.matmul %182, %184, %cst_60 {dimension_numbers = #tpu.dot_dimension_numbers<[1], [0], [0], [1], [0, 0, 1, 1], [], []>} : vector<8x32xf32>, vector<32x32xf32>, vector<8x32xf32> -> vector<8x32xf32>
    %186 = vector.broadcast %149 : vector<1x32xf32> to vector<8x32xf32>
    %187 = arith.addf %185, %186 : vector<8x32xf32>
    %188 = arith.addf %187, %145 : vector<8x32xf32>
    %cst_61 = arith.constant dense<0.000000e+00> : vector<8xf32>
    %189 = vector.multi_reduction <add>, %188, %cst_61 [1] : vector<8x32xf32> to vector<8xf32>
    %190 = vector.shape_cast %189 : vector<8xf32> to vector<8x1xf32>
    %cst_62 = arith.constant 3.200000e+01 : f32
    %191 = vector.broadcast %cst_62 : f32 to vector<8x1xf32>
    %192 = arith.divf %190, %191 : vector<8x1xf32>
    %193 = vector.broadcast %192 : vector<8x1xf32> to vector<8x32xf32>
    %194 = arith.subf %188, %193 : vector<8x32xf32>
    %195 = arith.mulf %194, %194 : vector<8x32xf32>
    %cst_63 = arith.constant dense<0.000000e+00> : vector<8xf32>
    %196 = vector.multi_reduction <add>, %195, %cst_63 [1] : vector<8x32xf32> to vector<8xf32>
    %197 = vector.shape_cast %196 : vector<8xf32> to vector<8x1xf32>
    %cst_64 = arith.constant 3.200000e+01 : f32
    %198 = vector.broadcast %cst_64 : f32 to vector<8x1xf32>
    %199 = arith.divf %197, %198 : vector<8x1xf32>
    %200 = vector.broadcast %192 : vector<8x1xf32> to vector<8x32xf32>
    %201 = arith.subf %188, %200 : vector<8x32xf32>
    %cst_65 = arith.constant 9.99999996E-13 : f32
    %202 = vector.broadcast %cst_65 : f32 to vector<8x1xf32>
    %203 = arith.addf %199, %202 : vector<8x1xf32>
    %204 = math.rsqrt %203 : vector<8x1xf32>
    %205 = vector.broadcast %204 : vector<8x1xf32> to vector<8x32xf32>
    %206 = arith.mulf %201, %205 : vector<8x32xf32>
    %207 = vector.broadcast %150 : vector<1x32xf32> to vector<8x32xf32>
    %208 = arith.mulf %206, %207 : vector<8x32xf32>
    %209 = vector.broadcast %151 : vector<1x32xf32> to vector<8x32xf32>
    %210 = arith.addf %208, %209 : vector<8x32xf32>
    %c1_66 = arith.constant 1 : index
    %c0_67 = arith.constant 0 : index
    %c0_68 = arith.constant 0 : index
    %211 = vector.load %arg5[%c1_66, %c0_67, %c0_68] : memref<2x32x64xf32, #tpu.memory_space<vmem>>, vector<1x32x64xf32>
    %212 = vector.shape_cast %211 : vector<1x32x64xf32> to vector<32x64xf32>
    %cst_69 = arith.constant dense<0.000000e+00> : vector<8x64xf32>
    %213 = tpu.matmul %210, %212, %cst_69 {dimension_numbers = #tpu.dot_dimension_numbers<[1], [0], [0], [1], [0, 0, 1, 1], [], []>} : vector<8x32xf32>, vector<32x64xf32>, vector<8x64xf32> -> vector<8x64xf32>
    %214 = vector.broadcast %152 : vector<1x64xf32> to vector<8x64xf32>
    %215 = arith.addf %213, %214 : vector<8x64xf32>
    %cst_70 = arith.constant 5.000000e-01 : f32
    %216 = vector.broadcast %cst_70 : f32 to vector<8x64xf32>
    %217 = arith.mulf %216, %215 : vector<8x64xf32>
    %cst_71 = arith.constant 4.471500e-02 : f32
    %218 = vector.broadcast %cst_71 : f32 to vector<8x64xf32>
    %219 = arith.mulf %218, %215 : vector<8x64xf32>
    %220 = arith.mulf %219, %215 : vector<8x64xf32>
    %221 = arith.mulf %220, %215 : vector<8x64xf32>
    %222 = arith.addf %215, %221 : vector<8x64xf32>
    %cst_72 = arith.constant 0.797884583 : f32
    %223 = vector.broadcast %cst_72 : f32 to vector<8x64xf32>
    %224 = arith.mulf %223, %222 : vector<8x64xf32>
    %225 = math.tanh %224 : vector<8x64xf32>
    %cst_73 = arith.constant 1.000000e+00 : f32
    %226 = vector.broadcast %cst_73 : f32 to vector<8x64xf32>
    %227 = arith.addf %226, %225 : vector<8x64xf32>
    %228 = arith.mulf %217, %227 : vector<8x64xf32>
    %c1_74 = arith.constant 1 : index
    %c0_75 = arith.constant 0 : index
    %c0_76 = arith.constant 0 : index
    %229 = vector.load %arg6[%c1_74, %c0_75, %c0_76] : memref<2x64x32xf32, #tpu.memory_space<vmem>>, vector<1x64x32xf32>
    %230 = vector.shape_cast %229 : vector<1x64x32xf32> to vector<64x32xf32>
    %cst_77 = arith.constant dense<0.000000e+00> : vector<8x32xf32>
    %231 = tpu.matmul %228, %230, %cst_77 {dimension_numbers = #tpu.dot_dimension_numbers<[1], [0], [0], [1], [0, 0, 1, 1], [], []>} : vector<8x64xf32>, vector<64x32xf32>, vector<8x32xf32> -> vector<8x32xf32>
    %232 = vector.broadcast %153 : vector<1x32xf32> to vector<8x32xf32>
    %233 = arith.addf %231, %232 : vector<8x32xf32>
    %234 = arith.addf %233, %210 : vector<8x32xf32>
    %cst_78 = arith.constant dense<0.000000e+00> : vector<8xf32>
    %235 = vector.multi_reduction <add>, %234, %cst_78 [1] : vector<8x32xf32> to vector<8xf32>
    %236 = vector.shape_cast %235 : vector<8xf32> to vector<8x1xf32>
    %cst_79 = arith.constant 3.200000e+01 : f32
    %237 = vector.broadcast %cst_79 : f32 to vector<8x1xf32>
    %238 = arith.divf %236, %237 : vector<8x1xf32>
    %239 = vector.broadcast %238 : vector<8x1xf32> to vector<8x32xf32>
    %240 = arith.subf %234, %239 : vector<8x32xf32>
    %241 = arith.mulf %240, %240 : vector<8x32xf32>
    %cst_80 = arith.constant dense<0.000000e+00> : vector<8xf32>
    %242 = vector.multi_reduction <add>, %241, %cst_80 [1] : vector<8x32xf32> to vector<8xf32>
    %243 = vector.shape_cast %242 : vector<8xf32> to vector<8x1xf32>
    %cst_81 = arith.constant 3.200000e+01 : f32
    %244 = vector.broadcast %cst_81 : f32 to vector<8x1xf32>
    %245 = arith.divf %243, %244 : vector<8x1xf32>
    %246 = vector.broadcast %238 : vector<8x1xf32> to vector<8x32xf32>
    %247 = arith.subf %234, %246 : vector<8x32xf32>
    %cst_82 = arith.constant 9.99999996E-13 : f32
    %248 = vector.broadcast %cst_82 : f32 to vector<8x1xf32>
    %249 = arith.addf %245, %248 : vector<8x1xf32>
    %250 = math.rsqrt %249 : vector<8x1xf32>
    %251 = vector.broadcast %250 : vector<8x1xf32> to vector<8x32xf32>
    %252 = arith.mulf %247, %251 : vector<8x32xf32>
    %253 = vector.broadcast %154 : vector<1x32xf32> to vector<8x32xf32>
    %254 = arith.mulf %252, %253 : vector<8x32xf32>
    %255 = vector.broadcast %155 : vector<1x32xf32> to vector<8x32xf32>
    %256 = arith.addf %254, %255 : vector<8x32xf32>
    %c0_83 = arith.constant 0 : index
    %c0_84 = arith.constant 0 : index
    %257 = vector.load %arg8[%c0_83, %c0_84] : memref<32x128xf32, #tpu.memory_space<vmem>>, vector<32x128xf32>
    %cst_85 = arith.constant dense<0.000000e+00> : vector<8x128xf32>
    %258 = tpu.matmul %256, %257, %cst_85 {dimension_numbers = #tpu.dot_dimension_numbers<[1], [0], [0], [1], [0, 0, 1, 1], [], []>} : vector<8x32xf32>, vector<32x128xf32>, vector<8x128xf32> -> vector<8x128xf32>
    %259 = vector.broadcast %3 : vector<1x128xf32> to vector<8x128xf32>
    %260 = arith.addf %258, %259 : vector<8x128xf32>
    %c0_86 = arith.constant 0 : index
    %c0_87 = arith.constant 0 : index
    %c0_88 = arith.constant 0 : index
    %261 = vector.load %arg2[%c0_86, %c0_87, %c0_88] : memref<1x8x128xf32, #tpu.memory_space<vmem>>, vector<1x8x128xf32>
    %262 = vector.shape_cast %261 : vector<1x8x128xf32> to vector<8x128xf32>
    %cst_89 = arith.constant dense<0xFF800000> : vector<8xf32>
    %263 = vector.multi_reduction <maximumf>, %260, %cst_89 [1] : vector<8x128xf32> to vector<8xf32>
    %264 = vector.shape_cast %263 : vector<8xf32> to vector<8x1xf32>
    %265 = vector.broadcast %264 : vector<8x1xf32> to vector<8x128xf32>
    %266 = arith.subf %260, %265 : vector<8x128xf32>
    %267 = math.exp %266 : vector<8x128xf32>
    %cst_90 = arith.constant dense<0.000000e+00> : vector<8xf32>
    %268 = vector.multi_reduction <add>, %267, %cst_90 [1] : vector<8x128xf32> to vector<8xf32>
    %269 = vector.shape_cast %268 : vector<8xf32> to vector<8x1xf32>
    %270 = math.log %269 : vector<8x1xf32>
    %271 = arith.addf %264, %270 : vector<8x1xf32>
    %272 = arith.mulf %260, %262 : vector<8x128xf32>
    %cst_91 = arith.constant dense<0.000000e+00> : vector<8xf32>
    %273 = vector.multi_reduction <add>, %272, %cst_91 [1] : vector<8x128xf32> to vector<8xf32>
    %274 = vector.shape_cast %273 : vector<8xf32> to vector<8x1xf32>
    %275 = arith.subf %271, %274 : vector<8x1xf32>
    %276 = vector.shape_cast %275 : vector<8x1xf32> to vector<1x8x1xf32>
    %cst_92 = arith.constant dense<0.000000e+00> : vector<1xf32>
    %277 = vector.multi_reduction <add>, %276, %cst_92 [1, 2] : vector<1x8x1xf32> to vector<1xf32>
    %278 = vector.shape_cast %277 : vector<1xf32> to vector<1x1x1xf32>
    %279 = vector.extract %278[0, 0, 0] : f32 from vector<1x1x1xf32>
    %280 = arith.index_cast %arg0 : i32 to index
    %c0_93 = arith.constant 0 : index
    %281 = memref.load %arg10[%280, %c0_93] : memref<2x1xf32, #tpu.memory_space<smem>>
    memref.store %279, %arg10[%280, %c0_93] : memref<2x1xf32, #tpu.memory_space<smem>>
    return
  }
  func.func @transform_0(%arg0: i32) -> (i32, i32, i32) {
    %c0_i32 = arith.constant 0 : i32
    %c0_i32_0 = arith.constant 0 : i32
    %c0_i32_1 = arith.constant 0 : i32
    return %arg0, %c0_i32, %c0_i32_0 : i32, i32, i32
  }
  func.func @transform_1(%arg0: i32) -> (i32, i32, i32) {
    %c0_i32 = arith.constant 0 : i32
    %c0_i32_0 = arith.constant 0 : i32
    %c0_i32_1 = arith.constant 0 : i32
    return %arg0, %c0_i32, %c0_i32_0 : i32, i32, i32
  }
  func.func @transform_2(%arg0: i32) -> (i32, i32, i32) {
    %c0_i32 = arith.constant 0 : i32
    %c0_i32_0 = arith.constant 0 : i32
    %c0_i32_1 = arith.constant 0 : i32
    %c0_i32_2 = arith.constant 0 : i32
    return %c0_i32, %c0_i32_0, %c0_i32_1 : i32, i32, i32
  }
  func.func @transform_3(%arg0: i32) -> (i32, i32, i32) {
    %c0_i32 = arith.constant 0 : i32
    %c0_i32_0 = arith.constant 0 : i32
    %c0_i32_1 = arith.constant 0 : i32
    %c0_i32_2 = arith.constant 0 : i32
    return %c0_i32, %c0_i32_0, %c0_i32_1 : i32, i32, i32
  }
  func.func @transform_4(%arg0: i32) -> (i32, i32, i32) {
    %c0_i32 = arith.constant 0 : i32
    %c0_i32_0 = arith.constant 0 : i32
    %c0_i32_1 = arith.constant 0 : i32
    %c0_i32_2 = arith.constant 0 : i32
    return %c0_i32, %c0_i32_0, %c0_i32_1 : i32, i32, i32
  }
  func.func @transform_5(%arg0: i32) -> (i32, i32, i32) {
    %c0_i32 = arith.constant 0 : i32
    %c0_i32_0 = arith.constant 0 : i32
    %c0_i32_1 = arith.constant 0 : i32
    %c0_i32_2 = arith.constant 0 : i32
    return %c0_i32, %c0_i32_0, %c0_i32_1 : i32, i32, i32
  }
  func.func @transform_6(%arg0: i32) -> (i32, i32, i32) {
    %c0_i32 = arith.constant 0 : i32
    %c0_i32_0 = arith.constant 0 : i32
    %c0_i32_1 = arith.constant 0 : i32
    %c0_i32_2 = arith.constant 0 : i32
    return %c0_i32, %c0_i32_0, %c0_i32_1 : i32, i32, i32
  }
  func.func @transform_7(%arg0: i32) -> (i32, i32) {
    %c0_i32 = arith.constant 0 : i32
    %c0_i32_0 = arith.constant 0 : i32
    %c0_i32_1 = arith.constant 0 : i32
    return %c0_i32, %c0_i32_0 : i32, i32
  }
  func.func @transform_8(%arg0: i32) -> (i32, i32) {
    %c0_i32 = arith.constant 0 : i32
    %c0_i32_0 = arith.constant 0 : i32
    %c0_i32_1 = arith.constant 0 : i32
    return %c0_i32, %c0_i32_0 : i32, i32
  }
  func.func @transform_9(%arg0: i32) -> (i32, i32) {
    %c0_i32 = arith.constant 0 : i32
    %c0_i32_0 = arith.constant 0 : i32
    %c0_i32_1 = arith.constant 0 : i32
    return %c0_i32, %c0_i32_0 : i32, i32
  }
}

</mosaic_0001>

<llo_original>
// kernel: _forward_train.1
$region0: #{_forward_train.1}
  #allocation0 [shape = 'u32[]', space=smem, size = 0x4, offset = 0x4, fixed_abs, tag = 'smem constant byte address 0x4 - core index']
  #allocation1 [shape = 'u32[144,128]{1,0:T(1,128)}', space=vmem, size = 0x12000, scoped, tag = 'internal scratch']
  %s0 = inlined_call_operand.vmem [shape: f32[2,8,32], index: 0, kind: input, shape index: {}]
  %s1 = inlined_call_operand.vmem [shape: f32[2,8,128], index: 1, kind: input, shape index: {}]
  %s2 = inlined_call_operand.vmem [shape: f32[2,32,96], index: 2, kind: input, shape index: {}]
  %s3 = inlined_call_operand.vmem [shape: f32[2,32,32], index: 3, kind: input, shape index: {}]
  %s4 = inlined_call_operand.vmem [shape: f32[2,32,64], index: 4, kind: input, shape index: {}]
  %s5 = inlined_call_operand.vmem [shape: f32[2,64,32], index: 5, kind: input, shape index: {}]
  %s6 = inlined_call_operand.vmem [shape: f32[2,8,96], index: 6, kind: input, shape index: {}]
  %s7 = inlined_call_operand.vmem [shape: f32[32,128], index: 7, kind: input, shape index: {}]
  %s8 = inlined_call_operand.vmem [shape: f32[8,128], index: 8, kind: input, shape index: {}]
  %s9 = inlined_call_operand.vmem [shape: f32[2,1], index: 9, kind: output, shape index: {}]
  %s10 = sld [smem:[#allocation0]]
  $region69: #{_forward_train.1} parent=0
    _
  %s12 = ssub.s32 1, %s10
  %s13 = scalar_select 0, %s12, %s10
  $region1: #{_forward_train.1} parent=0
    #allocation2 [shape = 'u8[1024]{0}', space=smem, size = 0x400, scoped, tag = 'output window, operand 0, single buffered']
    #allocation3 [shape = 's32[2]{0}', space=sflag, size = 0x8, scoped, tag = 'scoped memory for _forward_train.1']
    %14 = vsyncpa [#allocation3], 0
    loop: start=0, step=1, limit=4
    $region2: #{_forward_train.1} parent=1 // loop_pre_header
      _
    $region3: #{_forward_train.1} parent=1 // loop_header
      %s16 = sphi 0, %s20
      %p17 = scmp.ge.s32.totalorder %s16, 4
      %s26 = sphi 0, %s28
      %s29 = sphi 0, %s26
      %s30 = sphi 0, %s29
      %s46 = sphi 0, %s30
      %s52 = sphi 0, %s54
      %s55 = sphi 0, %s52
      %s56 = sphi 0, %s55
      %s72 = sphi 0, %s56
      %s76 = sphi 0, %s76
      %s78 = sphi 0, %s76
      %s79 = sphi 0, %s78
      %s93 = sphi 0, %s79
      %s97 = sphi 0, %s97
      %s99 = sphi 0, %s97
      %s100 = sphi 0, %s99
      %s114 = sphi 0, %s100
      %s118 = sphi 0, %s118
      %s120 = sphi 0, %s118
      %s121 = sphi 0, %s120
      %s135 = sphi 0, %s121
      %s139 = sphi 0, %s139
      %s141 = sphi 0, %s139
      %s142 = sphi 0, %s141
      %s156 = sphi 0, %s142
      %s160 = sphi 0, %s160
      %s162 = sphi 0, %s160
      %s163 = sphi 0, %s162
      %s177 = sphi 0, %s163
      %s181 = sphi 0, %s181
      %s183 = sphi 0, %s181
      %s184 = sphi 0, %s183
      %s198 = sphi 0, %s184
      %s202 = sphi 0, %s202
      %s204 = sphi 0, %s202
      %s205 = sphi 0, %s204
      %s219 = sphi 0, %s205
      %s223 = sphi 0, %s223
      %s225 = sphi 0, %s223
      %s226 = sphi 0, %s225
      %s240 = sphi 0, %s226
    $region4: #{_forward_train.1} parent=1 // loop_header_branch
      %19 = sbr.rel (%p17) target = $region8
    $region5: #{_forward_train.1} parent=1 // loop_body
      %s21 = ssub.s32 %s16, 1
      %s22 = ssub.s32 %s16, 2
      %s23 = sadd.s32 %s16, 1
      %s24 = ssub.s32 %s16, %s23
      %p25 = scmp.eq.s32.totalorder %s24, 0
      %s27 = sadd.s32 %s26, 1
      %s28 = scalar_select %p25, %s26, %s27
      %p31 = pneg %p25
      %p32 = scmp.eq.s32.totalorder %s16, 1
      %p33 = por %p31, %p32
      %p34 = scmp.ne.s32.totalorder %s26, %s29
      %p35 = scmp.eq.s32.totalorder %s16, 0
      %p36 = por %p34, %p35
      %p37 = scmp.ne.s32.totalorder %s26, %s29
      %p38 = scmp.eq.s32.totalorder %s21, 1
      %p39 = por %p37, %p38
      %p40 = scmp.ne.s32.totalorder %s29, %s30
      %p41 = scmp.eq.s32.totalorder %s21, 0
      %p42 = por %p40, %p41
      %p43 = scmp.ne.s32.totalorder %s29, %s30
      %p44 = scmp.eq.s32.totalorder %s22, 1
      %p45 = por %p43, %p44
      %p47 = scmp.ne.s32.totalorder %s30, %s46
      %p48 = scmp.eq.s32.totalorder %s22, 0
      %p49 = por %p47, %p48
      %s50 = ssub.s32 %s16, %s23
      %p51 = scmp.eq.s32.totalorder %s50, 0
      %s53 = sadd.s32 %s52, 1
      %s54 = scalar_select %p51, %s52, %s53
      %p57 = pneg %p51
      %p58 = scmp.eq.s32.totalorder %s16, 1
      %p59 = por %p57, %p58
      %p60 = scmp.ne.s32.totalorder %s52, %s55
      %p61 = scmp.eq.s32.totalorder %s16, 0
      %p62 = por %p60, %p61
      %p63 = scmp.ne.s32.totalorder %s52, %s55
      %p64 = scmp.eq.s32.totalorder %s21, 1
      %p65 = por %p63, %p64
      %p66 = scmp.ne.s32.totalorder %s55, %s56
      %p67 = scmp.eq.s32.totalorder %s21, 0
      %p68 = por %p66, %p67
      %p69 = scmp.ne.s32.totalorder %s55, %s56
      %p70 = scmp.eq.s32.totalorder %s22, 1
      %p71 = por %p69, %p70
      %p73 = scmp.ne.s32.totalorder %s56, %s72
      %p74 = scmp.eq.s32.totalorder %s22, 0
      %p75 = por %p73, %p74
      %s77 = sadd.s32 %s76, 1
      %p80 = scmp.eq.s32.totalorder %s16, 1
      %p81 = scmp.ne.s32.totalorder %s76, %s78
      %p82 = scmp.eq.s32.totalorder %s16, 0
      %p83 = por %p81, %p82
      %p84 = scmp.ne.s32.totalorder %s76, %s78
      %p85 = scmp.eq.s32.totalorder %s21, 1
      %p86 = por %p84, %p85
      %p87 = scmp.ne.s32.totalorder %s78, %s79
      %p88 = scmp.eq.s32.totalorder %s21, 0
      %p89 = por %p87, %p88
      %p90 = scmp.ne.s32.totalorder %s78, %s79
      %p91 = scmp.eq.s32.totalorder %s22, 1
      %p92 = por %p90, %p91
      %p94 = scmp.ne.s32.totalorder %s79, %s93
      %p95 = scmp.eq.s32.totalorder %s22, 0
      %p96 = por %p94, %p95
      %s98 = sadd.s32 %s97, 1
      %p101 = scmp.eq.s32.totalorder %s16, 1
      %p102 = scmp.ne.s32.totalorder %s97, %s99
      %p103 = scmp.eq.s32.totalorder %s16, 0
      %p104 = por %p102, %p103
      %p105 = scmp.ne.s32.totalorder %s97, %s99
      %p106 = scmp.eq.s32.totalorder %s21, 1
      %p107 = por %p105, %p106
      %p108 = scmp.ne.s32.totalorder %s99, %s100
      %p109 = scmp.eq.s32.totalorder %s21, 0
      %p110 = por %p108, %p109
      %p111 = scmp.ne.s32.totalorder %s99, %s100
      %p112 = scmp.eq.s32.totalorder %s22, 1
      %p113 = por %p111, %p112
      %p115 = scmp.ne.s32.totalorder %s100, %s114
      %p116 = scmp.eq.s32.totalorder %s22, 0
      %p117 = por %p115, %p116
      %s119 = sadd.s32 %s118, 1
      %p122 = scmp.eq.s32.totalorder %s16, 1
      %p123 = scmp.ne.s32.totalorder %s118, %s120
      %p124 = scmp.eq.s32.totalorder %s16, 0
      %p125 = por %p123, %p124
      %p126 = scmp.ne.s32.totalorder %s118, %s120
      %p127 = scmp.eq.s32.totalorder %s21, 1
      %p128 = por %p126, %p127
      %p129 = scmp.ne.s32.totalorder %s120, %s121
      %p130 = scmp.eq.s32.totalorder %s21, 0
      %p131 = por %p129, %p130
      %p132 = scmp.ne.s32.totalorder %s120, %s121
      %p133 = scmp.eq.s32.totalorder %s22, 1
      %p134 = por %p132, %p133
      %p136 = scmp.ne.s32.totalorder %s121, %s135
      %p137 = scmp.eq.s32.totalorder %s22, 0
      %p138 = por %p136, %p137
      %s140 = sadd.s32 %s139, 1
      %p143 = scmp.eq.s32.totalorder %s16, 1
      %p144 = scmp.ne.s32.totalorder %s139, %s141
      %p145 = scmp.eq.s32.totalorder %s16, 0
      %p146 = por %p144, %p145
      %p147 = scmp.ne.s32.totalorder %s139, %s141
      %p148 = scmp.eq.s32.totalorder %s21, 1
      %p149 = por %p147, %p148
      %p150 = scmp.ne.s32.totalorder %s141, %s142
      %p151 = scmp.eq.s32.totalorder %s21, 0
      %p152 = por %p150, %p151
      %p153 = scmp.ne.s32.totalorder %s141, %s142
      %p154 = scmp.eq.s32.totalorder %s22, 1
      %p155 = por %p153, %p154
      %p157 = scmp.ne.s32.totalorder %s142, %s156
      %p158 = scmp.eq.s32.totalorder %s22, 0
      %p159 = por %p157, %p158
      %s161 = sadd.s32 %s160, 1
      %p164 = scmp.eq.s32.totalorder %s16, 1
      %p165 = scmp.ne.s32.totalorder %s160, %s162
      %p166 = scmp.eq.s32.totalorder %s16, 0
      %p167 = por %p165, %p166
      %p168 = scmp.ne.s32.totalorder %s160, %s162
      %p169 = scmp.eq.s32.totalorder %s21, 1
      %p170 = por %p168, %p169
      %p171 = scmp.ne.s32.totalorder %s162, %s163
      %p172 = scmp.eq.s32.totalorder %s21, 0
      %p173 = por %p171, %p172
      %p174 = scmp.ne.s32.totalorder %s162, %s163
      %p175 = scmp.eq.s32.totalorder %s22, 1
      %p176 = por %p174, %p175
      %p178 = scmp.ne.s32.totalorder %s163, %s177
      %p179 = scmp.eq.s32.totalorder %s22, 0
      %p180 = por %p178, %p179
      %s182 = sadd.s32 %s181, 1
      %p185 = scmp.eq.s32.totalorder %s16, 1
      %p186 = scmp.ne.s32.totalorder %s181, %s183
      %p187 = scmp.eq.s32.totalorder %s16, 0
      %p188 = por %p186, %p187
      %p189 = scmp.ne.s32.totalorder %s181, %s183
      %p190 = scmp.eq.s32.totalorder %s21, 1
      %p191 = por %p189, %p190
      %p192 = scmp.ne.s32.totalorder %s183, %s184
      %p193 = scmp.eq.s32.totalorder %s21, 0
      %p194 = por %p192, %p193
      %p195 = scmp.ne.s32.totalorder %s183, %s184
      %p196 = scmp.eq.s32.totalorder %s22, 1
      %p197 = por %p195, %p196
      %p199 = scmp.ne.s32.totalorder %s184, %s198
      %p200 = scmp.eq.s32.totalorder %s22, 0
      %p201 = por %p199, %p200
      %s203 = sadd.s32 %s202, 1
      %p206 = scmp.eq.s32.totalorder %s16, 1
      %p207 = scmp.ne.s32.totalorder %s202, %s204
      %p208 = scmp.eq.s32.totalorder %s16, 0
      %p209 = por %p207, %p208
      %p210 = scmp.ne.s32.totalorder %s202, %s204
      %p211 = scmp.eq.s32.totalorder %s21, 1
      %p212 = por %p210, %p211
      %p213 = scmp.ne.s32.totalorder %s204, %s205
      %p214 = scmp.eq.s32.totalorder %s21, 0
      %p215 = por %p213, %p214
      %p216 = scmp.ne.s32.totalorder %s204, %s205
      %p217 = scmp.eq.s32.totalorder %s22, 1
      %p218 = por %p216, %p217
      %p220 = scmp.ne.s32.totalorder %s205, %s219
      %p221 = scmp.eq.s32.totalorder %s22, 0
      %p222 = por %p220, %p221
      %s224 = sadd.s32 %s223, 1
      %p227 = scmp.eq.s32.totalorder %s16, 1
      %p228 = scmp.ne.s32.totalorder %s223, %s225
      %p229 = scmp.eq.s32.totalorder %s16, 0
      %p230 = por %p228, %p229
      %p231 = scmp.ne.s32.totalorder %s223, %s225
      %p232 = scmp.eq.s32.totalorder %s21, 1
      %p233 = por %p231, %p232
      %p234 = scmp.ne.s32.totalorder %s225, %s226
      %p235 = scmp.eq.s32.totalorder %s21, 0
      %p236 = por %p234, %p235
      %p237 = scmp.ne.s32.totalorder %s225, %s226
      %p238 = scmp.eq.s32.totalorder %s22, 1
      %p239 = por %p237, %p238
      %p241 = scmp.ne.s32.totalorder %s226, %s240
      %p242 = scmp.eq.s32.totalorder %s22, 0
      %p243 = por %p241, %p242
      %p244 = scmp.le.s32.totalorder 1, %s16
      %p245 = scmp.lt.s32.totalorder %s16, 3
      %p246 = pnand %p244, %p245
      %p247 = pneg %p246
      // Predicated region
      $region9: #{_forward_train.1} parent=5 // pred_check
        _
      $region10: #{_forward_train.1} parent=5 // pred_check_branch
        %249 = sbr.rel (%p246) target = $region12
      $region11: #{_forward_train.1} parent=5 // pred_region
        %s250 = ssub.s32 %s16, 1
        // Predicated region
        $region13: #{_forward_train.1} parent=11 // pred_check
          %p251 = pneg %p89
        $region14: #{_forward_train.1} parent=11 // pred_check_branch
          %253 = sbr.rel (%p251) target = $region16
        $region15: #{_forward_train.1} parent=11 // pred_region
          _
        $region16: #{_forward_train.1} parent=11 // pred_fallthru
          _
        // Predicated region
        $region17: #{_forward_train.1} parent=11 // pred_check
          %p254 = pneg %p110
        $region18: #{_forward_train.1} parent=11 // pred_check_branch
          %256 = sbr.rel (%p254) target = $region20
        $region19: #{_forward_train.1} parent=11 // pred_region
          _
        $region20: #{_forward_train.1} parent=11 // pred_fallthru
          _
        // Predicated region
        $region21: #{_forward_train.1} parent=11 // pred_check
          %p257 = pneg %p131
        $region22: #{_forward_train.1} parent=11 // pred_check_branch
          %259 = sbr.rel (%p257) target = $region24
        $region23: #{_forward_train.1} parent=11 // pred_region
          _
        $region24: #{_forward_train.1} parent=11 // pred_fallthru
          _
        // Predicated region
        $region25: #{_forward_train.1} parent=11 // pred_check
          %p260 = pneg %p152
        $region26: #{_forward_train.1} parent=11 // pred_check_branch
          %262 = sbr.rel (%p260) target = $region28
        $region27: #{_forward_train.1} parent=11 // pred_region
          _
        $region28: #{_forward_train.1} parent=11 // pred_fallthru
          _
        // Predicated region
        $region29: #{_forward_train.1} parent=11 // pred_check
          %p263 = pneg %p173
        $region30: #{_forward_train.1} parent=11 // pred_check_branch
          %265 = sbr.rel (%p263) target = $region32
        $region31: #{_forward_train.1} parent=11 // pred_region
          _
        $region32: #{_forward_train.1} parent=11 // pred_fallthru
          _
        // Predicated region
        $region33: #{_forward_train.1} parent=11 // pred_check
          %p266 = pneg %p194
        $region34: #{_forward_train.1} parent=11 // pred_check_branch
          %268 = sbr.rel (%p266) target = $region36
        $region35: #{_forward_train.1} parent=11 // pred_region
          _
        $region36: #{_forward_train.1} parent=11 // pred_fallthru
          _
        // Predicated region
        $region37: #{_forward_train.1} parent=11 // pred_check
          %p269 = pneg %p215
        $region38: #{_forward_train.1} parent=11 // pred_check_branch
          %271 = sbr.rel (%p269) target = $region40
        $region39: #{_forward_train.1} parent=11 // pred_region
          _
        $region40: #{_forward_train.1} parent=11 // pred_fallthru
          _
      $region12: #{_forward_train.1} parent=5 // pred_fallthru
        _
      %p272 = scmp.lt.s32.totalorder %s16, 2
      // Predicated region
      $region41: #{_forward_train.1} parent=5 // pred_check
        %p273 = pneg %p272
      $region42: #{_forward_train.1} parent=5 // pred_check_branch
        %275 = sbr.rel (%p273) target = $region44
      $region43: #{_forward_train.1} parent=5 // pred_region
        // Predicated region
        $region45: #{_forward_train.1} parent=43 // pred_check
          %p276 = pneg %p36
        $region46: #{_forward_train.1} parent=43 // pred_check_branch
          %278 = sbr.rel (%p276) target = $region48
        $region47: #{_forward_train.1} parent=43 // pred_region
          %p279 = scmp.lt.s32.totalorder %s16, 1
          %s280 = scalar_select %p279, %s16, 1
          %s281 = smul.addr %s280, 8
          %s282 = scalar_lea.vmem %s0, %s281
        $region48: #{_forward_train.1} parent=43 // pred_fallthru
          _
        // Predicated region
        $region49: #{_forward_train.1} parent=43 // pred_check
          %p283 = pneg %p62
        $region50: #{_forward_train.1} parent=43 // pred_check_branch
          %285 = sbr.rel (%p283) target = $region52
        $region51: #{_forward_train.1} parent=43 // pred_region
          %p286 = scmp.lt.s32.totalorder %s16, 1
          %s287 = scalar_select %p286, %s16, 1
          %s288 = smul.addr %s287, 8
          %s289 = scalar_lea.vmem %s1, %s288
        $region52: #{_forward_train.1} parent=43 // pred_fallthru
          _
      $region44: #{_forward_train.1} parent=5 // pred_fallthru
        _
      %p290 = scmp.le.s32.totalorder 1, %s16
      %p291 = scmp.lt.s32.totalorder %s16, 3
      %p292 = pnand %p290, %p291
      %p293 = pneg %p292
      // Predicated region
      $region53: #{_forward_train.1} parent=5 // pred_check
        _
      $region54: #{_forward_train.1} parent=5 // pred_check_branch
        %295 = sbr.rel (%p292) target = $region56
      $region55: #{_forward_train.1} parent=5 // pred_region
        %s296 = ssub.s32 %s16, 1
        %p297 = scmp.lt.s32.totalorder %s21, 1
        %s298 = scalar_select %p297, %s21, 1
        %s299 = smul.addr %s298, 8
        %s300 = scalar_lea.vmem %s0, %s299
        %p301 = pneg %p42
        %p302 = pneg %p39
        %p303 = scmp.lt.s32.totalorder %s21, 1
        %s304 = scalar_select %p303, %s21, 1
        %s305 = smul.addr %s304, 8
        %s306 = scalar_lea.vmem %s1, %s305
        %p307 = pneg %p68
        %p308 = pneg %p65
        %p309 = pneg %p89
        %p310 = pneg %p86
        %p311 = pneg %p110
        %p312 = pneg %p107
        %p313 = pneg %p131
        %p314 = pneg %p128
        %p315 = pneg %p152
        %p316 = pneg %p149
        %p317 = pneg %p173
        %p318 = pneg %p170
        %p319 = pneg %p194
        %p320 = pneg %p191
        %p321 = pneg %p215
        %p322 = pneg %p212
        %p323 = pneg %p236
        %p324 = pneg %p233
        %p325 = scmp.lt.s32.totalorder %s21, 1
        %s326 = scalar_select %p325, %s21, 1
        %s327 = smul.addr %s326, 8
        %s328 = scalar_lea.vmem %s0, %s327
        %p329 = scmp.lt.s32.totalorder %s21, 1
        %s330 = scalar_select %p329, %s21, 1
        %s331 = smul.addr %s330, 8
        %s332 = scalar_lea.vmem %s1, %s331
        %v333 = vld [vmem:[%s8] sm:$0xff]
        %v334 = vld [vmem:[%s328] sm:$0xff]
        %vm335 = vcmask 261120
        %v336 = vsel %vm335, %v334, 0.0
        %337 = vadd.xlane.f32.xlu0 %v336
        %v338 = vpop.xlane.xlu0 %337
        %v339 = vrcp.pop 32.0
        %v340 = vmul.f32 %v338, %v339
        %v341 = vsub.f32 %v334, %v340
        %v342 = vmul.f32 %v341, %v341
        %v343 = vsel %vm335, %v342, 0.0
        %344 = vadd.xlane.f32.xlu0 %v343
        %v345 = vpop.xlane.xlu0 %344
        %v346 = vmul.f32 %v345, %v339
        %v347 = vadd.f32 %v346, 1e-12
        %v348 = vrsqrt.pop %v347
        %v349 = vmul.f32 %v341, %v348
        %v350 = vlaneseq
        %v351 = vshrl.u32 %v350, 7
        %v352 = vsub.s32 0, %v351
        %v353 = vrot.slane %v333, %v352
        %v354 = vmul.f32 %v349, %v353
        %v355 = vlaneseq
        %v356 = vshrl.u32 %v355, 7
        %v357 = vsub.s32 1, %v356
        %v358 = vrot.slane %v333, %v357
        %v359 = vadd.f32 %v354, %v358
        %v360 = vlaneseq
        %v361 = vshrl.u32 %v360, 7
        %v362 = vlaneseq
        %v363 = vand.u32 %v362, 127
        %vm364 = vcmp.le.s32.totalorder %v363, %v361
        %v365 = vsel %vm364, 0.0, -10000.0
        %v366 = vld [vmem:[%s6] sm:$0xff]
        %v367 = vld [vmem:[%s2] sm:$0xff]
        %v368 = vld [vmem:[%s2 + $0x8] sm:$0xff]
        %v369 = vld [vmem:[%s2 + $0x10] sm:$0xff]
        %v370 = vld [vmem:[%s2 + $0x18] sm:$0xff]
        %v371 = vlaneseq
        %v372 = vshrl.u32 %v371, 7
        %v373 = vsub.s32 0, %v372
        %v374 = vrot.slane %v366, %v373
        %v376 = vsel %vm335, %v359, 0
        %378 = vmatprep.subr.mxu0 0.0
        %379 = vmatpush1.msra.mxu0 %v367
        %380 = vmatprep.subr.mxu0 0.0
        %381 = vmatpush1.msra.mxu0 %v368
        %382 = vmatprep.subr.mxu0 0.0
        %383 = vmatpush1.msra.mxu0 %v369
        %384 = vmatprep.subr.mxu0 0.0
        %385 = vmatpush1.msra.mxu0 %v370
        %386 = vmatprep.subr.mxu0 0.0
        %387 = vmatpush1.msra.mxu0 0.0
        %388 = vmatprep.subr.mxu0 0.0
        %389 = vmatpush1.msra.mxu0 0.0
        %390 = vmatprep.subr.mxu0 0.0
        %391 = vmatpush1.msra.mxu0 0.0
        %392 = vmatprep.subr.mxu0 0.0
        %393 = vmatpush1.msra.mxu0 0.0
        %394 = vmatprep.subr.mxu0 0.0
        %395 = vmatpush1.msra.mxu0 0.0
        %396 = vmatprep.subr.mxu0 0.0
        %397 = vmatpush1.msra.mxu0 0.0
        %398 = vmatprep.subr.mxu0 0.0
        %399 = vmatpush1.msra.mxu0 0.0
        %400 = vmatprep.subr.mxu0 0.0
        %401 = vmatpush1.msra.mxu0 0.0
        %402 = vmatprep.subr.mxu0 0.0
        %403 = vmatpush1.msra.mxu0 0.0
        %404 = vmatprep.subr.mxu0 0.0
        %405 = vmatpush1.msra.mxu0 0.0
        %406 = vmatprep.subr.mxu0 0.0
        %407 = vmatpush1.msra.mxu0 0.0
        %408 = vmatprep.subr.mxu0 0.0
        %409 = vmatpush1.msra.mxu0 0.0
        %410 = vmatprep.subr.mxu0 0.0
        %411 = vmatpush1.msra.mxu0 0.0
        %412 = vmatprep.subr.mxu0 0.0
        %413 = vmatpush1.msra.mxu0 0.0
        %414 = vmatprep.subr.mxu0 0.0
        %415 = vmatpush1.msra.mxu0 0.0
        %416 = vmatprep.subr.mxu0 0.0
        %417 = vmatpush1.msra.mxu0 0.0
        %418 = vmatprep.subr.mxu0 0.0
        %419 = vmatpush1.msra.mxu0 0.0
        %420 = vmatprep.subr.mxu0 0.0
        %421 = vmatpush1.msra.mxu0 0.0
        %422 = vmatprep.subr.mxu0 0.0
        %423 = vmatpush1.msra.mxu0 0.0
        %424 = vmatprep.subr.mxu0 0.0
        %425 = vmatpush1.msra.mxu0 0.0
        %426 = vmatprep.subr.mxu0 0.0
        %427 = vmatpush1.msra.mxu0 0.0
        %428 = vmatprep.subr.mxu0 0.0
        %429 = vmatpush1.msra.mxu0 0.0
        %430 = vmatprep.subr.mxu0 0.0
        %431 = vmatpush1.msra.mxu0 0.0
        %432 = vmatprep.subr.mxu0 0.0
        %433 = vmatpush1.msra.mxu0 0.0
        %434 = vmatprep.subr.mxu0 0.0
        %435 = vmatpush1.msra.mxu0 0.0
        %436 = vmatprep.subr.mxu0 0.0
        %437 = vmatpush1.msra.mxu0 0.0
        %438 = vmatprep.subr.mxu0 0.0
        %439 = vmatpush1.msra.mxu0 0.0
        %440 = vmatprep.subr.mxu0 0.0
        %441 = vmatpush1.msra.mxu0 0.0
        %442 = vmatprep.mubr.f32.mxu0 0.0
        %443 = vmatmul.mubr.f32.gmra.mrb[0].mxu0 %v376
        %v444 = vpop.f32.mrb[0].mxu0
        %v445 = vadd.f32 %v374, %v444
        %v446 = vpop.f32.mrb[0].mxu0
        %447 = vdwg.mxu0
        %449 = vrot.lane.b32.xlu0 %v445, 120
        %v450 = vpop.permute.xlu0 %449
        %451 = vrot.lane.b32.xlu0 %v445, 112
        %v452 = vpop.permute.xlu0 %451
        %453 = vrot.lane.b32.xlu0 %v445, 104
        %v454 = vpop.permute.xlu0 %453
        %455 = vrot.lane.b32.xlu0 %v445, 96
        %v456 = vpop.permute.xlu0 %455
        %457 = vrot.lane.b32.xlu0 %v450, 96
        %v458 = vpop.permute.xlu0 %457
        %459 = vrot.lane.b32.xlu0 %v452, 96
        %v460 = vpop.permute.xlu0 %459
        %461 = vrot.lane.b32.xlu0 %v454, 96
        %v462 = vpop.permute.xlu0 %461
        %467 = vxpose.xlu0.b32.start [1/16] %v456, 128
        %468 = vxpose.xlu0.b32.cont [2/16] 0.0, 128
        %469 = vxpose.xlu0.b32.cont [3/16] 0.0, 128
        %470 = vxpose.xlu0.b32.cont [4/16] 0.0, 128
        %471 = vxpose.xlu0.b32.cont [5/16] 0.0, 128
        %472 = vxpose.xlu0.b32.cont [6/16] 0.0, 128
        %473 = vxpose.xlu0.b32.cont [7/16] 0.0, 128
        %474 = vxpose.xlu0.b32.cont [8/16] 0.0, 128
        %475 = vxpose.xlu0.b32.cont [9/16] 0.0, 128
        %476 = vxpose.xlu0.b32.cont [10/16] 0.0, 128
        %477 = vxpose.xlu0.b32.cont [11/16] 0.0, 128
        %478 = vxpose.xlu0.b32.cont [12/16] 0.0, 128
        %479 = vxpose.xlu0.b32.cont [13/16] 0.0, 128
        %480 = vxpose.xlu0.b32.cont [14/16] 0.0, 128
        %481 = vxpose.xlu0.b32.cont [15/16] 0.0, 128
        %482 = vxpose.xlu0.b32.end [16/16] 0.0, 128
        %v483 = vpop.trf.xlu0
        %v484 = vpop.trf.xlu0
        %v485 = vpop.trf.xlu0
        %v486 = vpop.trf.xlu0
        %v487 = vpop.trf.xlu0
        %v488 = vpop.trf.xlu0
        %v489 = vpop.trf.xlu0
        %v490 = vpop.trf.xlu0
        %v491 = vpop.trf.xlu0
        %v492 = vpop.trf.xlu0
        %v493 = vpop.trf.xlu0
        %v494 = vpop.trf.xlu0
        %v495 = vpop.trf.xlu0
        %v496 = vpop.trf.xlu0
        %v497 = vpop.trf.xlu0
        %v498 = vpop.trf.xlu0
        %499 = vxpose.xlu0.b32.start [1/16] %v458, 128
        %500 = vxpose.xlu0.b32.cont [2/16] 0.0, 128
        %501 = vxpose.xlu0.b32.cont [3/16] 0.0, 128
        %502 = vxpose.xlu0.b32.cont [4/16] 0.0, 128
        %503 = vxpose.xlu0.b32.cont [5/16] 0.0, 128
        %504 = vxpose.xlu0.b32.cont [6/16] 0.0, 128
        %505 = vxpose.xlu0.b32.cont [7/16] 0.0, 128
        %506 = vxpose.xlu0.b32.cont [8/16] 0.0, 128
        %507 = vxpose.xlu0.b32.cont [9/16] 0.0, 128
        %508 = vxpose.xlu0.b32.cont [10/16] 0.0, 128
        %509 = vxpose.xlu0.b32.cont [11/16] 0.0, 128
        %510 = vxpose.xlu0.b32.cont [12/16] 0.0, 128
        %511 = vxpose.xlu0.b32.cont [13/16] 0.0, 128
        %512 = vxpose.xlu0.b32.cont [14/16] 0.0, 128
        %513 = vxpose.xlu0.b32.cont [15/16] 0.0, 128
        %514 = vxpose.xlu0.b32.end [16/16] 0.0, 128
        %v515 = vpop.trf.xlu0
        %v516 = vpop.trf.xlu0
        %v517 = vpop.trf.xlu0
        %v518 = vpop.trf.xlu0
        %v519 = vpop.trf.xlu0
        %v520 = vpop.trf.xlu0
        %v521 = vpop.trf.xlu0
        %v522 = vpop.trf.xlu0
        %v523 = vpop.trf.xlu0
        %v524 = vpop.trf.xlu0
        %v525 = vpop.trf.xlu0
        %v526 = vpop.trf.xlu0
        %v527 = vpop.trf.xlu0
        %v528 = vpop.trf.xlu0
        %v529 = vpop.trf.xlu0
        %v530 = vpop.trf.xlu0
        %531 = vxpose.xlu0.b32.start [1/16] %v460, 128
        %532 = vxpose.xlu0.b32.cont [2/16] 0.0, 128
        %533 = vxpose.xlu0.b32.cont [3/16] 0.0, 128
        %534 = vxpose.xlu0.b32.cont [4/16] 0.0, 128
        %535 = vxpose.xlu0.b32.cont [5/16] 0.0, 128
        %536 = vxpose.xlu0.b32.cont [6/16] 0.0, 128
        %537 = vxpose.xlu0.b32.cont [7/16] 0.0, 128
        %538 = vxpose.xlu0.b32.cont [8/16] 0.0, 128
        %539 = vxpose.xlu0.b32.cont [9/16] 0.0, 128
        %540 = vxpose.xlu0.b32.cont [10/16] 0.0, 128
        %541 = vxpose.xlu0.b32.cont [11/16] 0.0, 128
        %542 = vxpose.xlu0.b32.cont [12/16] 0.0, 128
        %543 = vxpose.xlu0.b32.cont [13/16] 0.0, 128
        %544 = vxpose.xlu0.b32.cont [14/16] 0.0, 128
        %545 = vxpose.xlu0.b32.cont [15/16] 0.0, 128
        %546 = vxpose.xlu0.b32.end [16/16] 0.0, 128
        %v547 = vpop.trf.xlu0
        %v548 = vpop.trf.xlu0
        %v549 = vpop.trf.xlu0
        %v550 = vpop.trf.xlu0
        %v551 = vpop.trf.xlu0
        %v552 = vpop.trf.xlu0
        %v553 = vpop.trf.xlu0
        %v554 = vpop.trf.xlu0
        %v555 = vpop.trf.xlu0
        %v556 = vpop.trf.xlu0
        %v557 = vpop.trf.xlu0
        %v558 = vpop.trf.xlu0
        %v559 = vpop.trf.xlu0
        %v560 = vpop.trf.xlu0
        %v561 = vpop.trf.xlu0
        %v562 = vpop.trf.xlu0
        %563 = vxpose.xlu0.b32.start [1/16] %v462, 128
        %564 = vxpose.xlu0.b32.cont [2/16] 0.0, 128
        %565 = vxpose.xlu0.b32.cont [3/16] 0.0, 128
        %566 = vxpose.xlu0.b32.cont [4/16] 0.0, 128
        %567 = vxpose.xlu0.b32.cont [5/16] 0.0, 128
        %568 = vxpose.xlu0.b32.cont [6/16] 0.0, 128
        %569 = vxpose.xlu0.b32.cont [7/16] 0.0, 128
        %570 = vxpose.xlu0.b32.cont [8/16] 0.0, 128
        %571 = vxpose.xlu0.b32.cont [9/16] 0.0, 128
        %572 = vxpose.xlu0.b32.cont [10/16] 0.0, 128
        %573 = vxpose.xlu0.b32.cont [11/16] 0.0, 128
        %574 = vxpose.xlu0.b32.cont [12/16] 0.0, 128
        %575 = vxpose.xlu0.b32.cont [13/16] 0.0, 128
        %576 = vxpose.xlu0.b32.cont [14/16] 0.0, 128
        %577 = vxpose.xlu0.b32.cont [15/16] 0.0, 128
        %578 = vxpose.xlu0.b32.end [16/16] 0.0, 128
        %v579 = vpop.trf.xlu0
        %v580 = vpop.trf.xlu0
        %v581 = vpop.trf.xlu0
        %v582 = vpop.trf.xlu0
        %v583 = vpop.trf.xlu0
        %v584 = vpop.trf.xlu0
        %v585 = vpop.trf.xlu0
        %v586 = vpop.trf.xlu0
        %v587 = vpop.trf.xlu0
        %v588 = vpop.trf.xlu0
        %v589 = vpop.trf.xlu0
        %v590 = vpop.trf.xlu0
        %v591 = vpop.trf.xlu0
        %v592 = vpop.trf.xlu0
        %v593 = vpop.trf.xlu0
        %v594 = vpop.trf.xlu0
        %vm595 = vcmask 64512
        %v596 = vsel %vm595, %v445, 0
        %598 = vmatprep.subr.mxu0 0.0
        %599 = vmatpush1.msra.mxu0 %v483
        %600 = vmatprep.subr.mxu0 0.0
        %601 = vmatpush1.msra.mxu0 0.0
        %602 = vmatprep.subr.mxu0 0.0
        %603 = vmatpush1.msra.mxu0 0.0
        %604 = vmatprep.subr.mxu0 0.0
        %605 = vmatpush1.msra.mxu0 0.0
        %606 = vmatprep.subr.mxu0 0.0
        %607 = vmatpush1.msra.mxu0 0.0
        %608 = vmatprep.subr.mxu0 0.0
        %609 = vmatpush1.msra.mxu0 0.0
        %610 = vmatprep.subr.mxu0 0.0
        %611 = vmatpush1.msra.mxu0 0.0
        %612 = vmatprep.subr.mxu0 0.0
        %613 = vmatpush1.msra.mxu0 0.0
        %614 = vmatprep.subr.mxu0 0.0
        %615 = vmatpush1.msra.mxu0 0.0
        %616 = vmatprep.subr.mxu0 0.0
        %617 = vmatpush1.msra.mxu0 0.0
        %618 = vmatprep.subr.mxu0 0.0
        %619 = vmatpush1.msra.mxu0 0.0
        %620 = vmatprep.subr.mxu0 0.0
        %621 = vmatpush1.msra.mxu0 0.0
        %622 = vmatprep.subr.mxu0 0.0
        %623 = vmatpush1.msra.mxu0 0.0
        %624 = vmatprep.subr.mxu0 0.0
        %625 = vmatpush1.msra.mxu0 0.0
        %626 = vmatprep.subr.mxu0 0.0
        %627 = vmatpush1.msra.mxu0 0.0
        %628 = vmatprep.subr.mxu0 0.0
        %629 = vmatpush1.msra.mxu0 0.0
        %630 = vmatprep.subr.mxu0 0.0
        %631 = vmatpush1.msra.mxu0 0.0
        %632 = vmatprep.subr.mxu0 0.0
        %633 = vmatpush1.msra.mxu0 0.0
        %634 = vmatprep.subr.mxu0 0.0
        %635 = vmatpush1.msra.mxu0 0.0
        %636 = vmatprep.subr.mxu0 0.0
        %637 = vmatpush1.msra.mxu0 0.0
        %638 = vmatprep.subr.mxu0 0.0
        %639 = vmatpush1.msra.mxu0 0.0
        %640 = vmatprep.subr.mxu0 0.0
        %641 = vmatpush1.msra.mxu0 0.0
        %642 = vmatprep.subr.mxu0 0.0
        %643 = vmatpush1.msra.mxu0 0.0
        %644 = vmatprep.subr.mxu0 0.0
        %645 = vmatpush1.msra.mxu0 0.0
        %646 = vmatprep.subr.mxu0 0.0
        %647 = vmatpush1.msra.mxu0 0.0
        %648 = vmatprep.subr.mxu0 0.0
        %649 = vmatpush1.msra.mxu0 0.0
        %650 = vmatprep.subr.mxu0 0.0
        %651 = vmatpush1.msra.mxu0 0.0
        %652 = vmatprep.subr.mxu0 0.0
        %653 = vmatpush1.msra.mxu0 0.0
        %654 = vmatprep.subr.mxu0 0.0
        %655 = vmatpush1.msra.mxu0 0.0
        %656 = vmatprep.subr.mxu0 0.0
        %657 = vmatpush1.msra.mxu0 0.0
        %658 = vmatprep.subr.mxu0 0.0
        %659 = vmatpush1.msra.mxu0 0.0
        %660 = vmatprep.subr.mxu0 0.0
        %661 = vmatpush1.msra.mxu0 0.0
        %662 = vmatprep.mubr.f32.mxu0 0.0
        %663 = vmatmul.mubr.f32.gmra.mrb[0].mxu0 %v596
        %v664 = vpop.f32.mrb[0].mxu0
        %v665 = vadd.f32 %v365, %v664
        %v666 = vpop.f32.mrb[0].mxu0
        %667 = vdwg.mxu0
        %v668 = vsel %vm595, %v450, 0
        %670 = vmatprep.subr.mxu0 0.0
        %671 = vmatpush1.msra.mxu0 %v515
        %672 = vmatprep.subr.mxu0 0.0
        %673 = vmatpush1.msra.mxu0 0.0
        %674 = vmatprep.subr.mxu0 0.0
        %675 = vmatpush1.msra.mxu0 0.0
        %676 = vmatprep.subr.mxu0 0.0
        %677 = vmatpush1.msra.mxu0 0.0
        %678 = vmatprep.subr.mxu0 0.0
        %679 = vmatpush1.msra.mxu0 0.0
        %680 = vmatprep.subr.mxu0 0.0
        %681 = vmatpush1.msra.mxu0 0.0
        %682 = vmatprep.subr.mxu0 0.0
        %683 = vmatpush1.msra.mxu0 0.0
        %684 = vmatprep.subr.mxu0 0.0
        %685 = vmatpush1.msra.mxu0 0.0
        %686 = vmatprep.subr.mxu0 0.0
        %687 = vmatpush1.msra.mxu0 0.0
        %688 = vmatprep.subr.mxu0 0.0
        %689 = vmatpush1.msra.mxu0 0.0
        %690 = vmatprep.subr.mxu0 0.0
        %691 = vmatpush1.msra.mxu0 0.0
        %692 = vmatprep.subr.mxu0 0.0
        %693 = vmatpush1.msra.mxu0 0.0
        %694 = vmatprep.subr.mxu0 0.0
        %695 = vmatpush1.msra.mxu0 0.0
        %696 = vmatprep.subr.mxu0 0.0
        %697 = vmatpush1.msra.mxu0 0.0
        %698 = vmatprep.subr.mxu0 0.0
        %699 = vmatpush1.msra.mxu0 0.0
        %700 = vmatprep.subr.mxu0 0.0
        %701 = vmatpush1.msra.mxu0 0.0
        %702 = vmatprep.subr.mxu0 0.0
        %703 = vmatpush1.msra.mxu0 0.0
        %704 = vmatprep.subr.mxu0 0.0
        %705 = vmatpush1.msra.mxu0 0.0
        %706 = vmatprep.subr.mxu0 0.0
        %707 = vmatpush1.msra.mxu0 0.0
        %708 = vmatprep.subr.mxu0 0.0
        %709 = vmatpush1.msra.mxu0 0.0
        %710 = vmatprep.subr.mxu0 0.0
        %711 = vmatpush1.msra.mxu0 0.0
        %712 = vmatprep.subr.mxu0 0.0
        %713 = vmatpush1.msra.mxu0 0.0
        %714 = vmatprep.subr.mxu0 0.0
        %715 = vmatpush1.msra.mxu0 0.0
        %716 = vmatprep.subr.mxu0 0.0
        %717 = vmatpush1.msra.mxu0 0.0
        %718 = vmatprep.subr.mxu0 0.0
        %719 = vmatpush1.msra.mxu0 0.0
        %720 = vmatprep.subr.mxu0 0.0
        %721 = vmatpush1.msra.mxu0 0.0
        %722 = vmatprep.subr.mxu0 0.0
        %723 = vmatpush1.msra.mxu0 0.0
        %724 = vmatprep.subr.mxu0 0.0
        %725 = vmatpush1.msra.mxu0 0.0
        %726 = vmatprep.subr.mxu0 0.0
        %727 = vmatpush1.msra.mxu0 0.0
        %728 = vmatprep.subr.mxu0 0.0
        %729 = vmatpush1.msra.mxu0 0.0
        %730 = vmatprep.subr.mxu0 0.0
        %731 = vmatpush1.msra.mxu0 0.0
        %732 = vmatprep.subr.mxu0 0.0
        %733 = vmatpush1.msra.mxu0 0.0
        %734 = vmatprep.mubr.f32.mxu0 0.0
        %735 = vmatmul.mubr.f32.gmra.mrb[0].mxu0 %v668
        %v736 = vpop.f32.mrb[0].mxu0
        %v737 = vadd.f32 %v365, %v736
        %v738 = vpop.f32.mrb[0].mxu0
        %739 = vdwg.mxu0
        %v740 = vsel %vm595, %v452, 0
        %742 = vmatprep.subr.mxu0 0.0
        %743 = vmatpush1.msra.mxu0 %v547
        %744 = vmatprep.subr.mxu0 0.0
        %745 = vmatpush1.msra.mxu0 0.0
        %746 = vmatprep.subr.mxu0 0.0
        %747 = vmatpush1.msra.mxu0 0.0
        %748 = vmatprep.subr.mxu0 0.0
        %749 = vmatpush1.msra.mxu0 0.0
        %750 = vmatprep.subr.mxu0 0.0
        %751 = vmatpush1.msra.mxu0 0.0
        %752 = vmatprep.subr.mxu0 0.0
        %753 = vmatpush1.msra.mxu0 0.0
        %754 = vmatprep.subr.mxu0 0.0
        %755 = vmatpush1.msra.mxu0 0.0
        %756 = vmatprep.subr.mxu0 0.0
        %757 = vmatpush1.msra.mxu0 0.0
        %758 = vmatprep.subr.mxu0 0.0
        %759 = vmatpush1.msra.mxu0 0.0
        %760 = vmatprep.subr.mxu0 0.0
        %761 = vmatpush1.msra.mxu0 0.0
        %762 = vmatprep.subr.mxu0 0.0
        %763 = vmatpush1.msra.mxu0 0.0
        %764 = vmatprep.subr.mxu0 0.0
        %765 = vmatpush1.msra.mxu0 0.0
        %766 = vmatprep.subr.mxu0 0.0
        %767 = vmatpush1.msra.mxu0 0.0
        %768 = vmatprep.subr.mxu0 0.0
        %769 = vmatpush1.msra.mxu0 0.0
        %770 = vmatprep.subr.mxu0 0.0
        %771 = vmatpush1.msra.mxu0 0.0
        %772 = vmatprep.subr.mxu0 0.0
        %773 = vmatpush1.msra.mxu0 0.0
        %774 = vmatprep.subr.mxu0 0.0
        %775 = vmatpush1.msra.mxu0 0.0
        %776 = vmatprep.subr.mxu0 0.0
        %777 = vmatpush1.msra.mxu0 0.0
        %778 = vmatprep.subr.mxu0 0.0
        %779 = vmatpush1.msra.mxu0 0.0
        %780 = vmatprep.subr.mxu0 0.0
        %781 = vmatpush1.msra.mxu0 0.0
        %782 = vmatprep.subr.mxu0 0.0
        %783 = vmatpush1.msra.mxu0 0.0
        %784 = vmatprep.subr.mxu0 0.0
        %785 = vmatpush1.msra.mxu0 0.0
        %786 = vmatprep.subr.mxu0 0.0
        %787 = vmatpush1.msra.mxu0 0.0
        %788 = vmatprep.subr.mxu0 0.0
        %789 = vmatpush1.msra.mxu0 0.0
        %790 = vmatprep.subr.mxu0 0.0
        %791 = vmatpush1.msra.mxu0 0.0
        %792 = vmatprep.subr.mxu0 0.0
        %793 = vmatpush1.msra.mxu0 0.0
        %794 = vmatprep.subr.mxu0 0.0
        %795 = vmatpush1.msra.mxu0 0.0
        %796 = vmatprep.subr.mxu0 0.0
        %797 = vmatpush1.msra.mxu0 0.0
        %798 = vmatprep.subr.mxu0 0.0
        %799 = vmatpush1.msra.mxu0 0.0
        %800 = vmatprep.subr.mxu0 0.0
        %801 = vmatpush1.msra.mxu0 0.0
        %802 = vmatprep.subr.mxu0 0.0
        %803 = vmatpush1.msra.mxu0 0.0
        %804 = vmatprep.subr.mxu0 0.0
        %805 = vmatpush1.msra.mxu0 0.0
        %806 = vmatprep.mubr.f32.mxu0 0.0
        %807 = vmatmul.mubr.f32.gmra.mrb[0].mxu0 %v740
        %v808 = vpop.f32.mrb[0].mxu0
        %v809 = vadd.f32 %v365, %v808
        %v810 = vpop.f32.mrb[0].mxu0
        %811 = vdwg.mxu0
        %v812 = vsel %vm595, %v454, 0
        %814 = vmatprep.subr.mxu0 0.0
        %815 = vmatpush1.msra.mxu0 %v579
        %816 = vmatprep.subr.mxu0 0.0
        %817 = vmatpush1.msra.mxu0 0.0
        %818 = vmatprep.subr.mxu0 0.0
        %819 = vmatpush1.msra.mxu0 0.0
        %820 = vmatprep.subr.mxu0 0.0
        %821 = vmatpush1.msra.mxu0 0.0
        %822 = vmatprep.subr.mxu0 0.0
        %823 = vmatpush1.msra.mxu0 0.0
        %824 = vmatprep.subr.mxu0 0.0
        %825 = vmatpush1.msra.mxu0 0.0
        %826 = vmatprep.subr.mxu0 0.0
        %827 = vmatpush1.msra.mxu0 0.0
        %828 = vmatprep.subr.mxu0 0.0
        %829 = vmatpush1.msra.mxu0 0.0
        %830 = vmatprep.subr.mxu0 0.0
        %831 = vmatpush1.msra.mxu0 0.0
        %832 = vmatprep.subr.mxu0 0.0
        %833 = vmatpush1.msra.mxu0 0.0
        %834 = vmatprep.subr.mxu0 0.0
        %835 = vmatpush1.msra.mxu0 0.0
        %836 = vmatprep.subr.mxu0 0.0
        %837 = vmatpush1.msra.mxu0 0.0
        %838 = vmatprep.subr.mxu0 0.0
        %839 = vmatpush1.msra.mxu0 0.0
        %840 = vmatprep.subr.mxu0 0.0
        %841 = vmatpush1.msra.mxu0 0.0
        %842 = vmatprep.subr.mxu0 0.0
        %843 = vmatpush1.msra.mxu0 0.0
        %844 = vmatprep.subr.mxu0 0.0
        %845 = vmatpush1.msra.mxu0 0.0
        %846 = vmatprep.subr.mxu0 0.0
        %847 = vmatpush1.msra.mxu0 0.0
        %848 = vmatprep.subr.mxu0 0.0
        %849 = vmatpush1.msra.mxu0 0.0
        %850 = vmatprep.subr.mxu0 0.0
        %851 = vmatpush1.msra.mxu0 0.0
        %852 = vmatprep.subr.mxu0 0.0
        %853 = vmatpush1.msra.mxu0 0.0
        %854 = vmatprep.subr.mxu0 0.0
        %855 = vmatpush1.msra.mxu0 0.0
        %856 = vmatprep.subr.mxu0 0.0
        %857 = vmatpush1.msra.mxu0 0.0
        %858 = vmatprep.subr.mxu0 0.0
        %859 = vmatpush1.msra.mxu0 0.0
        %860 = vmatprep.subr.mxu0 0.0
        %861 = vmatpush1.msra.mxu0 0.0
        %862 = vmatprep.subr.mxu0 0.0
        %863 = vmatpush1.msra.mxu0 0.0
        %864 = vmatprep.subr.mxu0 0.0
        %865 = vmatpush1.msra.mxu0 0.0
        %866 = vmatprep.subr.mxu0 0.0
        %867 = vmatpush1.msra.mxu0 0.0
        %868 = vmatprep.subr.mxu0 0.0
        %869 = vmatpush1.msra.mxu0 0.0
        %870 = vmatprep.subr.mxu0 0.0
        %871 = vmatpush1.msra.mxu0 0.0
        %872 = vmatprep.subr.mxu0 0.0
        %873 = vmatpush1.msra.mxu0 0.0
        %874 = vmatprep.subr.mxu0 0.0
        %875 = vmatpush1.msra.mxu0 0.0
        %876 = vmatprep.subr.mxu0 0.0
        %877 = vmatpush1.msra.mxu0 0.0
        %878 = vmatprep.mubr.f32.mxu0 0.0
        %879 = vmatmul.mubr.f32.gmra.mrb[0].mxu0 %v812
        %v880 = vpop.f32.mrb[0].mxu0
        %v881 = vadd.f32 %v365, %v880
        %v882 = vpop.f32.mrb[0].mxu0
        %883 = vdwg.mxu0
        %v884 = vsel %vm595, %v665, -inf
        %885 = vmax.xlane.f32.xlu0 %v884
        %v886 = vpop.xlane.xlu0 %885
        %v887 = vsel %vm595, %v737, -inf
        %888 = vmax.xlane.f32.xlu0 %v887
        %v889 = vpop.xlane.xlu0 %888
        %v890 = vsel %vm595, %v809, -inf
        %891 = vmax.xlane.f32.xlu0 %v890
        %v892 = vpop.xlane.xlu0 %891
        %v893 = vsel %vm595, %v881, -inf
        %894 = vmax.xlane.f32.xlu0 %v893
        %v895 = vpop.xlane.xlu0 %894
        %v896 = vsub.f32 %v665, %v886
        %v897 = vsub.f32 %v737, %v889
        %v898 = vsub.f32 %v809, %v892
        %v899 = vsub.f32 %v881, %v895
        %v900 = vmul.f32 %v896, 1.442695
        %v901 = vpow.pop %v900
        %v902 = vmul.f32 %v897, 1.442695
        %v903 = vpow.pop %v902
        %v904 = vmul.f32 %v898, 1.442695
        %v905 = vpow.pop %v904
        %v906 = vmul.f32 %v899, 1.442695
        %v907 = vpow.pop %v906
        %v908 = vsel %vm595, %v901, 0.0
        %909 = vadd.xlane.f32.xlu0 %v908
        %v910 = vpop.xlane.xlu0 %909
        %v911 = vsel %vm595, %v903, 0.0
        %912 = vadd.xlane.f32.xlu0 %v911
        %v913 = vpop.xlane.xlu0 %912
        %v914 = vsel %vm595, %v905, 0.0
        %915 = vadd.xlane.f32.xlu0 %v914
        %v916 = vpop.xlane.xlu0 %915
        %v917 = vsel %vm595, %v907, 0.0
        %918 = vadd.xlane.f32.xlu0 %v917
        %v919 = vpop.xlane.xlu0 %918
        %v920 = vrcp.pop %v910
        %v921 = vrcp.pop %v913
        %v922 = vrcp.pop %v916
        %v923 = vrcp.pop %v919
        %v924 = vmul.f32 %v901, %v920
        %v925 = vmul.f32 %v903, %v921
        %v926 = vmul.f32 %v905, %v922
        %v927 = vmul.f32 %v907, %v923
        %928 = vrot.lane.b32.xlu0 %v445, 64
        %v929 = vpop.permute.xlu0 %928
        %930 = vrot.lane.b32.xlu0 %v450, 64
        %v931 = vpop.permute.xlu0 %930
        %932 = vrot.lane.b32.xlu0 %v452, 64
        %v933 = vpop.permute.xlu0 %932
        %934 = vrot.lane.b32.xlu0 %v454, 64
        %v935 = vpop.permute.xlu0 %934
        %940 = vxpose.xlu0.b32.start [1/16] %v929, 128
        %941 = vxpose.xlu0.b32.cont [2/16] 0.0, 128
        %942 = vxpose.xlu0.b32.cont [3/16] 0.0, 128
        %943 = vxpose.xlu0.b32.cont [4/16] 0.0, 128
        %944 = vxpose.xlu0.b32.cont [5/16] 0.0, 128
        %945 = vxpose.xlu0.b32.cont [6/16] 0.0, 128
        %946 = vxpose.xlu0.b32.cont [7/16] 0.0, 128
        %947 = vxpose.xlu0.b32.cont [8/16] 0.0, 128
        %948 = vxpose.xlu0.b32.cont [9/16] 0.0, 128
        %949 = vxpose.xlu0.b32.cont [10/16] 0.0, 128
        %950 = vxpose.xlu0.b32.cont [11/16] 0.0, 128
        %951 = vxpose.xlu0.b32.cont [12/16] 0.0, 128
        %952 = vxpose.xlu0.b32.cont [13/16] 0.0, 128
        %953 = vxpose.xlu0.b32.cont [14/16] 0.0, 128
        %954 = vxpose.xlu0.b32.cont [15/16] 0.0, 128
        %955 = vxpose.xlu0.b32.end [16/16] 0.0, 128
        %v956 = vpop.trf.xlu0
        %v957 = vpop.trf.xlu0
        %v958 = vpop.trf.xlu0
        %v959 = vpop.trf.xlu0
        %v960 = vpop.trf.xlu0
        %v961 = vpop.trf.xlu0
        %v962 = vpop.trf.xlu0
        %v963 = vpop.trf.xlu0
        %v964 = vpop.trf.xlu0
        %v965 = vpop.trf.xlu0
        %v966 = vpop.trf.xlu0
        %v967 = vpop.trf.xlu0
        %v968 = vpop.trf.xlu0
        %v969 = vpop.trf.xlu0
        %v970 = vpop.trf.xlu0
        %v971 = vpop.trf.xlu0
        %972 = vxpose.xlu0.b32.start [1/16] %v931, 128
        %973 = vxpose.xlu0.b32.cont [2/16] 0.0, 128
        %974 = vxpose.xlu0.b32.cont [3/16] 0.0, 128
        %975 = vxpose.xlu0.b32.cont [4/16] 0.0, 128
        %976 = vxpose.xlu0.b32.cont [5/16] 0.0, 128
        %977 = vxpose.xlu0.b32.cont [6/16] 0.0, 128
        %978 = vxpose.xlu0.b32.cont [7/16] 0.0, 128
        %979 = vxpose.xlu0.b32.cont [8/16] 0.0, 128
        %980 = vxpose.xlu0.b32.cont [9/16] 0.0, 128
        %981 = vxpose.xlu0.b32.cont [10/16] 0.0, 128
        %982 = vxpose.xlu0.b32.cont [11/16] 0.0, 128
        %983 = vxpose.xlu0.b32.cont [12/16] 0.0, 128
        %984 = vxpose.xlu0.b32.cont [13/16] 0.0, 128
        %985 = vxpose.xlu0.b32.cont [14/16] 0.0, 128
        %986 = vxpose.xlu0.b32.cont [15/16] 0.0, 128
        %987 = vxpose.xlu0.b32.end [16/16] 0.0, 128
        %v988 = vpop.trf.xlu0
        %v989 = vpop.trf.xlu0
        %v990 = vpop.trf.xlu0
        %v991 = vpop.trf.xlu0
        %v992 = vpop.trf.xlu0
        %v993 = vpop.trf.xlu0
        %v994 = vpop.trf.xlu0
        %v995 = vpop.trf.xlu0
        %v996 = vpop.trf.xlu0
        %v997 = vpop.trf.xlu0
        %v998 = vpop.trf.xlu0
        %v999 = vpop.trf.xlu0
        %v1000 = vpop.trf.xlu0
        %v1001 = vpop.trf.xlu0
        %v1002 = vpop.trf.xlu0
        %v1003 = vpop.trf.xlu0
        %1004 = vxpose.xlu0.b32.start [1/16] %v933, 128
        %1005 = vxpose.xlu0.b32.cont [2/16] 0.0, 128
        %1006 = vxpose.xlu0.b32.cont [3/16] 0.0, 128
        %1007 = vxpose.xlu0.b32.cont [4/16] 0.0, 128
        %1008 = vxpose.xlu0.b32.cont [5/16] 0.0, 128
        %1009 = vxpose.xlu0.b32.cont [6/16] 0.0, 128
        %1010 = vxpose.xlu0.b32.cont [7/16] 0.0, 128
        %1011 = vxpose.xlu0.b32.cont [8/16] 0.0, 128
        %1012 = vxpose.xlu0.b32.cont [9/16] 0.0, 128
        %1013 = vxpose.xlu0.b32.cont [10/16] 0.0, 128
        %1014 = vxpose.xlu0.b32.cont [11/16] 0.0, 128
        %1015 = vxpose.xlu0.b32.cont [12/16] 0.0, 128
        %1016 = vxpose.xlu0.b32.cont [13/16] 0.0, 128
        %1017 = vxpose.xlu0.b32.cont [14/16] 0.0, 128
        %1018 = vxpose.xlu0.b32.cont [15/16] 0.0, 128
        %1019 = vxpose.xlu0.b32.end [16/16] 0.0, 128
        %v1020 = vpop.trf.xlu0
        %v1021 = vpop.trf.xlu0
        %v1022 = vpop.trf.xlu0
        %v1023 = vpop.trf.xlu0
        %v1024 = vpop.trf.xlu0
        %v1025 = vpop.trf.xlu0
        %v1026 = vpop.trf.xlu0
        %v1027 = vpop.trf.xlu0
        %v1028 = vpop.trf.xlu0
        %v1029 = vpop.trf.xlu0
        %v1030 = vpop.trf.xlu0
        %v1031 = vpop.trf.xlu0
        %v1032 = vpop.trf.xlu0
        %v1033 = vpop.trf.xlu0
        %v1034 = vpop.trf.xlu0
        %v1035 = vpop.trf.xlu0
        %1036 = vxpose.xlu0.b32.start [1/16] %v935, 128
        %1037 = vxpose.xlu0.b32.cont [2/16] 0.0, 128
        %1038 = vxpose.xlu0.b32.cont [3/16] 0.0, 128
        %1039 = vxpose.xlu0.b32.cont [4/16] 0.0, 128
        %1040 = vxpose.xlu0.b32.cont [5/16] 0.0, 128
        %1041 = vxpose.xlu0.b32.cont [6/16] 0.0, 128
        %1042 = vxpose.xlu0.b32.cont [7/16] 0.0, 128
        %1043 = vxpose.xlu0.b32.cont [8/16] 0.0, 128
        %1044 = vxpose.xlu0.b32.cont [9/16] 0.0, 128
        %1045 = vxpose.xlu0.b32.cont [10/16] 0.0, 128
        %1046 = vxpose.xlu0.b32.cont [11/16] 0.0, 128
        %1047 = vxpose.xlu0.b32.cont [12/16] 0.0, 128
        %1048 = vxpose.xlu0.b32.cont [13/16] 0.0, 128
        %1049 = vxpose.xlu0.b32.cont [14/16] 0.0, 128
        %1050 = vxpose.xlu0.b32.cont [15/16] 0.0, 128
        %1051 = vxpose.xlu0.b32.end [16/16] 0.0, 128
        %v1052 = vpop.trf.xlu0
        %v1053 = vpop.trf.xlu0
        %v1054 = vpop.trf.xlu0
        %v1055 = vpop.trf.xlu0
        %v1056 = vpop.trf.xlu0
        %v1057 = vpop.trf.xlu0
        %v1058 = vpop.trf.xlu0
        %v1059 = vpop.trf.xlu0
        %v1060 = vpop.trf.xlu0
        %v1061 = vpop.trf.xlu0
        %v1062 = vpop.trf.xlu0
        %v1063 = vpop.trf.xlu0
        %v1064 = vpop.trf.xlu0
        %v1065 = vpop.trf.xlu0
        %v1066 = vpop.trf.xlu0
        %v1067 = vpop.trf.xlu0
        %v1069 = vsel %vm595, %v956, 0
        %v1072 = vsel %vm595, %v924, 0
        %1074 = vmatprep.subr.mxu0 0.0
        %1075 = vmatpush1.xpose.msra.mxu0 %v1072
        %1076 = vmatprep.subr.mxu0 0.0
        %1077 = vmatpush1.xpose.msra.mxu0 0.0
        %1078 = vmatprep.subr.mxu0 0.0
        %1079 = vmatpush1.xpose.msra.mxu0 0.0
        %1080 = vmatprep.subr.mxu0 0.0
        %1081 = vmatpush1.xpose.msra.mxu0 0.0
        %1082 = vmatprep.subr.mxu0 0.0
        %1083 = vmatpush1.xpose.msra.mxu0 0.0
        %1084 = vmatprep.subr.mxu0 0.0
        %1085 = vmatpush1.xpose.msra.mxu0 0.0
        %1086 = vmatprep.subr.mxu0 0.0
        %1087 = vmatpush1.xpose.msra.mxu0 0.0
        %1088 = vmatprep.subr.mxu0 0.0
        %1089 = vmatpush1.xpose.msra.mxu0 0.0
        %1090 = vmatprep.subr.mxu0 0.0
        %1091 = vmatpush1.xpose.msra.mxu0 0.0
        %1092 = vmatprep.subr.mxu0 0.0
        %1093 = vmatpush1.xpose.msra.mxu0 0.0
        %1094 = vmatprep.subr.mxu0 0.0
        %1095 = vmatpush1.xpose.msra.mxu0 0.0
        %1096 = vmatprep.subr.mxu0 0.0
        %1097 = vmatpush1.xpose.msra.mxu0 0.0
        %1098 = vmatprep.subr.mxu0 0.0
        %1099 = vmatpush1.xpose.msra.mxu0 0.0
        %1100 = vmatprep.subr.mxu0 0.0
        %1101 = vmatpush1.xpose.msra.mxu0 0.0
        %1102 = vmatprep.subr.mxu0 0.0
        %1103 = vmatpush1.xpose.msra.mxu0 0.0
        %1104 = vmatprep.subr.mxu0 0.0
        %1105 = vmatpush1.xpose.msra.mxu0 0.0
        %1106 = vmatprep.subr.mxu0 0.0
        %1107 = vmatpush1.xpose.msra.mxu0 0.0
        %1108 = vmatprep.subr.mxu0 0.0
        %1109 = vmatpush1.xpose.msra.mxu0 0.0
        %1110 = vmatprep.subr.mxu0 0.0
        %1111 = vmatpush1.xpose.msra.mxu0 0.0
        %1112 = vmatprep.subr.mxu0 0.0
        %1113 = vmatpush1.xpose.msra.mxu0 0.0
        %1114 = vmatprep.subr.mxu0 0.0
        %1115 = vmatpush1.xpose.msra.mxu0 0.0
        %1116 = vmatprep.subr.mxu0 0.0
        %1117 = vmatpush1.xpose.msra.mxu0 0.0
        %1118 = vmatprep.subr.mxu0 0.0
        %1119 = vmatpush1.xpose.msra.mxu0 0.0
        %1120 = vmatprep.subr.mxu0 0.0
        %1121 = vmatpush1.xpose.msra.mxu0 0.0
        %1122 = vmatprep.subr.mxu0 0.0
        %1123 = vmatpush1.xpose.msra.mxu0 0.0
        %1124 = vmatprep.subr.mxu0 0.0
        %1125 = vmatpush1.xpose.msra.mxu0 0.0
        %1126 = vmatprep.subr.mxu0 0.0
        %1127 = vmatpush1.xpose.msra.mxu0 0.0
        %1128 = vmatprep.subr.mxu0 0.0
        %1129 = vmatpush1.xpose.msra.mxu0 0.0
        %1130 = vmatprep.subr.mxu0 0.0
        %1131 = vmatpush1.xpose.msra.mxu0 0.0
        %1132 = vmatprep.subr.mxu0 0.0
        %1133 = vmatpush1.xpose.msra.mxu0 0.0
        %1134 = vmatprep.subr.mxu0 0.0
        %1135 = vmatpush1.xpose.msra.mxu0 0.0
        %1136 = vmatprep.subr.mxu0 0.0
        %1137 = vmatpush1.xpose.msra.mxu0 0.0
        %1138 = vmatprep.mubr.f32.mxu0 0.0
        %1139 = vmatmul.mubr.f32.gmra.mrb[0].mxu0 %v1069
        %v1140 = vpop.f32.mrb[0].mxu0
        %v1141 = vadd.f32 0.0, %v1140
        %v1142 = vpop.f32.mrb[0].mxu0
        %1143 = vdwg.mxu0
        %v1145 = vsel %vm595, %v988, 0
        %v1148 = vsel %vm595, %v925, 0
        %1150 = vmatprep.subr.mxu0 0.0
        %1151 = vmatpush1.xpose.msra.mxu0 %v1148
        %1152 = vmatprep.subr.mxu0 0.0
        %1153 = vmatpush1.xpose.msra.mxu0 0.0
        %1154 = vmatprep.subr.mxu0 0.0
        %1155 = vmatpush1.xpose.msra.mxu0 0.0
        %1156 = vmatprep.subr.mxu0 0.0
        %1157 = vmatpush1.xpose.msra.mxu0 0.0
        %1158 = vmatprep.subr.mxu0 0.0
        %1159 = vmatpush1.xpose.msra.mxu0 0.0
        %1160 = vmatprep.subr.mxu0 0.0
        %1161 = vmatpush1.xpose.msra.mxu0 0.0
        %1162 = vmatprep.subr.mxu0 0.0
        %1163 = vmatpush1.xpose.msra.mxu0 0.0
        %1164 = vmatprep.subr.mxu0 0.0
        %1165 = vmatpush1.xpose.msra.mxu0 0.0
        %1166 = vmatprep.subr.mxu0 0.0
        %1167 = vmatpush1.xpose.msra.mxu0 0.0
        %1168 = vmatprep.subr.mxu0 0.0
        %1169 = vmatpush1.xpose.msra.mxu0 0.0
        %1170 = vmatprep.subr.mxu0 0.0
        %1171 = vmatpush1.xpose.msra.mxu0 0.0
        %1172 = vmatprep.subr.mxu0 0.0
        %1173 = vmatpush1.xpose.msra.mxu0 0.0
        %1174 = vmatprep.subr.mxu0 0.0
        %1175 = vmatpush1.xpose.msra.mxu0 0.0
        %1176 = vmatprep.subr.mxu0 0.0
        %1177 = vmatpush1.xpose.msra.mxu0 0.0
        %1178 = vmatprep.subr.mxu0 0.0
        %1179 = vmatpush1.xpose.msra.mxu0 0.0
        %1180 = vmatprep.subr.mxu0 0.0
        %1181 = vmatpush1.xpose.msra.mxu0 0.0
        %1182 = vmatprep.subr.mxu0 0.0
        %1183 = vmatpush1.xpose.msra.mxu0 0.0
        %1184 = vmatprep.subr.mxu0 0.0
        %1185 = vmatpush1.xpose.msra.mxu0 0.0
        %1186 = vmatprep.subr.mxu0 0.0
        %1187 = vmatpush1.xpose.msra.mxu0 0.0
        %1188 = vmatprep.subr.mxu0 0.0
        %1189 = vmatpush1.xpose.msra.mxu0 0.0
        %1190 = vmatprep.subr.mxu0 0.0
        %1191 = vmatpush1.xpose.msra.mxu0 0.0
        %1192 = vmatprep.subr.mxu0 0.0
        %1193 = vmatpush1.xpose.msra.mxu0 0.0
        %1194 = vmatprep.subr.mxu0 0.0
        %1195 = vmatpush1.xpose.msra.mxu0 0.0
        %1196 = vmatprep.subr.mxu0 0.0
        %1197 = vmatpush1.xpose.msra.mxu0 0.0
        %1198 = vmatprep.subr.mxu0 0.0
        %1199 = vmatpush1.xpose.msra.mxu0 0.0
        %1200 = vmatprep.subr.mxu0 0.0
        %1201 = vmatpush1.xpose.msra.mxu0 0.0
        %1202 = vmatprep.subr.mxu0 0.0
        %1203 = vmatpush1.xpose.msra.mxu0 0.0
        %1204 = vmatprep.subr.mxu0 0.0
        %1205 = vmatpush1.xpose.msra.mxu0 0.0
        %1206 = vmatprep.subr.mxu0 0.0
        %1207 = vmatpush1.xpose.msra.mxu0 0.0
        %1208 = vmatprep.subr.mxu0 0.0
        %1209 = vmatpush1.xpose.msra.mxu0 0.0
        %1210 = vmatprep.subr.mxu0 0.0
        %1211 = vmatpush1.xpose.msra.mxu0 0.0
        %1212 = vmatprep.subr.mxu0 0.0
        %1213 = vmatpush1.xpose.msra.mxu0 0.0
        %1214 = vmatprep.mubr.f32.mxu0 0.0
        %1215 = vmatmul.mubr.f32.gmra.mrb[0].mxu0 %v1145
        %v1216 = vpop.f32.mrb[0].mxu0
        %v1217 = vadd.f32 0.0, %v1216
        %v1218 = vpop.f32.mrb[0].mxu0
        %1219 = vdwg.mxu0
        %v1221 = vsel %vm595, %v1020, 0
        %v1224 = vsel %vm595, %v926, 0
        %1226 = vmatprep.subr.mxu0 0.0
        %1227 = vmatpush1.xpose.msra.mxu0 %v1224
        %1228 = vmatprep.subr.mxu0 0.0
        %1229 = vmatpush1.xpose.msra.mxu0 0.0
        %1230 = vmatprep.subr.mxu0 0.0
        %1231 = vmatpush1.xpose.msra.mxu0 0.0
        %1232 = vmatprep.subr.mxu0 0.0
        %1233 = vmatpush1.xpose.msra.mxu0 0.0
        %1234 = vmatprep.subr.mxu0 0.0
        %1235 = vmatpush1.xpose.msra.mxu0 0.0
        %1236 = vmatprep.subr.mxu0 0.0
        %1237 = vmatpush1.xpose.msra.mxu0 0.0
        %1238 = vmatprep.subr.mxu0 0.0
        %1239 = vmatpush1.xpose.msra.mxu0 0.0
        %1240 = vmatprep.subr.mxu0 0.0
        %1241 = vmatpush1.xpose.msra.mxu0 0.0
        %1242 = vmatprep.subr.mxu0 0.0
        %1243 = vmatpush1.xpose.msra.mxu0 0.0
        %1244 = vmatprep.subr.mxu0 0.0
        %1245 = vmatpush1.xpose.msra.mxu0 0.0
        %1246 = vmatprep.subr.mxu0 0.0
        %1247 = vmatpush1.xpose.msra.mxu0 0.0
        %1248 = vmatprep.subr.mxu0 0.0
        %1249 = vmatpush1.xpose.msra.mxu0 0.0
        %1250 = vmatprep.subr.mxu0 0.0
        %1251 = vmatpush1.xpose.msra.mxu0 0.0
        %1252 = vmatprep.subr.mxu0 0.0
        %1253 = vmatpush1.xpose.msra.mxu0 0.0
        %1254 = vmatprep.subr.mxu0 0.0
        %1255 = vmatpush1.xpose.msra.mxu0 0.0
        %1256 = vmatprep.subr.mxu0 0.0
        %1257 = vmatpush1.xpose.msra.mxu0 0.0
        %1258 = vmatprep.subr.mxu0 0.0
        %1259 = vmatpush1.xpose.msra.mxu0 0.0
        %1260 = vmatprep.subr.mxu0 0.0
        %1261 = vmatpush1.xpose.msra.mxu0 0.0
        %1262 = vmatprep.subr.mxu0 0.0
        %1263 = vmatpush1.xpose.msra.mxu0 0.0
        %1264 = vmatprep.subr.mxu0 0.0
        %1265 = vmatpush1.xpose.msra.mxu0 0.0
        %1266 = vmatprep.subr.mxu0 0.0
        %1267 = vmatpush1.xpose.msra.mxu0 0.0
        %1268 = vmatprep.subr.mxu0 0.0
        %1269 = vmatpush1.xpose.msra.mxu0 0.0
        %1270 = vmatprep.subr.mxu0 0.0
        %1271 = vmatpush1.xpose.msra.mxu0 0.0
        %1272 = vmatprep.subr.mxu0 0.0
        %1273 = vmatpush1.xpose.msra.mxu0 0.0
        %1274 = vmatprep.subr.mxu0 0.0
        %1275 = vmatpush1.xpose.msra.mxu0 0.0
        %1276 = vmatprep.subr.mxu0 0.0
        %1277 = vmatpush1.xpose.msra.mxu0 0.0
        %1278 = vmatprep.subr.mxu0 0.0
        %1279 = vmatpush1.xpose.msra.mxu0 0.0
        %1280 = vmatprep.subr.mxu0 0.0
        %1281 = vmatpush1.xpose.msra.mxu0 0.0
        %1282 = vmatprep.subr.mxu0 0.0
        %1283 = vmatpush1.xpose.msra.mxu0 0.0
        %1284 = vmatprep.subr.mxu0 0.0
        %1285 = vmatpush1.xpose.msra.mxu0 0.0
        %1286 = vmatprep.subr.mxu0 0.0
        %1287 = vmatpush1.xpose.msra.mxu0 0.0
        %1288 = vmatprep.subr.mxu0 0.0
        %1289 = vmatpush1.xpose.msra.mxu0 0.0
        %1290 = vmatprep.mubr.f32.mxu0 0.0
        %1291 = vmatmul.mubr.f32.gmra.mrb[0].mxu0 %v1221
        %v1292 = vpop.f32.mrb[0].mxu0
        %v1293 = vadd.f32 0.0, %v1292
        %v1294 = vpop.f32.mrb[0].mxu0
        %1295 = vdwg.mxu0
        %v1297 = vsel %vm595, %v1052, 0
        %v1300 = vsel %vm595, %v927, 0
        %1302 = vmatprep.subr.mxu0 0.0
        %1303 = vmatpush1.xpose.msra.mxu0 %v1300
        %1304 = vmatprep.subr.mxu0 0.0
        %1305 = vmatpush1.xpose.msra.mxu0 0.0
        %1306 = vmatprep.subr.mxu0 0.0
        %1307 = vmatpush1.xpose.msra.mxu0 0.0
        %1308 = vmatprep.subr.mxu0 0.0
        %1309 = vmatpush1.xpose.msra.mxu0 0.0
        %1310 = vmatprep.subr.mxu0 0.0
        %1311 = vmatpush1.xpose.msra.mxu0 0.0
        %1312 = vmatprep.subr.mxu0 0.0
        %1313 = vmatpush1.xpose.msra.mxu0 0.0
        %1314 = vmatprep.subr.mxu0 0.0
        %1315 = vmatpush1.xpose.msra.mxu0 0.0
        %1316 = vmatprep.subr.mxu0 0.0
        %1317 = vmatpush1.xpose.msra.mxu0 0.0
        %1318 = vmatprep.subr.mxu0 0.0
        %1319 = vmatpush1.xpose.msra.mxu0 0.0
        %1320 = vmatprep.subr.mxu0 0.0
        %1321 = vmatpush1.xpose.msra.mxu0 0.0
        %1322 = vmatprep.subr.mxu0 0.0
        %1323 = vmatpush1.xpose.msra.mxu0 0.0
        %1324 = vmatprep.subr.mxu0 0.0
        %1325 = vmatpush1.xpose.msra.mxu0 0.0
        %1326 = vmatprep.subr.mxu0 0.0
        %1327 = vmatpush1.xpose.msra.mxu0 0.0
        %1328 = vmatprep.subr.mxu0 0.0
        %1329 = vmatpush1.xpose.msra.mxu0 0.0
        %1330 = vmatprep.subr.mxu0 0.0
        %1331 = vmatpush1.xpose.msra.mxu0 0.0
        %1332 = vmatprep.subr.mxu0 0.0
        %1333 = vmatpush1.xpose.msra.mxu0 0.0
        %1334 = vmatprep.subr.mxu0 0.0
        %1335 = vmatpush1.xpose.msra.mxu0 0.0
        %1336 = vmatprep.subr.mxu0 0.0
        %1337 = vmatpush1.xpose.msra.mxu0 0.0
        %1338 = vmatprep.subr.mxu0 0.0
        %1339 = vmatpush1.xpose.msra.mxu0 0.0
        %1340 = vmatprep.subr.mxu0 0.0
        %1341 = vmatpush1.xpose.msra.mxu0 0.0
        %1342 = vmatprep.subr.mxu0 0.0
        %1343 = vmatpush1.xpose.msra.mxu0 0.0
        %1344 = vmatprep.subr.mxu0 0.0
        %1345 = vmatpush1.xpose.msra.mxu0 0.0
        %1346 = vmatprep.subr.mxu0 0.0
        %1347 = vmatpush1.xpose.msra.mxu0 0.0
        %1348 = vmatprep.subr.mxu0 0.0
        %1349 = vmatpush1.xpose.msra.mxu0 0.0
        %1350 = vmatprep.subr.mxu0 0.0
        %1351 = vmatpush1.xpose.msra.mxu0 0.0
        %1352 = vmatprep.subr.mxu0 0.0
        %1353 = vmatpush1.xpose.msra.mxu0 0.0
        %1354 = vmatprep.subr.mxu0 0.0
        %1355 = vmatpush1.xpose.msra.mxu0 0.0
        %1356 = vmatprep.subr.mxu0 0.0
        %1357 = vmatpush1.xpose.msra.mxu0 0.0
        %1358 = vmatprep.subr.mxu0 0.0
        %1359 = vmatpush1.xpose.msra.mxu0 0.0
        %1360 = vmatprep.subr.mxu0 0.0
        %1361 = vmatpush1.xpose.msra.mxu0 0.0
        %1362 = vmatprep.subr.mxu0 0.0
        %1363 = vmatpush1.xpose.msra.mxu0 0.0
        %1364 = vmatprep.subr.mxu0 0.0
        %1365 = vmatpush1.xpose.msra.mxu0 0.0
        %1366 = vmatprep.mubr.f32.mxu0 0.0
        %1367 = vmatmul.mubr.f32.gmra.mrb[0].mxu0 %v1297
        %v1368 = vpop.f32.mrb[0].mxu0
        %v1369 = vadd.f32 0.0, %v1368
        %v1370 = vpop.f32.mrb[0].mxu0
        %1371 = vdwg.mxu0
        %1372 = vxpose.xlu0.b32.start [1/16] %v1141, 128
        %1373 = vxpose.xlu0.b32.cont [2/16] 0.0, 128
        %1374 = vxpose.xlu0.b32.cont [3/16] 0.0, 128
        %1375 = vxpose.xlu0.b32.cont [4/16] 0.0, 128
        %1376 = vxpose.xlu0.b32.cont [5/16] 0.0, 128
        %1377 = vxpose.xlu0.b32.cont [6/16] 0.0, 128
        %1378 = vxpose.xlu0.b32.cont [7/16] 0.0, 128
        %1379 = vxpose.xlu0.b32.cont [8/16] 0.0, 128
        %1380 = vxpose.xlu0.b32.cont [9/16] 0.0, 128
        %1381 = vxpose.xlu0.b32.cont [10/16] 0.0, 128
        %1382 = vxpose.xlu0.b32.cont [11/16] 0.0, 128
        %1383 = vxpose.xlu0.b32.cont [12/16] 0.0, 128
        %1384 = vxpose.xlu0.b32.cont [13/16] 0.0, 128
        %1385 = vxpose.xlu0.b32.cont [14/16] 0.0, 128
        %1386 = vxpose.xlu0.b32.cont [15/16] 0.0, 128
        %1387 = vxpose.xlu0.b32.end [16/16] 0.0, 128
        %v1388 = vpop.trf.xlu0
        %v1389 = vpop.trf.xlu0
        %v1390 = vpop.trf.xlu0
        %v1391 = vpop.trf.xlu0
        %v1392 = vpop.trf.xlu0
        %v1393 = vpop.trf.xlu0
        %v1394 = vpop.trf.xlu0
        %v1395 = vpop.trf.xlu0
        %v1396 = vpop.trf.xlu0
        %v1397 = vpop.trf.xlu0
        %v1398 = vpop.trf.xlu0
        %v1399 = vpop.trf.xlu0
        %v1400 = vpop.trf.xlu0
        %v1401 = vpop.trf.xlu0
        %v1402 = vpop.trf.xlu0
        %v1403 = vpop.trf.xlu0
        %1404 = vxpose.xlu0.b32.start [1/16] %v1217, 128
        %1405 = vxpose.xlu0.b32.cont [2/16] 0.0, 128
        %1406 = vxpose.xlu0.b32.cont [3/16] 0.0, 128
        %1407 = vxpose.xlu0.b32.cont [4/16] 0.0, 128
        %1408 = vxpose.xlu0.b32.cont [5/16] 0.0, 128
        %1409 = vxpose.xlu0.b32.cont [6/16] 0.0, 128
        %1410 = vxpose.xlu0.b32.cont [7/16] 0.0, 128
        %1411 = vxpose.xlu0.b32.cont [8/16] 0.0, 128
        %1412 = vxpose.xlu0.b32.cont [9/16] 0.0, 128
        %1413 = vxpose.xlu0.b32.cont [10/16] 0.0, 128
        %1414 = vxpose.xlu0.b32.cont [11/16] 0.0, 128
        %1415 = vxpose.xlu0.b32.cont [12/16] 0.0, 128
        %1416 = vxpose.xlu0.b32.cont [13/16] 0.0, 128
        %1417 = vxpose.xlu0.b32.cont [14/16] 0.0, 128
        %1418 = vxpose.xlu0.b32.cont [15/16] 0.0, 128
        %1419 = vxpose.xlu0.b32.end [16/16] 0.0, 128
        %v1420 = vpop.trf.xlu0
        %v1421 = vpop.trf.xlu0
        %v1422 = vpop.trf.xlu0
        %v1423 = vpop.trf.xlu0
        %v1424 = vpop.trf.xlu0
        %v1425 = vpop.trf.xlu0
        %v1426 = vpop.trf.xlu0
        %v1427 = vpop.trf.xlu0
        %v1428 = vpop.trf.xlu0
        %v1429 = vpop.trf.xlu0
        %v1430 = vpop.trf.xlu0
        %v1431 = vpop.trf.xlu0
        %v1432 = vpop.trf.xlu0
        %v1433 = vpop.trf.xlu0
        %v1434 = vpop.trf.xlu0
        %v1435 = vpop.trf.xlu0
        %1436 = vxpose.xlu0.b32.start [1/16] %v1293, 128
        %1437 = vxpose.xlu0.b32.cont [2/16] 0.0, 128
        %1438 = vxpose.xlu0.b32.cont [3/16] 0.0, 128
        %1439 = vxpose.xlu0.b32.cont [4/16] 0.0, 128
        %1440 = vxpose.xlu0.b32.cont [5/16] 0.0, 128
        %1441 = vxpose.xlu0.b32.cont [6/16] 0.0, 128
        %1442 = vxpose.xlu0.b32.cont [7/16] 0.0, 128
        %1443 = vxpose.xlu0.b32.cont [8/16] 0.0, 128
        %1444 = vxpose.xlu0.b32.cont [9/16] 0.0, 128
        %1445 = vxpose.xlu0.b32.cont [10/16] 0.0, 128
        %1446 = vxpose.xlu0.b32.cont [11/16] 0.0, 128
        %1447 = vxpose.xlu0.b32.cont [12/16] 0.0, 128
        %1448 = vxpose.xlu0.b32.cont [13/16] 0.0, 128
        %1449 = vxpose.xlu0.b32.cont [14/16] 0.0, 128
        %1450 = vxpose.xlu0.b32.cont [15/16] 0.0, 128
        %1451 = vxpose.xlu0.b32.end [16/16] 0.0, 128
        %v1452 = vpop.trf.xlu0
        %v1453 = vpop.trf.xlu0
        %v1454 = vpop.trf.xlu0
        %v1455 = vpop.trf.xlu0
        %v1456 = vpop.trf.xlu0
        %v1457 = vpop.trf.xlu0
        %v1458 = vpop.trf.xlu0
        %v1459 = vpop.trf.xlu0
        %v1460 = vpop.trf.xlu0
        %v1461 = vpop.trf.xlu0
        %v1462 = vpop.trf.xlu0
        %v1463 = vpop.trf.xlu0
        %v1464 = vpop.trf.xlu0
        %v1465 = vpop.trf.xlu0
        %v1466 = vpop.trf.xlu0
        %v1467 = vpop.trf.xlu0
        %1468 = vxpose.xlu0.b32.start [1/16] %v1369, 128
        %1469 = vxpose.xlu0.b32.cont [2/16] 0.0, 128
        %1470 = vxpose.xlu0.b32.cont [3/16] 0.0, 128
        %1471 = vxpose.xlu0.b32.cont [4/16] 0.0, 128
        %1472 = vxpose.xlu0.b32.cont [5/16] 0.0, 128
        %1473 = vxpose.xlu0.b32.cont [6/16] 0.0, 128
        %1474 = vxpose.xlu0.b32.cont [7/16] 0.0, 128
        %1475 = vxpose.xlu0.b32.cont [8/16] 0.0, 128
        %1476 = vxpose.xlu0.b32.cont [9/16] 0.0, 128
        %1477 = vxpose.xlu0.b32.cont [10/16] 0.0, 128
        %1478 = vxpose.xlu0.b32.cont [11/16] 0.0, 128
        %1479 = vxpose.xlu0.b32.cont [12/16] 0.0, 128
        %1480 = vxpose.xlu0.b32.cont [13/16] 0.0, 128
        %1481 = vxpose.xlu0.b32.cont [14/16] 0.0, 128
        %1482 = vxpose.xlu0.b32.cont [15/16] 0.0, 128
        %1483 = vxpose.xlu0.b32.end [16/16] 0.0, 128
        %v1484 = vpop.trf.xlu0
        %v1485 = vpop.trf.xlu0
        %v1486 = vpop.trf.xlu0
        %v1487 = vpop.trf.xlu0
        %v1488 = vpop.trf.xlu0
        %v1489 = vpop.trf.xlu0
        %v1490 = vpop.trf.xlu0
        %v1491 = vpop.trf.xlu0
        %v1492 = vpop.trf.xlu0
        %v1493 = vpop.trf.xlu0
        %v1494 = vpop.trf.xlu0
        %v1495 = vpop.trf.xlu0
        %v1496 = vpop.trf.xlu0
        %v1497 = vpop.trf.xlu0
        %v1498 = vpop.trf.xlu0
        %v1499 = vpop.trf.xlu0
        %v1500 = vcombine.low %v1388, %v1452
        %v1501 = vcombine.high %v1388, %v1452
        %v1503 = vunpack.c.l.s4 1983009808
        %v1504 = vunpack.c.0.s8 %v1503
        %v1505 = vlaneseq
        %v1506 = vshrl.u32 %v1505, 7
        %v1507 = vsub.s32 %v1504, %v1506
        %v1508 = vrot.slane %v1500, %v1507
        %v1510 = vunpack.c.l.s4 1983009808
        %v1511 = vunpack.c.0.s8 %v1510
        %v1512 = vlaneseq
        %v1513 = vshrl.u32 %v1512, 7
        %v1514 = vsub.s32 %v1511, %v1513
        %v1515 = vrot.slane %v1501, %v1514
        %v1516 = vcombine.low %v1420, %v1484
        %v1517 = vcombine.high %v1420, %v1484
        %v1519 = vunpack.c.l.s4 1983009808
        %v1520 = vunpack.c.0.s8 %v1519
        %v1521 = vlaneseq
        %v1522 = vshrl.u32 %v1521, 7
        %v1523 = vsub.s32 %v1520, %v1522
        %v1524 = vrot.slane %v1516, %v1523
        %v1526 = vunpack.c.l.s4 1983009808
        %v1527 = vunpack.c.0.s8 %v1526
        %v1528 = vlaneseq
        %v1529 = vshrl.u32 %v1528, 7
        %v1530 = vsub.s32 %v1527, %v1529
        %v1531 = vrot.slane %v1517, %v1530
        %v1532 = vcombine.low %v1508, %v1524
        %v1533 = vcombine.high %v1508, %v1524
        %v1535 = vunpack.c.l.s4 1934713408
        %v1536 = vunpack.c.0.s8 %v1535
        %v1537 = vlaneseq
        %v1538 = vshrl.u32 %v1537, 7
        %v1539 = vsub.s32 %v1536, %v1538
        %v1540 = vrot.slane %v1532, %v1539
        %v1542 = vunpack.c.l.s4 1934713408
        %v1543 = vunpack.c.0.s8 %v1542
        %v1544 = vlaneseq
        %v1545 = vshrl.u32 %v1544, 7
        %v1546 = vsub.s32 %v1543, %v1545
        %v1547 = vrot.slane %v1533, %v1546
        %v1548 = vcombine.low %v1515, %v1531
        %v1549 = vcombine.high %v1515, %v1531
        %v1551 = vunpack.c.l.s4 1934713408
        %v1552 = vunpack.c.0.s8 %v1551
        %v1553 = vlaneseq
        %v1554 = vshrl.u32 %v1553, 7
        %v1555 = vsub.s32 %v1552, %v1554
        %v1556 = vrot.slane %v1548, %v1555
        %v1558 = vunpack.c.l.s4 1934713408
        %v1559 = vunpack.c.0.s8 %v1558
        %v1560 = vlaneseq
        %v1561 = vshrl.u32 %v1560, 7
        %v1562 = vsub.s32 %v1559, %v1561
        %v1563 = vrot.slane %v1549, %v1562
        %v1564 = vcombine.high %v1540, 0.0
        %v1565 = vcombine.high %v1547, 0.0
        %v1566 = vcombine.high %v1556, 0.0
        %v1567 = vcombine.high %v1563, 0.0
        %v1568 = vcombine.low %v1540, %v1547
        %v1570 = vunpack.c.l.s4 1983009808
        %v1571 = vunpack.c.0.s8 %v1570
        %v1572 = vlaneseq
        %v1573 = vshrl.u32 %v1572, 7
        %v1574 = vsub.s32 %v1571, %v1573
        %v1575 = vrot.slane %v1568, %v1574
        %v1576 = vcombine.low %v1564, %v1565
        %v1578 = vunpack.c.l.s4 1983009808
        %v1579 = vunpack.c.0.s8 %v1578
        %v1580 = vlaneseq
        %v1581 = vshrl.u32 %v1580, 7
        %v1582 = vsub.s32 %v1579, %v1581
        %v1583 = vrot.slane %v1576, %v1582
        %v1584 = vcombine.low %v1556, %v1563
        %v1586 = vunpack.c.l.s4 1983009808
        %v1587 = vunpack.c.0.s8 %v1586
        %v1588 = vlaneseq
        %v1589 = vshrl.u32 %v1588, 7
        %v1590 = vsub.s32 %v1587, %v1589
        %v1591 = vrot.slane %v1584, %v1590
        %v1592 = vcombine.low %v1566, %v1567
        %v1594 = vunpack.c.l.s4 1983009808
        %v1595 = vunpack.c.0.s8 %v1594
        %v1596 = vlaneseq
        %v1597 = vshrl.u32 %v1596, 7
        %v1598 = vsub.s32 %v1595, %v1597
        %v1599 = vrot.slane %v1592, %v1598
        %v1600 = vcombine.low %v1575, %v1583
        %v1601 = vcombine.high %v1575, %v1583
        %v1603 = vunpack.c.l.s4 1934713408
        %v1604 = vunpack.c.0.s8 %v1603
        %v1605 = vlaneseq
        %v1606 = vshrl.u32 %v1605, 7
        %v1607 = vsub.s32 %v1604, %v1606
        %v1608 = vrot.slane %v1600, %v1607
        %v1610 = vunpack.c.l.s4 1934713408
        %v1611 = vunpack.c.0.s8 %v1610
        %v1612 = vlaneseq
        %v1613 = vshrl.u32 %v1612, 7
        %v1614 = vsub.s32 %v1611, %v1613
        %v1615 = vrot.slane %v1601, %v1614
        %v1616 = vcombine.low %v1591, %v1599
        %v1617 = vcombine.high %v1591, %v1599
        %v1619 = vunpack.c.l.s4 1934713408
        %v1620 = vunpack.c.0.s8 %v1619
        %v1621 = vlaneseq
        %v1622 = vshrl.u32 %v1621, 7
        %v1623 = vsub.s32 %v1620, %v1622
        %v1624 = vrot.slane %v1616, %v1623
        %v1626 = vunpack.c.l.s4 1934713408
        %v1627 = vunpack.c.0.s8 %v1626
        %v1628 = vlaneseq
        %v1629 = vshrl.u32 %v1628, 7
        %v1630 = vsub.s32 %v1627, %v1629
        %v1631 = vrot.slane %v1617, %v1630
        %v1632 = vcombine.low %v1608, %v1624
        %v1633 = vcombine.high %v1608, %v1624
        %v1634 = vcombine.low %v1615, %v1631
        %v1635 = vcombine.high %v1615, %v1631
        %1637 = vrot.lane.b32.xlu0 %v1633, 8
        %v1638 = vpop.permute.xlu0 %1637
        %1641 = vrot.lane.b32.xlu0 %v1634, 16
        %v1642 = vpop.permute.xlu0 %1641
        %1645 = vrot.lane.b32.xlu0 %v1635, 24
        %v1646 = vpop.permute.xlu0 %1645
        %v1648 = vsel %vm595, %v1632, %v1638
        %vm1649 = vcmask 130048
        %v1650 = vsel %vm1649, %v1648, %v1642
        %vm1651 = vcmask 195584
        %v1652 = vsel %vm1651, %v1650, %v1646
        %v1653 = vld [vmem:[%s3] sm:$0xff]
        %v1654 = vld [vmem:[%s3 + $0x8] sm:$0xff]
        %v1655 = vld [vmem:[%s3 + $0x10] sm:$0xff]
        %v1656 = vld [vmem:[%s3 + $0x18] sm:$0xff]
        %v1657 = vlaneseq
        %v1658 = vshrl.u32 %v1657, 7
        %v1659 = vsub.s32 1, %v1658
        %v1660 = vrot.slane %v366, %v1659
        %v1662 = vsel %vm335, %v1652, 0
        %1664 = vmatprep.subr.mxu0 0.0
        %1665 = vmatpush1.msra.mxu0 %v1653
        %1666 = vmatprep.subr.mxu0 0.0
        %1667 = vmatpush1.msra.mxu0 %v1654
        %1668 = vmatprep.subr.mxu0 0.0
        %1669 = vmatpush1.msra.mxu0 %v1655
        %1670 = vmatprep.subr.mxu0 0.0
        %1671 = vmatpush1.msra.mxu0 %v1656
        %1672 = vmatprep.subr.mxu0 0.0
        %1673 = vmatpush1.msra.mxu0 0.0
        %1674 = vmatprep.subr.mxu0 0.0
        %1675 = vmatpush1.msra.mxu0 0.0
        %1676 = vmatprep.subr.mxu0 0.0
        %1677 = vmatpush1.msra.mxu0 0.0
        %1678 = vmatprep.subr.mxu0 0.0
        %1679 = vmatpush1.msra.mxu0 0.0
        %1680 = vmatprep.subr.mxu0 0.0
        %1681 = vmatpush1.msra.mxu0 0.0
        %1682 = vmatprep.subr.mxu0 0.0
        %1683 = vmatpush1.msra.mxu0 0.0
        %1684 = vmatprep.subr.mxu0 0.0
        %1685 = vmatpush1.msra.mxu0 0.0
        %1686 = vmatprep.subr.mxu0 0.0
        %1687 = vmatpush1.msra.mxu0 0.0
        %1688 = vmatprep.subr.mxu0 0.0
        %1689 = vmatpush1.msra.mxu0 0.0
        %1690 = vmatprep.subr.mxu0 0.0
        %1691 = vmatpush1.msra.mxu0 0.0
        %1692 = vmatprep.subr.mxu0 0.0
        %1693 = vmatpush1.msra.mxu0 0.0
        %1694 = vmatprep.subr.mxu0 0.0
        %1695 = vmatpush1.msra.mxu0 0.0
        %1696 = vmatprep.subr.mxu0 0.0
        %1697 = vmatpush1.msra.mxu0 0.0
        %1698 = vmatprep.subr.mxu0 0.0
        %1699 = vmatpush1.msra.mxu0 0.0
        %1700 = vmatprep.subr.mxu0 0.0
        %1701 = vmatpush1.msra.mxu0 0.0
        %1702 = vmatprep.subr.mxu0 0.0
        %1703 = vmatpush1.msra.mxu0 0.0
        %1704 = vmatprep.subr.mxu0 0.0
        %1705 = vmatpush1.msra.mxu0 0.0
        %1706 = vmatprep.subr.mxu0 0.0
        %1707 = vmatpush1.msra.mxu0 0.0
        %1708 = vmatprep.subr.mxu0 0.0
        %1709 = vmatpush1.msra.mxu0 0.0
        %1710 = vmatprep.subr.mxu0 0.0
        %1711 = vmatpush1.msra.mxu0 0.0
        %1712 = vmatprep.subr.mxu0 0.0
        %1713 = vmatpush1.msra.mxu0 0.0
        %1714 = vmatprep.subr.mxu0 0.0
        %1715 = vmatpush1.msra.mxu0 0.0
        %1716 = vmatprep.subr.mxu0 0.0
        %1717 = vmatpush1.msra.mxu0 0.0
        %1718 = vmatprep.subr.mxu0 0.0
        %1719 = vmatpush1.msra.mxu0 0.0
        %1720 = vmatprep.subr.mxu0 0.0
        %1721 = vmatpush1.msra.mxu0 0.0
        %1722 = vmatprep.subr.mxu0 0.0
        %1723 = vmatpush1.msra.mxu0 0.0
        %1724 = vmatprep.subr.mxu0 0.0
        %1725 = vmatpush1.msra.mxu0 0.0
        %1726 = vmatprep.subr.mxu0 0.0
        %1727 = vmatpush1.msra.mxu0 0.0
        %1728 = vmatprep.mubr.f32.mxu0 0.0
        %1729 = vmatmul.mubr.f32.gmra.mrb[0].mxu0 %v1662
        %v1730 = vpop.f32.mrb[0].mxu0
        %v1731 = vadd.f32 %v1660, %v1730
        %v1732 = vpop.f32.mrb[0].mxu0
        %1733 = vdwg.mxu0
        %v1734 = vadd.f32 %v1731, %v359
        %v1735 = vsel %vm335, %v1734, 0.0
        %1736 = vadd.xlane.f32.xlu0 %v1735
        %v1737 = vpop.xlane.xlu0 %1736
        %v1738 = vmul.f32 %v1737, %v339
        %v1739 = vsub.f32 %v1734, %v1738
        %v1740 = vmul.f32 %v1739, %v1739
        %v1741 = vsel %vm335, %v1740, 0.0
        %1742 = vadd.xlane.f32.xlu0 %v1741
        %v1743 = vpop.xlane.xlu0 %1742
        %v1744 = vmul.f32 %v1743, %v339
        %v1745 = vadd.f32 %v1744, 1e-12
        %v1746 = vrsqrt.pop %v1745
        %v1747 = vmul.f32 %v1739, %v1746
        %v1748 = vlaneseq
        %v1749 = vshrl.u32 %v1748, 7
        %v1750 = vsub.s32 2, %v1749
        %v1751 = vrot.slane %v366, %v1750
        %v1752 = vmul.f32 %v1747, %v1751
        %v1753 = vlaneseq
        %v1754 = vshrl.u32 %v1753, 7
        %v1755 = vsub.s32 3, %v1754
        %v1756 = vrot.slane %v366, %v1755
        %v1757 = vadd.f32 %v1752, %v1756
        %v1758 = vld [vmem:[%s4] sm:$0xff]
        %v1759 = vld [vmem:[%s4 + $0x8] sm:$0xff]
        %v1760 = vld [vmem:[%s4 + $0x10] sm:$0xff]
        %v1761 = vld [vmem:[%s4 + $0x18] sm:$0xff]
        %v1762 = vlaneseq
        %v1763 = vshrl.u32 %v1762, 7
        %v1764 = vsub.s32 4, %v1763
        %v1765 = vrot.slane %v366, %v1764
        %v1767 = vsel %vm335, %v1757, 0
        %1769 = vmatprep.subr.mxu0 0.0
        %1770 = vmatpush1.msra.mxu0 %v1758
        %1771 = vmatprep.subr.mxu0 0.0
        %1772 = vmatpush1.msra.mxu0 %v1759
        %1773 = vmatprep.subr.mxu0 0.0
        %1774 = vmatpush1.msra.mxu0 %v1760
        %1775 = vmatprep.subr.mxu0 0.0
        %1776 = vmatpush1.msra.mxu0 %v1761
        %1777 = vmatprep.subr.mxu0 0.0
        %1778 = vmatpush1.msra.mxu0 0.0
        %1779 = vmatprep.subr.mxu0 0.0
        %1780 = vmatpush1.msra.mxu0 0.0
        %1781 = vmatprep.subr.mxu0 0.0
        %1782 = vmatpush1.msra.mxu0 0.0
        %1783 = vmatprep.subr.mxu0 0.0
        %1784 = vmatpush1.msra.mxu0 0.0
        %1785 = vmatprep.subr.mxu0 0.0
        %1786 = vmatpush1.msra.mxu0 0.0
        %1787 = vmatprep.subr.mxu0 0.0
        %1788 = vmatpush1.msra.mxu0 0.0
        %1789 = vmatprep.subr.mxu0 0.0
        %1790 = vmatpush1.msra.mxu0 0.0
        %1791 = vmatprep.subr.mxu0 0.0
        %1792 = vmatpush1.msra.mxu0 0.0
        %1793 = vmatprep.subr.mxu0 0.0
        %1794 = vmatpush1.msra.mxu0 0.0
        %1795 = vmatprep.subr.mxu0 0.0
        %1796 = vmatpush1.msra.mxu0 0.0
        %1797 = vmatprep.subr.mxu0 0.0
        %1798 = vmatpush1.msra.mxu0 0.0
        %1799 = vmatprep.subr.mxu0 0.0
        %1800 = vmatpush1.msra.mxu0 0.0
        %1801 = vmatprep.subr.mxu0 0.0
        %1802 = vmatpush1.msra.mxu0 0.0
        %1803 = vmatprep.subr.mxu0 0.0
        %1804 = vmatpush1.msra.mxu0 0.0
        %1805 = vmatprep.subr.mxu0 0.0
        %1806 = vmatpush1.msra.mxu0 0.0
        %1807 = vmatprep.subr.mxu0 0.0
        %1808 = vmatpush1.msra.mxu0 0.0
        %1809 = vmatprep.subr.mxu0 0.0
        %1810 = vmatpush1.msra.mxu0 0.0
        %1811 = vmatprep.subr.mxu0 0.0
        %1812 = vmatpush1.msra.mxu0 0.0
        %1813 = vmatprep.subr.mxu0 0.0
        %1814 = vmatpush1.msra.mxu0 0.0
        %1815 = vmatprep.subr.mxu0 0.0
        %1816 = vmatpush1.msra.mxu0 0.0
        %1817 = vmatprep.subr.mxu0 0.0
        %1818 = vmatpush1.msra.mxu0 0.0
        %1819 = vmatprep.subr.mxu0 0.0
        %1820 = vmatpush1.msra.mxu0 0.0
        %1821 = vmatprep.subr.mxu0 0.0
        %1822 = vmatpush1.msra.mxu0 0.0
        %1823 = vmatprep.subr.mxu0 0.0
        %1824 = vmatpush1.msra.mxu0 0.0
        %1825 = vmatprep.subr.mxu0 0.0
        %1826 = vmatpush1.msra.mxu0 0.0
        %1827 = vmatprep.subr.mxu0 0.0
        %1828 = vmatpush1.msra.mxu0 0.0
        %1829 = vmatprep.subr.mxu0 0.0
        %1830 = vmatpush1.msra.mxu0 0.0
        %1831 = vmatprep.subr.mxu0 0.0
        %1832 = vmatpush1.msra.mxu0 0.0
        %1833 = vmatprep.mubr.f32.mxu0 0.0
        %1834 = vmatmul.mubr.f32.gmra.mrb[0].mxu0 %v1767
        %v1835 = vpop.f32.mrb[0].mxu0
        %v1836 = vadd.f32 %v1765, %v1835
        %v1837 = vpop.f32.mrb[0].mxu0
        %1838 = vdwg.mxu0
        %v1839 = vmul.f32 %v1836, 0.5
        %v1840 = vmul.f32 %v1836, 0.044715
        %v1841 = vmul.f32 %v1840, %v1836
        %v1842 = vmul.f32 %v1841, %v1836
        %v1843 = vadd.f32 %v1836, %v1842
        %v1844 = vmul.f32 %v1843, 0.7978846
        %v1845 = vtanh.pop %v1844
        %v1846 = vadd.f32 %v1845, 1.0
        %v1847 = vmul.f32 %v1839, %v1846
        %v1848 = vld [vmem:[%s5] sm:$0xff]
        %v1849 = vld [vmem:[%s5 + $0x8] sm:$0xff]
        %v1850 = vld [vmem:[%s5 + $0x10] sm:$0xff]
        %v1851 = vld [vmem:[%s5 + $0x18] sm:$0xff]
        %v1852 = vld [vmem:[%s5 + $0x20] sm:$0xff]
        %v1853 = vld [vmem:[%s5 + $0x28] sm:$0xff]
        %v1854 = vld [vmem:[%s5 + $0x30] sm:$0xff]
        %v1855 = vld [vmem:[%s5 + $0x38] sm:$0xff]
        %v1856 = vlaneseq
        %v1857 = vshrl.u32 %v1856, 7
        %v1858 = vsub.s32 5, %v1857
        %v1859 = vrot.slane %v366, %v1858
        %vm1860 = vcmask 523264
        %v1862 = vsel %vm1860, %v1847, 0
        %1864 = vmatprep.subr.mxu0 0.0
        %1865 = vmatpush1.msra.mxu0 %v1848
        %1866 = vmatprep.subr.mxu0 0.0
        %1867 = vmatpush1.msra.mxu0 %v1849
        %1868 = vmatprep.subr.mxu0 0.0
        %1869 = vmatpush1.msra.mxu0 %v1850
        %1870 = vmatprep.subr.mxu0 0.0
        %1871 = vmatpush1.msra.mxu0 %v1851
        %1872 = vmatprep.subr.mxu0 0.0
        %1873 = vmatpush1.msra.mxu0 %v1852
        %1874 = vmatprep.subr.mxu0 0.0
        %1875 = vmatpush1.msra.mxu0 %v1853
        %1876 = vmatprep.subr.mxu0 0.0
        %1877 = vmatpush1.msra.mxu0 %v1854
        %1878 = vmatprep.subr.mxu0 0.0
        %1879 = vmatpush1.msra.mxu0 %v1855
        %1880 = vmatprep.subr.mxu0 0.0
        %1881 = vmatpush1.msra.mxu0 0.0
        %1882 = vmatprep.subr.mxu0 0.0
        %1883 = vmatpush1.msra.mxu0 0.0
        %1884 = vmatprep.subr.mxu0 0.0
        %1885 = vmatpush1.msra.mxu0 0.0
        %1886 = vmatprep.subr.mxu0 0.0
        %1887 = vmatpush1.msra.mxu0 0.0
        %1888 = vmatprep.subr.mxu0 0.0
        %1889 = vmatpush1.msra.mxu0 0.0
        %1890 = vmatprep.subr.mxu0 0.0
        %1891 = vmatpush1.msra.mxu0 0.0
        %1892 = vmatprep.subr.mxu0 0.0
        %1893 = vmatpush1.msra.mxu0 0.0
        %1894 = vmatprep.subr.mxu0 0.0
        %1895 = vmatpush1.msra.mxu0 0.0
        %1896 = vmatprep.subr.mxu0 0.0
        %1897 = vmatpush1.msra.mxu0 0.0
        %1898 = vmatprep.subr.mxu0 0.0
        %1899 = vmatpush1.msra.mxu0 0.0
        %1900 = vmatprep.subr.mxu0 0.0
        %1901 = vmatpush1.msra.mxu0 0.0
        %1902 = vmatprep.subr.mxu0 0.0
        %1903 = vmatpush1.msra.mxu0 0.0
        %1904 = vmatprep.subr.mxu0 0.0
        %1905 = vmatpush1.msra.mxu0 0.0
        %1906 = vmatprep.subr.mxu0 0.0
        %1907 = vmatpush1.msra.mxu0 0.0
        %1908 = vmatprep.subr.mxu0 0.0
        %1909 = vmatpush1.msra.mxu0 0.0
        %1910 = vmatprep.subr.mxu0 0.0
        %1911 = vmatpush1.msra.mxu0 0.0
        %1912 = vmatprep.subr.mxu0 0.0
        %1913 = vmatpush1.msra.mxu0 0.0
        %1914 = vmatprep.subr.mxu0 0.0
        %1915 = vmatpush1.msra.mxu0 0.0
        %1916 = vmatprep.subr.mxu0 0.0
        %1917 = vmatpush1.msra.mxu0 0.0
        %1918 = vmatprep.subr.mxu0 0.0
        %1919 = vmatpush1.msra.mxu0 0.0
        %1920 = vmatprep.subr.mxu0 0.0
        %1921 = vmatpush1.msra.mxu0 0.0
        %1922 = vmatprep.subr.mxu0 0.0
        %1923 = vmatpush1.msra.mxu0 0.0
        %1924 = vmatprep.subr.mxu0 0.0
        %1925 = vmatpush1.msra.mxu0 0.0
        %1926 = vmatprep.subr.mxu0 0.0
        %1927 = vmatpush1.msra.mxu0 0.0
        %1928 = vmatprep.mubr.f32.mxu0 0.0
        %1929 = vmatmul.mubr.f32.gmra.mrb[0].mxu0 %v1862
        %v1930 = vpop.f32.mrb[0].mxu0
        %v1931 = vadd.f32 %v1859, %v1930
        %v1932 = vpop.f32.mrb[0].mxu0
        %1933 = vdwg.mxu0
        %v1934 = vadd.f32 %v1931, %v1757
        %v1935 = vsel %vm335, %v1934, 0.0
        %1936 = vadd.xlane.f32.xlu0 %v1935
        %v1937 = vpop.xlane.xlu0 %1936
        %v1938 = vmul.f32 %v1937, %v339
        %v1939 = vsub.f32 %v1934, %v1938
        %v1940 = vmul.f32 %v1939, %v1939
        %v1941 = vsel %vm335, %v1940, 0.0
        %1942 = vadd.xlane.f32.xlu0 %v1941
        %v1943 = vpop.xlane.xlu0 %1942
        %v1944 = vmul.f32 %v1943, %v339
        %v1945 = vadd.f32 %v1944, 1e-12
        %v1946 = vrsqrt.pop %v1945
        %v1947 = vmul.f32 %v1939, %v1946
        %v1948 = vlaneseq
        %v1949 = vshrl.u32 %v1948, 7
        %v1950 = vsub.s32 6, %v1949
        %v1951 = vrot.slane %v366, %v1950
        %v1952 = vmul.f32 %v1947, %v1951
        %v1953 = vlaneseq
        %v1954 = vshrl.u32 %v1953, 7
        %v1955 = vsub.s32 7, %v1954
        %v1956 = vrot.slane %v366, %v1955
        %v1957 = vadd.f32 %v1952, %v1956
        %s1958 = scalar_lea.vmem %s6, 8
        %v1959 = vld [vmem:[%s1958] sm:$0xff]
        %s1960 = scalar_lea.vmem %s2, 32
        %v1961 = vld [vmem:[%s1960] sm:$0xff]
        %v1962 = vld [vmem:[%s1960 + $0x8] sm:$0xff]
        %v1963 = vld [vmem:[%s1960 + $0x10] sm:$0xff]
        %v1964 = vld [vmem:[%s1960 + $0x18] sm:$0xff]
        %v1965 = vlaneseq
        %v1966 = vshrl.u32 %v1965, 7
        %v1967 = vsub.s32 0, %v1966
        %v1968 = vrot.slane %v1959, %v1967
        %v1970 = vsel %vm335, %v1957, 0
        %1972 = vmatprep.subr.mxu0 0.0
        %1973 = vmatpush1.msra.mxu0 %v1961
        %1974 = vmatprep.subr.mxu0 0.0
        %1975 = vmatpush1.msra.mxu0 %v1962
        %1976 = vmatprep.subr.mxu0 0.0
        %1977 = vmatpush1.msra.mxu0 %v1963
        %1978 = vmatprep.subr.mxu0 0.0
        %1979 = vmatpush1.msra.mxu0 %v1964
        %1980 = vmatprep.subr.mxu0 0.0
        %1981 = vmatpush1.msra.mxu0 0.0
        %1982 = vmatprep.subr.mxu0 0.0
        %1983 = vmatpush1.msra.mxu0 0.0
        %1984 = vmatprep.subr.mxu0 0.0
        %1985 = vmatpush1.msra.mxu0 0.0
        %1986 = vmatprep.subr.mxu0 0.0
        %1987 = vmatpush1.msra.mxu0 0.0
        %1988 = vmatprep.subr.mxu0 0.0
        %1989 = vmatpush1.msra.mxu0 0.0
        %1990 = vmatprep.subr.mxu0 0.0
        %1991 = vmatpush1.msra.mxu0 0.0
        %1992 = vmatprep.subr.mxu0 0.0
        %1993 = vmatpush1.msra.mxu0 0.0
        %1994 = vmatprep.subr.mxu0 0.0
        %1995 = vmatpush1.msra.mxu0 0.0
        %1996 = vmatprep.subr.mxu0 0.0
        %1997 = vmatpush1.msra.mxu0 0.0
        %1998 = vmatprep.subr.mxu0 0.0
        %1999 = vmatpush1.msra.mxu0 0.0
        %2000 = vmatprep.subr.mxu0 0.0
        %2001 = vmatpush1.msra.mxu0 0.0
        %2002 = vmatprep.subr.mxu0 0.0
        %2003 = vmatpush1.msra.mxu0 0.0
        %2004 = vmatprep.subr.mxu0 0.0
        %2005 = vmatpush1.msra.mxu0 0.0
        %2006 = vmatprep.subr.mxu0 0.0
        %2007 = vmatpush1.msra.mxu0 0.0
        %2008 = vmatprep.subr.mxu0 0.0
        %2009 = vmatpush1.msra.mxu0 0.0
        %2010 = vmatprep.subr.mxu0 0.0
        %2011 = vmatpush1.msra.mxu0 0.0
        %2012 = vmatprep.subr.mxu0 0.0
        %2013 = vmatpush1.msra.mxu0 0.0
        %2014 = vmatprep.subr.mxu0 0.0
        %2015 = vmatpush1.msra.mxu0 0.0
        %2016 = vmatprep.subr.mxu0 0.0
        %2017 = vmatpush1.msra.mxu0 0.0
        %2018 = vmatprep.subr.mxu0 0.0
        %2019 = vmatpush1.msra.mxu0 0.0
        %2020 = vmatprep.subr.mxu0 0.0
        %2021 = vmatpush1.msra.mxu0 0.0
        %2022 = vmatprep.subr.mxu0 0.0
        %2023 = vmatpush1.msra.mxu0 0.0
        %2024 = vmatprep.subr.mxu0 0.0
        %2025 = vmatpush1.msra.mxu0 0.0
        %2026 = vmatprep.subr.mxu0 0.0
        %2027 = vmatpush1.msra.mxu0 0.0
        %2028 = vmatprep.subr.mxu0 0.0
        %2029 = vmatpush1.msra.mxu0 0.0
        %2030 = vmatprep.subr.mxu0 0.0
        %2031 = vmatpush1.msra.mxu0 0.0
        %2032 = vmatprep.subr.mxu0 0.0
        %2033 = vmatpush1.msra.mxu0 0.0
        %2034 = vmatprep.subr.mxu0 0.0
        %2035 = vmatpush1.msra.mxu0 0.0
        %2036 = vmatprep.mubr.f32.mxu0 0.0
        %2037 = vmatmul.mubr.f32.gmra.mrb[0].mxu0 %v1970
        %v2038 = vpop.f32.mrb[0].mxu0
        %v2039 = vadd.f32 %v1968, %v2038
        %v2040 = vpop.f32.mrb[0].mxu0
        %2041 = vdwg.mxu0
        %2043 = vrot.lane.b32.xlu0 %v2039, 120
        %v2044 = vpop.permute.xlu0 %2043
        %2045 = vrot.lane.b32.xlu0 %v2039, 112
        %v2046 = vpop.permute.xlu0 %2045
        %2047 = vrot.lane.b32.xlu0 %v2039, 104
        %v2048 = vpop.permute.xlu0 %2047
        %2049 = vrot.lane.b32.xlu0 %v2039, 96
        %v2050 = vpop.permute.xlu0 %2049
        %2051 = vrot.lane.b32.xlu0 %v2044, 96
        %v2052 = vpop.permute.xlu0 %2051
        %2053 = vrot.lane.b32.xlu0 %v2046, 96
        %v2054 = vpop.permute.xlu0 %2053
        %2055 = vrot.lane.b32.xlu0 %v2048, 96
        %v2056 = vpop.permute.xlu0 %2055
        %2061 = vxpose.xlu0.b32.start [1/16] %v2050, 128
        %2062 = vxpose.xlu0.b32.cont [2/16] 0.0, 128
        %2063 = vxpose.xlu0.b32.cont [3/16] 0.0, 128
        %2064 = vxpose.xlu0.b32.cont [4/16] 0.0, 128
        %2065 = vxpose.xlu0.b32.cont [5/16] 0.0, 128
        %2066 = vxpose.xlu0.b32.cont [6/16] 0.0, 128
        %2067 = vxpose.xlu0.b32.cont [7/16] 0.0, 128
        %2068 = vxpose.xlu0.b32.cont [8/16] 0.0, 128
        %2069 = vxpose.xlu0.b32.cont [9/16] 0.0, 128
        %2070 = vxpose.xlu0.b32.cont [10/16] 0.0, 128
        %2071 = vxpose.xlu0.b32.cont [11/16] 0.0, 128
        %2072 = vxpose.xlu0.b32.cont [12/16] 0.0, 128
        %2073 = vxpose.xlu0.b32.cont [13/16] 0.0, 128
        %2074 = vxpose.xlu0.b32.cont [14/16] 0.0, 128
        %2075 = vxpose.xlu0.b32.cont [15/16] 0.0, 128
        %2076 = vxpose.xlu0.b32.end [16/16] 0.0, 128
        %v2077 = vpop.trf.xlu0
        %v2078 = vpop.trf.xlu0
        %v2079 = vpop.trf.xlu0
        %v2080 = vpop.trf.xlu0
        %v2081 = vpop.trf.xlu0
        %v2082 = vpop.trf.xlu0
        %v2083 = vpop.trf.xlu0
        %v2084 = vpop.trf.xlu0
        %v2085 = vpop.trf.xlu0
        %v2086 = vpop.trf.xlu0
        %v2087 = vpop.trf.xlu0
        %v2088 = vpop.trf.xlu0
        %v2089 = vpop.trf.xlu0
        %v2090 = vpop.trf.xlu0
        %v2091 = vpop.trf.xlu0
        %v2092 = vpop.trf.xlu0
        %2093 = vxpose.xlu0.b32.start [1/16] %v2052, 128
        %2094 = vxpose.xlu0.b32.cont [2/16] 0.0, 128
        %2095 = vxpose.xlu0.b32.cont [3/16] 0.0, 128
        %2096 = vxpose.xlu0.b32.cont [4/16] 0.0, 128
        %2097 = vxpose.xlu0.b32.cont [5/16] 0.0, 128
        %2098 = vxpose.xlu0.b32.cont [6/16] 0.0, 128
        %2099 = vxpose.xlu0.b32.cont [7/16] 0.0, 128
        %2100 = vxpose.xlu0.b32.cont [8/16] 0.0, 128
        %2101 = vxpose.xlu0.b32.cont [9/16] 0.0, 128
        %2102 = vxpose.xlu0.b32.cont [10/16] 0.0, 128
        %2103 = vxpose.xlu0.b32.cont [11/16] 0.0, 128
        %2104 = vxpose.xlu0.b32.cont [12/16] 0.0, 128
        %2105 = vxpose.xlu0.b32.cont [13/16] 0.0, 128
        %2106 = vxpose.xlu0.b32.cont [14/16] 0.0, 128
        %2107 = vxpose.xlu0.b32.cont [15/16] 0.0, 128
        %2108 = vxpose.xlu0.b32.end [16/16] 0.0, 128
        %v2109 = vpop.trf.xlu0
        %v2110 = vpop.trf.xlu0
        %v2111 = vpop.trf.xlu0
        %v2112 = vpop.trf.xlu0
        %v2113 = vpop.trf.xlu0
        %v2114 = vpop.trf.xlu0
        %v2115 = vpop.trf.xlu0
        %v2116 = vpop.trf.xlu0
        %v2117 = vpop.trf.xlu0
        %v2118 = vpop.trf.xlu0
        %v2119 = vpop.trf.xlu0
        %v2120 = vpop.trf.xlu0
        %v2121 = vpop.trf.xlu0
        %v2122 = vpop.trf.xlu0
        %v2123 = vpop.trf.xlu0
        %v2124 = vpop.trf.xlu0
        %2125 = vxpose.xlu0.b32.start [1/16] %v2054, 128
        %2126 = vxpose.xlu0.b32.cont [2/16] 0.0, 128
        %2127 = vxpose.xlu0.b32.cont [3/16] 0.0, 128
        %2128 = vxpose.xlu0.b32.cont [4/16] 0.0, 128
        %2129 = vxpose.xlu0.b32.cont [5/16] 0.0, 128
        %2130 = vxpose.xlu0.b32.cont [6/16] 0.0, 128
        %2131 = vxpose.xlu0.b32.cont [7/16] 0.0, 128
        %2132 = vxpose.xlu0.b32.cont [8/16] 0.0, 128
        %2133 = vxpose.xlu0.b32.cont [9/16] 0.0, 128
        %2134 = vxpose.xlu0.b32.cont [10/16] 0.0, 128
        %2135 = vxpose.xlu0.b32.cont [11/16] 0.0, 128
        %2136 = vxpose.xlu0.b32.cont [12/16] 0.0, 128
        %2137 = vxpose.xlu0.b32.cont [13/16] 0.0, 128
        %2138 = vxpose.xlu0.b32.cont [14/16] 0.0, 128
        %2139 = vxpose.xlu0.b32.cont [15/16] 0.0, 128
        %2140 = vxpose.xlu0.b32.end [16/16] 0.0, 128
        %v2141 = vpop.trf.xlu0
        %v2142 = vpop.trf.xlu0
        %v2143 = vpop.trf.xlu0
        %v2144 = vpop.trf.xlu0
        %v2145 = vpop.trf.xlu0
        %v2146 = vpop.trf.xlu0
        %v2147 = vpop.trf.xlu0
        %v2148 = vpop.trf.xlu0
        %v2149 = vpop.trf.xlu0
        %v2150 = vpop.trf.xlu0
        %v2151 = vpop.trf.xlu0
        %v2152 = vpop.trf.xlu0
        %v2153 = vpop.trf.xlu0
        %v2154 = vpop.trf.xlu0
        %v2155 = vpop.trf.xlu0
        %v2156 = vpop.trf.xlu0
        %2157 = vxpose.xlu0.b32.start [1/16] %v2056, 128
        %2158 = vxpose.xlu0.b32.cont [2/16] 0.0, 128
        %2159 = vxpose.xlu0.b32.cont [3/16] 0.0, 128
        %2160 = vxpose.xlu0.b32.cont [4/16] 0.0, 128
        %2161 = vxpose.xlu0.b32.cont [5/16] 0.0, 128
        %2162 = vxpose.xlu0.b32.cont [6/16] 0.0, 128
        %2163 = vxpose.xlu0.b32.cont [7/16] 0.0, 128
        %2164 = vxpose.xlu0.b32.cont [8/16] 0.0, 128
        %2165 = vxpose.xlu0.b32.cont [9/16] 0.0, 128
        %2166 = vxpose.xlu0.b32.cont [10/16] 0.0, 128
        %2167 = vxpose.xlu0.b32.cont [11/16] 0.0, 128
        %2168 = vxpose.xlu0.b32.cont [12/16] 0.0, 128
        %2169 = vxpose.xlu0.b32.cont [13/16] 0.0, 128
        %2170 = vxpose.xlu0.b32.cont [14/16] 0.0, 128
        %2171 = vxpose.xlu0.b32.cont [15/16] 0.0, 128
        %2172 = vxpose.xlu0.b32.end [16/16] 0.0, 128
        %v2173 = vpop.trf.xlu0
        %v2174 = vpop.trf.xlu0
        %v2175 = vpop.trf.xlu0
        %v2176 = vpop.trf.xlu0
        %v2177 = vpop.trf.xlu0
        %v2178 = vpop.trf.xlu0
        %v2179 = vpop.trf.xlu0
        %v2180 = vpop.trf.xlu0
        %v2181 = vpop.trf.xlu0
        %v2182 = vpop.trf.xlu0
        %v2183 = vpop.trf.xlu0
        %v2184 = vpop.trf.xlu0
        %v2185 = vpop.trf.xlu0
        %v2186 = vpop.trf.xlu0
        %v2187 = vpop.trf.xlu0
        %v2188 = vpop.trf.xlu0
        %v2189 = vsel %vm595, %v2039, 0
        %2191 = vmatprep.subr.mxu0 0.0
        %2192 = vmatpush1.msra.mxu0 %v2077
        %2193 = vmatprep.subr.mxu0 0.0
        %2194 = vmatpush1.msra.mxu0 0.0
        %2195 = vmatprep.subr.mxu0 0.0
        %2196 = vmatpush1.msra.mxu0 0.0
        %2197 = vmatprep.subr.mxu0 0.0
        %2198 = vmatpush1.msra.mxu0 0.0
        %2199 = vmatprep.subr.mxu0 0.0
        %2200 = vmatpush1.msra.mxu0 0.0
        %2201 = vmatprep.subr.mxu0 0.0
        %2202 = vmatpush1.msra.mxu0 0.0
        %2203 = vmatprep.subr.mxu0 0.0
        %2204 = vmatpush1.msra.mxu0 0.0
        %2205 = vmatprep.subr.mxu0 0.0
        %2206 = vmatpush1.msra.mxu0 0.0
        %2207 = vmatprep.subr.mxu0 0.0
        %2208 = vmatpush1.msra.mxu0 0.0
        %2209 = vmatprep.subr.mxu0 0.0
        %2210 = vmatpush1.msra.mxu0 0.0
        %2211 = vmatprep.subr.mxu0 0.0
        %2212 = vmatpush1.msra.mxu0 0.0
        %2213 = vmatprep.subr.mxu0 0.0
        %2214 = vmatpush1.msra.mxu0 0.0
        %2215 = vmatprep.subr.mxu0 0.0
        %2216 = vmatpush1.msra.mxu0 0.0
        %2217 = vmatprep.subr.mxu0 0.0
        %2218 = vmatpush1.msra.mxu0 0.0
        %2219 = vmatprep.subr.mxu0 0.0
        %2220 = vmatpush1.msra.mxu0 0.0
        %2221 = vmatprep.subr.mxu0 0.0
        %2222 = vmatpush1.msra.mxu0 0.0
        %2223 = vmatprep.subr.mxu0 0.0
        %2224 = vmatpush1.msra.mxu0 0.0
        %2225 = vmatprep.subr.mxu0 0.0
        %2226 = vmatpush1.msra.mxu0 0.0
        %2227 = vmatprep.subr.mxu0 0.0
        %2228 = vmatpush1.msra.mxu0 0.0
        %2229 = vmatprep.subr.mxu0 0.0
        %2230 = vmatpush1.msra.mxu0 0.0
        %2231 = vmatprep.subr.mxu0 0.0
        %2232 = vmatpush1.msra.mxu0 0.0
        %2233 = vmatprep.subr.mxu0 0.0
        %2234 = vmatpush1.msra.mxu0 0.0
        %2235 = vmatprep.subr.mxu0 0.0
        %2236 = vmatpush1.msra.mxu0 0.0
        %2237 = vmatprep.subr.mxu0 0.0
        %2238 = vmatpush1.msra.mxu0 0.0
        %2239 = vmatprep.subr.mxu0 0.0
        %2240 = vmatpush1.msra.mxu0 0.0
        %2241 = vmatprep.subr.mxu0 0.0
        %2242 = vmatpush1.msra.mxu0 0.0
        %2243 = vmatprep.subr.mxu0 0.0
        %2244 = vmatpush1.msra.mxu0 0.0
        %2245 = vmatprep.subr.mxu0 0.0
        %2246 = vmatpush1.msra.mxu0 0.0
        %2247 = vmatprep.subr.mxu0 0.0
        %2248 = vmatpush1.msra.mxu0 0.0
        %2249 = vmatprep.subr.mxu0 0.0
        %2250 = vmatpush1.msra.mxu0 0.0
        %2251 = vmatprep.subr.mxu0 0.0
        %2252 = vmatpush1.msra.mxu0 0.0
        %2253 = vmatprep.subr.mxu0 0.0
        %2254 = vmatpush1.msra.mxu0 0.0
        %2255 = vmatprep.mubr.f32.mxu0 0.0
        %2256 = vmatmul.mubr.f32.gmra.mrb[0].mxu0 %v2189
        %v2257 = vpop.f32.mrb[0].mxu0
        %v2258 = vadd.f32 %v365, %v2257
        %v2259 = vpop.f32.mrb[0].mxu0
        %2260 = vdwg.mxu0
        %v2261 = vsel %vm595, %v2044, 0
        %2263 = vmatprep.subr.mxu0 0.0
        %2264 = vmatpush1.msra.mxu0 %v2109
        %2265 = vmatprep.subr.mxu0 0.0
        %2266 = vmatpush1.msra.mxu0 0.0
        %2267 = vmatprep.subr.mxu0 0.0
        %2268 = vmatpush1.msra.mxu0 0.0
        %2269 = vmatprep.subr.mxu0 0.0
        %2270 = vmatpush1.msra.mxu0 0.0
        %2271 = vmatprep.subr.mxu0 0.0
        %2272 = vmatpush1.msra.mxu0 0.0
        %2273 = vmatprep.subr.mxu0 0.0
        %2274 = vmatpush1.msra.mxu0 0.0
        %2275 = vmatprep.subr.mxu0 0.0
        %2276 = vmatpush1.msra.mxu0 0.0
        %2277 = vmatprep.subr.mxu0 0.0
        %2278 = vmatpush1.msra.mxu0 0.0
        %2279 = vmatprep.subr.mxu0 0.0
        %2280 = vmatpush1.msra.mxu0 0.0
        %2281 = vmatprep.subr.mxu0 0.0
        %2282 = vmatpush1.msra.mxu0 0.0
        %2283 = vmatprep.subr.mxu0 0.0
        %2284 = vmatpush1.msra.mxu0 0.0
        %2285 = vmatprep.subr.mxu0 0.0
        %2286 = vmatpush1.msra.mxu0 0.0
        %2287 = vmatprep.subr.mxu0 0.0
        %2288 = vmatpush1.msra.mxu0 0.0
        %2289 = vmatprep.subr.mxu0 0.0
        %2290 = vmatpush1.msra.mxu0 0.0
        %2291 = vmatprep.subr.mxu0 0.0
        %2292 = vmatpush1.msra.mxu0 0.0
        %2293 = vmatprep.subr.mxu0 0.0
        %2294 = vmatpush1.msra.mxu0 0.0
        %2295 = vmatprep.subr.mxu0 0.0
        %2296 = vmatpush1.msra.mxu0 0.0
        %2297 = vmatprep.subr.mxu0 0.0
        %2298 = vmatpush1.msra.mxu0 0.0
        %2299 = vmatprep.subr.mxu0 0.0
        %2300 = vmatpush1.msra.mxu0 0.0
        %2301 = vmatprep.subr.mxu0 0.0
        %2302 = vmatpush1.msra.mxu0 0.0
        %2303 = vmatprep.subr.mxu0 0.0
        %2304 = vmatpush1.msra.mxu0 0.0
        %2305 = vmatprep.subr.mxu0 0.0
        %2306 = vmatpush1.msra.mxu0 0.0
        %2307 = vmatprep.subr.mxu0 0.0
        %2308 = vmatpush1.msra.mxu0 0.0
        %2309 = vmatprep.subr.mxu0 0.0
        %2310 = vmatpush1.msra.mxu0 0.0
        %2311 = vmatprep.subr.mxu0 0.0
        %2312 = vmatpush1.msra.mxu0 0.0
        %2313 = vmatprep.subr.mxu0 0.0
        %2314 = vmatpush1.msra.mxu0 0.0
        %2315 = vmatprep.subr.mxu0 0.0
        %2316 = vmatpush1.msra.mxu0 0.0
        %2317 = vmatprep.subr.mxu0 0.0
        %2318 = vmatpush1.msra.mxu0 0.0
        %2319 = vmatprep.subr.mxu0 0.0
        %2320 = vmatpush1.msra.mxu0 0.0
        %2321 = vmatprep.subr.mxu0 0.0
        %2322 = vmatpush1.msra.mxu0 0.0
        %2323 = vmatprep.subr.mxu0 0.0
        %2324 = vmatpush1.msra.mxu0 0.0
        %2325 = vmatprep.subr.mxu0 0.0
        %2326 = vmatpush1.msra.mxu0 0.0
        %2327 = vmatprep.mubr.f32.mxu0 0.0
        %2328 = vmatmul.mubr.f32.gmra.mrb[0].mxu0 %v2261
        %v2329 = vpop.f32.mrb[0].mxu0
        %v2330 = vadd.f32 %v365, %v2329
        %v2331 = vpop.f32.mrb[0].mxu0
        %2332 = vdwg.mxu0
        %v2333 = vsel %vm595, %v2046, 0
        %2335 = vmatprep.subr.mxu0 0.0
        %2336 = vmatpush1.msra.mxu0 %v2141
        %2337 = vmatprep.subr.mxu0 0.0
        %2338 = vmatpush1.msra.mxu0 0.0
        %2339 = vmatprep.subr.mxu0 0.0
        %2340 = vmatpush1.msra.mxu0 0.0
        %2341 = vmatprep.subr.mxu0 0.0
        %2342 = vmatpush1.msra.mxu0 0.0
        %2343 = vmatprep.subr.mxu0 0.0
        %2344 = vmatpush1.msra.mxu0 0.0
        %2345 = vmatprep.subr.mxu0 0.0
        %2346 = vmatpush1.msra.mxu0 0.0
        %2347 = vmatprep.subr.mxu0 0.0
        %2348 = vmatpush1.msra.mxu0 0.0
        %2349 = vmatprep.subr.mxu0 0.0
        %2350 = vmatpush1.msra.mxu0 0.0
        %2351 = vmatprep.subr.mxu0 0.0
        %2352 = vmatpush1.msra.mxu0 0.0
        %2353 = vmatprep.subr.mxu0 0.0
        %2354 = vmatpush1.msra.mxu0 0.0
        %2355 = vmatprep.subr.mxu0 0.0
        %2356 = vmatpush1.msra.mxu0 0.0
        %2357 = vmatprep.subr.mxu0 0.0
        %2358 = vmatpush1.msra.mxu0 0.0
        %2359 = vmatprep.subr.mxu0 0.0
        %2360 = vmatpush1.msra.mxu0 0.0
        %2361 = vmatprep.subr.mxu0 0.0
        %2362 = vmatpush1.msra.mxu0 0.0
        %2363 = vmatprep.subr.mxu0 0.0
        %2364 = vmatpush1.msra.mxu0 0.0
        %2365 = vmatprep.subr.mxu0 0.0
        %2366 = vmatpush1.msra.mxu0 0.0
        %2367 = vmatprep.subr.mxu0 0.0
        %2368 = vmatpush1.msra.mxu0 0.0
        %2369 = vmatprep.subr.mxu0 0.0
        %2370 = vmatpush1.msra.mxu0 0.0
        %2371 = vmatprep.subr.mxu0 0.0
        %2372 = vmatpush1.msra.mxu0 0.0
        %2373 = vmatprep.subr.mxu0 0.0
        %2374 = vmatpush1.msra.mxu0 0.0
        %2375 = vmatprep.subr.mxu0 0.0
        %2376 = vmatpush1.msra.mxu0 0.0
        %2377 = vmatprep.subr.mxu0 0.0
        %2378 = vmatpush1.msra.mxu0 0.0
        %2379 = vmatprep.subr.mxu0 0.0
        %2380 = vmatpush1.msra.mxu0 0.0
        %2381 = vmatprep.subr.mxu0 0.0
        %2382 = vmatpush1.msra.mxu0 0.0
        %2383 = vmatprep.subr.mxu0 0.0
        %2384 = vmatpush1.msra.mxu0 0.0
        %2385 = vmatprep.subr.mxu0 0.0
        %2386 = vmatpush1.msra.mxu0 0.0
        %2387 = vmatprep.subr.mxu0 0.0
        %2388 = vmatpush1.msra.mxu0 0.0
        %2389 = vmatprep.subr.mxu0 0.0
        %2390 = vmatpush1.msra.mxu0 0.0
        %2391 = vmatprep.subr.mxu0 0.0
        %2392 = vmatpush1.msra.mxu0 0.0
        %2393 = vmatprep.subr.mxu0 0.0
        %2394 = vmatpush1.msra.mxu0 0.0
        %2395 = vmatprep.subr.mxu0 0.0
        %2396 = vmatpush1.msra.mxu0 0.0
        %2397 = vmatprep.subr.mxu0 0.0
        %2398 = vmatpush1.msra.mxu0 0.0
        %2399 = vmatprep.mubr.f32.mxu0 0.0
        %2400 = vmatmul.mubr.f32.gmra.mrb[0].mxu0 %v2333
        %v2401 = vpop.f32.mrb[0].mxu0
        %v2402 = vadd.f32 %v365, %v2401
        %v2403 = vpop.f32.mrb[0].mxu0
        %2404 = vdwg.mxu0
        %v2405 = vsel %vm595, %v2048, 0
        %2407 = vmatprep.subr.mxu0 0.0
        %2408 = vmatpush1.msra.mxu0 %v2173
        %2409 = vmatprep.subr.mxu0 0.0
        %2410 = vmatpush1.msra.mxu0 0.0
        %2411 = vmatprep.subr.mxu0 0.0
        %2412 = vmatpush1.msra.mxu0 0.0
        %2413 = vmatprep.subr.mxu0 0.0
        %2414 = vmatpush1.msra.mxu0 0.0
        %2415 = vmatprep.subr.mxu0 0.0
        %2416 = vmatpush1.msra.mxu0 0.0
        %2417 = vmatprep.subr.mxu0 0.0
        %2418 = vmatpush1.msra.mxu0 0.0
        %2419 = vmatprep.subr.mxu0 0.0
        %2420 = vmatpush1.msra.mxu0 0.0
        %2421 = vmatprep.subr.mxu0 0.0
        %2422 = vmatpush1.msra.mxu0 0.0
        %2423 = vmatprep.subr.mxu0 0.0
        %2424 = vmatpush1.msra.mxu0 0.0
        %2425 = vmatprep.subr.mxu0 0.0
        %2426 = vmatpush1.msra.mxu0 0.0
        %2427 = vmatprep.subr.mxu0 0.0
        %2428 = vmatpush1.msra.mxu0 0.0
        %2429 = vmatprep.subr.mxu0 0.0
        %2430 = vmatpush1.msra.mxu0 0.0
        %2431 = vmatprep.subr.mxu0 0.0
        %2432 = vmatpush1.msra.mxu0 0.0
        %2433 = vmatprep.subr.mxu0 0.0
        %2434 = vmatpush1.msra.mxu0 0.0
        %2435 = vmatprep.subr.mxu0 0.0
        %2436 = vmatpush1.msra.mxu0 0.0
        %2437 = vmatprep.subr.mxu0 0.0
        %2438 = vmatpush1.msra.mxu0 0.0
        %2439 = vmatprep.subr.mxu0 0.0
        %2440 = vmatpush1.msra.mxu0 0.0
        %2441 = vmatprep.subr.mxu0 0.0
        %2442 = vmatpush1.msra.mxu0 0.0
        %2443 = vmatprep.subr.mxu0 0.0
        %2444 = vmatpush1.msra.mxu0 0.0
        %2445 = vmatprep.subr.mxu0 0.0
        %2446 = vmatpush1.msra.mxu0 0.0
        %2447 = vmatprep.subr.mxu0 0.0
        %2448 = vmatpush1.msra.mxu0 0.0
        %2449 = vmatprep.subr.mxu0 0.0
        %2450 = vmatpush1.msra.mxu0 0.0
        %2451 = vmatprep.subr.mxu0 0.0
        %2452 = vmatpush1.msra.mxu0 0.0
        %2453 = vmatprep.subr.mxu0 0.0
        %2454 = vmatpush1.msra.mxu0 0.0
        %2455 = vmatprep.subr.mxu0 0.0
        %2456 = vmatpush1.msra.mxu0 0.0
        %2457 = vmatprep.subr.mxu0 0.0
        %2458 = vmatpush1.msra.mxu0 0.0
        %2459 = vmatprep.subr.mxu0 0.0
        %2460 = vmatpush1.msra.mxu0 0.0
        %2461 = vmatprep.subr.mxu0 0.0
        %2462 = vmatpush1.msra.mxu0 0.0
        %2463 = vmatprep.subr.mxu0 0.0
        %2464 = vmatpush1.msra.mxu0 0.0
        %2465 = vmatprep.subr.mxu0 0.0
        %2466 = vmatpush1.msra.mxu0 0.0
        %2467 = vmatprep.subr.mxu0 0.0
        %2468 = vmatpush1.msra.mxu0 0.0
        %2469 = vmatprep.subr.mxu0 0.0
        %2470 = vmatpush1.msra.mxu0 0.0
        %2471 = vmatprep.mubr.f32.mxu0 0.0
        %2472 = vmatmul.mubr.f32.gmra.mrb[0].mxu0 %v2405
        %v2473 = vpop.f32.mrb[0].mxu0
        %v2474 = vadd.f32 %v365, %v2473
        %v2475 = vpop.f32.mrb[0].mxu0
        %2476 = vdwg.mxu0
        %v2477 = vsel %vm595, %v2258, -inf
        %2478 = vmax.xlane.f32.xlu0 %v2477
        %v2479 = vpop.xlane.xlu0 %2478
        %v2480 = vsel %vm595, %v2330, -inf
        %2481 = vmax.xlane.f32.xlu0 %v2480
        %v2482 = vpop.xlane.xlu0 %2481
        %v2483 = vsel %vm595, %v2402, -inf
        %2484 = vmax.xlane.f32.xlu0 %v2483
        %v2485 = vpop.xlane.xlu0 %2484
        %v2486 = vsel %vm595, %v2474, -inf
        %2487 = vmax.xlane.f32.xlu0 %v2486
        %v2488 = vpop.xlane.xlu0 %2487
        %v2489 = vsub.f32 %v2258, %v2479
        %v2490 = vsub.f32 %v2330, %v2482
        %v2491 = vsub.f32 %v2402, %v2485
        %v2492 = vsub.f32 %v2474, %v2488
        %v2493 = vmul.f32 %v2489, 1.442695
        %v2494 = vpow.pop %v2493
        %v2495 = vmul.f32 %v2490, 1.442695
        %v2496 = vpow.pop %v2495
        %v2497 = vmul.f32 %v2491, 1.442695
        %v2498 = vpow.pop %v2497
        %v2499 = vmul.f32 %v2492, 1.442695
        %v2500 = vpow.pop %v2499
        %v2501 = vsel %vm595, %v2494, 0.0
        %2502 = vadd.xlane.f32.xlu0 %v2501
        %v2503 = vpop.xlane.xlu0 %2502
        %v2504 = vsel %vm595, %v2496, 0.0
        %2505 = vadd.xlane.f32.xlu0 %v2504
        %v2506 = vpop.xlane.xlu0 %2505
        %v2507 = vsel %vm595, %v2498, 0.0
        %2508 = vadd.xlane.f32.xlu0 %v2507
        %v2509 = vpop.xlane.xlu0 %2508
        %v2510 = vsel %vm595, %v2500, 0.0
        %2511 = vadd.xlane.f32.xlu0 %v2510
        %v2512 = vpop.xlane.xlu0 %2511
        %v2513 = vrcp.pop %v2503
        %v2514 = vrcp.pop %v2506
        %v2515 = vrcp.pop %v2509
        %v2516 = vrcp.pop %v2512
        %v2517 = vmul.f32 %v2494, %v2513
        %v2518 = vmul.f32 %v2496, %v2514
        %v2519 = vmul.f32 %v2498, %v2515
        %v2520 = vmul.f32 %v2500, %v2516
        %2521 = vrot.lane.b32.xlu0 %v2039, 64
        %v2522 = vpop.permute.xlu0 %2521
        %2523 = vrot.lane.b32.xlu0 %v2044, 64
        %v2524 = vpop.permute.xlu0 %2523
        %2525 = vrot.lane.b32.xlu0 %v2046, 64
        %v2526 = vpop.permute.xlu0 %2525
        %2527 = vrot.lane.b32.xlu0 %v2048, 64
        %v2528 = vpop.permute.xlu0 %2527
        %2533 = vxpose.xlu0.b32.start [1/16] %v2522, 128
        %2534 = vxpose.xlu0.b32.cont [2/16] 0.0, 128
        %2535 = vxpose.xlu0.b32.cont [3/16] 0.0, 128
        %2536 = vxpose.xlu0.b32.cont [4/16] 0.0, 128
        %2537 = vxpose.xlu0.b32.cont [5/16] 0.0, 128
        %2538 = vxpose.xlu0.b32.cont [6/16] 0.0, 128
        %2539 = vxpose.xlu0.b32.cont [7/16] 0.0, 128
        %2540 = vxpose.xlu0.b32.cont [8/16] 0.0, 128
        %2541 = vxpose.xlu0.b32.cont [9/16] 0.0, 128
        %2542 = vxpose.xlu0.b32.cont [10/16] 0.0, 128
        %2543 = vxpose.xlu0.b32.cont [11/16] 0.0, 128
        %2544 = vxpose.xlu0.b32.cont [12/16] 0.0, 128
        %2545 = vxpose.xlu0.b32.cont [13/16] 0.0, 128
        %2546 = vxpose.xlu0.b32.cont [14/16] 0.0, 128
        %2547 = vxpose.xlu0.b32.cont [15/16] 0.0, 128
        %2548 = vxpose.xlu0.b32.end [16/16] 0.0, 128
        %v2549 = vpop.trf.xlu0
        %v2550 = vpop.trf.xlu0
        %v2551 = vpop.trf.xlu0
        %v2552 = vpop.trf.xlu0
        %v2553 = vpop.trf.xlu0
        %v2554 = vpop.trf.xlu0
        %v2555 = vpop.trf.xlu0
        %v2556 = vpop.trf.xlu0
        %v2557 = vpop.trf.xlu0
        %v2558 = vpop.trf.xlu0
        %v2559 = vpop.trf.xlu0
        %v2560 = vpop.trf.xlu0
        %v2561 = vpop.trf.xlu0
        %v2562 = vpop.trf.xlu0
        %v2563 = vpop.trf.xlu0
        %v2564 = vpop.trf.xlu0
        %2565 = vxpose.xlu0.b32.start [1/16] %v2524, 128
        %2566 = vxpose.xlu0.b32.cont [2/16] 0.0, 128
        %2567 = vxpose.xlu0.b32.cont [3/16] 0.0, 128
        %2568 = vxpose.xlu0.b32.cont [4/16] 0.0, 128
        %2569 = vxpose.xlu0.b32.cont [5/16] 0.0, 128
        %2570 = vxpose.xlu0.b32.cont [6/16] 0.0, 128
        %2571 = vxpose.xlu0.b32.cont [7/16] 0.0, 128
        %2572 = vxpose.xlu0.b32.cont [8/16] 0.0, 128
        %2573 = vxpose.xlu0.b32.cont [9/16] 0.0, 128
        %2574 = vxpose.xlu0.b32.cont [10/16] 0.0, 128
        %2575 = vxpose.xlu0.b32.cont [11/16] 0.0, 128
        %2576 = vxpose.xlu0.b32.cont [12/16] 0.0, 128
        %2577 = vxpose.xlu0.b32.cont [13/16] 0.0, 128
        %2578 = vxpose.xlu0.b32.cont [14/16] 0.0, 128
        %2579 = vxpose.xlu0.b32.cont [15/16] 0.0, 128
        %2580 = vxpose.xlu0.b32.end [16/16] 0.0, 128
        %v2581 = vpop.trf.xlu0
        %v2582 = vpop.trf.xlu0
        %v2583 = vpop.trf.xlu0
        %v2584 = vpop.trf.xlu0
        %v2585 = vpop.trf.xlu0
        %v2586 = vpop.trf.xlu0
        %v2587 = vpop.trf.xlu0
        %v2588 = vpop.trf.xlu0
        %v2589 = vpop.trf.xlu0
        %v2590 = vpop.trf.xlu0
        %v2591 = vpop.trf.xlu0
        %v2592 = vpop.trf.xlu0
        %v2593 = vpop.trf.xlu0
        %v2594 = vpop.trf.xlu0
        %v2595 = vpop.trf.xlu0
        %v2596 = vpop.trf.xlu0
        %2597 = vxpose.xlu0.b32.start [1/16] %v2526, 128
        %2598 = vxpose.xlu0.b32.cont [2/16] 0.0, 128
        %2599 = vxpose.xlu0.b32.cont [3/16] 0.0, 128
        %2600 = vxpose.xlu0.b32.cont [4/16] 0.0, 128
        %2601 = vxpose.xlu0.b32.cont [5/16] 0.0, 128
        %2602 = vxpose.xlu0.b32.cont [6/16] 0.0, 128
        %2603 = vxpose.xlu0.b32.cont [7/16] 0.0, 128
        %2604 = vxpose.xlu0.b32.cont [8/16] 0.0, 128
        %2605 = vxpose.xlu0.b32.cont [9/16] 0.0, 128
        %2606 = vxpose.xlu0.b32.cont [10/16] 0.0, 128
        %2607 = vxpose.xlu0.b32.cont [11/16] 0.0, 128
        %2608 = vxpose.xlu0.b32.cont [12/16] 0.0, 128
        %2609 = vxpose.xlu0.b32.cont [13/16] 0.0, 128
        %2610 = vxpose.xlu0.b32.cont [14/16] 0.0, 128
        %2611 = vxpose.xlu0.b32.cont [15/16] 0.0, 128
        %2612 = vxpose.xlu0.b32.end [16/16] 0.0, 128
        %v2613 = vpop.trf.xlu0
        %v2614 = vpop.trf.xlu0
        %v2615 = vpop.trf.xlu0
        %v2616 = vpop.trf.xlu0
        %v2617 = vpop.trf.xlu0
        %v2618 = vpop.trf.xlu0
        %v2619 = vpop.trf.xlu0
        %v2620 = vpop.trf.xlu0
        %v2621 = vpop.trf.xlu0
        %v2622 = vpop.trf.xlu0
        %v2623 = vpop.trf.xlu0
        %v2624 = vpop.trf.xlu0
        %v2625 = vpop.trf.xlu0
        %v2626 = vpop.trf.xlu0
        %v2627 = vpop.trf.xlu0
        %v2628 = vpop.trf.xlu0
        %2629 = vxpose.xlu0.b32.start [1/16] %v2528, 128
        %2630 = vxpose.xlu0.b32.cont [2/16] 0.0, 128
        %2631 = vxpose.xlu0.b32.cont [3/16] 0.0, 128
        %2632 = vxpose.xlu0.b32.cont [4/16] 0.0, 128
        %2633 = vxpose.xlu0.b32.cont [5/16] 0.0, 128
        %2634 = vxpose.xlu0.b32.cont [6/16] 0.0, 128
        %2635 = vxpose.xlu0.b32.cont [7/16] 0.0, 128
        %2636 = vxpose.xlu0.b32.cont [8/16] 0.0, 128
        %2637 = vxpose.xlu0.b32.cont [9/16] 0.0, 128
        %2638 = vxpose.xlu0.b32.cont [10/16] 0.0, 128
        %2639 = vxpose.xlu0.b32.cont [11/16] 0.0, 128
        %2640 = vxpose.xlu0.b32.cont [12/16] 0.0, 128
        %2641 = vxpose.xlu0.b32.cont [13/16] 0.0, 128
        %2642 = vxpose.xlu0.b32.cont [14/16] 0.0, 128
        %2643 = vxpose.xlu0.b32.cont [15/16] 0.0, 128
        %2644 = vxpose.xlu0.b32.end [16/16] 0.0, 128
        %v2645 = vpop.trf.xlu0
        %v2646 = vpop.trf.xlu0
        %v2647 = vpop.trf.xlu0
        %v2648 = vpop.trf.xlu0
        %v2649 = vpop.trf.xlu0
        %v2650 = vpop.trf.xlu0
        %v2651 = vpop.trf.xlu0
        %v2652 = vpop.trf.xlu0
        %v2653 = vpop.trf.xlu0
        %v2654 = vpop.trf.xlu0
        %v2655 = vpop.trf.xlu0
        %v2656 = vpop.trf.xlu0
        %v2657 = vpop.trf.xlu0
        %v2658 = vpop.trf.xlu0
        %v2659 = vpop.trf.xlu0
        %v2660 = vpop.trf.xlu0
        %v2662 = vsel %vm595, %v2549, 0
        %v2665 = vsel %vm595, %v2517, 0
        %2667 = vmatprep.subr.mxu0 0.0
        %2668 = vmatpush1.xpose.msra.mxu0 %v2665
        %2669 = vmatprep.subr.mxu0 0.0
        %2670 = vmatpush1.xpose.msra.mxu0 0.0
        %2671 = vmatprep.subr.mxu0 0.0
        %2672 = vmatpush1.xpose.msra.mxu0 0.0
        %2673 = vmatprep.subr.mxu0 0.0
        %2674 = vmatpush1.xpose.msra.mxu0 0.0
        %2675 = vmatprep.subr.mxu0 0.0
        %2676 = vmatpush1.xpose.msra.mxu0 0.0
        %2677 = vmatprep.subr.mxu0 0.0
        %2678 = vmatpush1.xpose.msra.mxu0 0.0
        %2679 = vmatprep.subr.mxu0 0.0
        %2680 = vmatpush1.xpose.msra.mxu0 0.0
        %2681 = vmatprep.subr.mxu0 0.0
        %2682 = vmatpush1.xpose.msra.mxu0 0.0
        %2683 = vmatprep.subr.mxu0 0.0
        %2684 = vmatpush1.xpose.msra.mxu0 0.0
        %2685 = vmatprep.subr.mxu0 0.0
        %2686 = vmatpush1.xpose.msra.mxu0 0.0
        %2687 = vmatprep.subr.mxu0 0.0
        %2688 = vmatpush1.xpose.msra.mxu0 0.0
        %2689 = vmatprep.subr.mxu0 0.0
        %2690 = vmatpush1.xpose.msra.mxu0 0.0
        %2691 = vmatprep.subr.mxu0 0.0
        %2692 = vmatpush1.xpose.msra.mxu0 0.0
        %2693 = vmatprep.subr.mxu0 0.0
        %2694 = vmatpush1.xpose.msra.mxu0 0.0
        %2695 = vmatprep.subr.mxu0 0.0
        %2696 = vmatpush1.xpose.msra.mxu0 0.0
        %2697 = vmatprep.subr.mxu0 0.0
        %2698 = vmatpush1.xpose.msra.mxu0 0.0
        %2699 = vmatprep.subr.mxu0 0.0
        %2700 = vmatpush1.xpose.msra.mxu0 0.0
        %2701 = vmatprep.subr.mxu0 0.0
        %2702 = vmatpush1.xpose.msra.mxu0 0.0
        %2703 = vmatprep.subr.mxu0 0.0
        %2704 = vmatpush1.xpose.msra.mxu0 0.0
        %2705 = vmatprep.subr.mxu0 0.0
        %2706 = vmatpush1.xpose.msra.mxu0 0.0
        %2707 = vmatprep.subr.mxu0 0.0
        %2708 = vmatpush1.xpose.msra.mxu0 0.0
        %2709 = vmatprep.subr.mxu0 0.0
        %2710 = vmatpush1.xpose.msra.mxu0 0.0
        %2711 = vmatprep.subr.mxu0 0.0
        %2712 = vmatpush1.xpose.msra.mxu0 0.0
        %2713 = vmatprep.subr.mxu0 0.0
        %2714 = vmatpush1.xpose.msra.mxu0 0.0
        %2715 = vmatprep.subr.mxu0 0.0
        %2716 = vmatpush1.xpose.msra.mxu0 0.0
        %2717 = vmatprep.subr.mxu0 0.0
        %2718 = vmatpush1.xpose.msra.mxu0 0.0
        %2719 = vmatprep.subr.mxu0 0.0
        %2720 = vmatpush1.xpose.msra.mxu0 0.0
        %2721 = vmatprep.subr.mxu0 0.0
        %2722 = vmatpush1.xpose.msra.mxu0 0.0
        %2723 = vmatprep.subr.mxu0 0.0
        %2724 = vmatpush1.xpose.msra.mxu0 0.0
        %2725 = vmatprep.subr.mxu0 0.0
        %2726 = vmatpush1.xpose.msra.mxu0 0.0
        %2727 = vmatprep.subr.mxu0 0.0
        %2728 = vmatpush1.xpose.msra.mxu0 0.0
        %2729 = vmatprep.subr.mxu0 0.0
        %2730 = vmatpush1.xpose.msra.mxu0 0.0
        %2731 = vmatprep.mubr.f32.mxu0 0.0
        %2732 = vmatmul.mubr.f32.gmra.mrb[0].mxu0 %v2662
        %v2733 = vpop.f32.mrb[0].mxu0
        %v2734 = vadd.f32 0.0, %v2733
        %v2735 = vpop.f32.mrb[0].mxu0
        %2736 = vdwg.mxu0
        %v2738 = vsel %vm595, %v2581, 0
        %v2741 = vsel %vm595, %v2518, 0
        %2743 = vmatprep.subr.mxu0 0.0
        %2744 = vmatpush1.xpose.msra.mxu0 %v2741
        %2745 = vmatprep.subr.mxu0 0.0
        %2746 = vmatpush1.xpose.msra.mxu0 0.0
        %2747 = vmatprep.subr.mxu0 0.0
        %2748 = vmatpush1.xpose.msra.mxu0 0.0
        %2749 = vmatprep.subr.mxu0 0.0
        %2750 = vmatpush1.xpose.msra.mxu0 0.0
        %2751 = vmatprep.subr.mxu0 0.0
        %2752 = vmatpush1.xpose.msra.mxu0 0.0
        %2753 = vmatprep.subr.mxu0 0.0
        %2754 = vmatpush1.xpose.msra.mxu0 0.0
        %2755 = vmatprep.subr.mxu0 0.0
        %2756 = vmatpush1.xpose.msra.mxu0 0.0
        %2757 = vmatprep.subr.mxu0 0.0
        %2758 = vmatpush1.xpose.msra.mxu0 0.0
        %2759 = vmatprep.subr.mxu0 0.0
        %2760 = vmatpush1.xpose.msra.mxu0 0.0
        %2761 = vmatprep.subr.mxu0 0.0
        %2762 = vmatpush1.xpose.msra.mxu0 0.0
        %2763 = vmatprep.subr.mxu0 0.0
        %2764 = vmatpush1.xpose.msra.mxu0 0.0
        %2765 = vmatprep.subr.mxu0 0.0
        %2766 = vmatpush1.xpose.msra.mxu0 0.0
        %2767 = vmatprep.subr.mxu0 0.0
        %2768 = vmatpush1.xpose.msra.mxu0 0.0
        %2769 = vmatprep.subr.mxu0 0.0
        %2770 = vmatpush1.xpose.msra.mxu0 0.0
        %2771 = vmatprep.subr.mxu0 0.0
        %2772 = vmatpush1.xpose.msra.mxu0 0.0
        %2773 = vmatprep.subr.mxu0 0.0
        %2774 = vmatpush1.xpose.msra.mxu0 0.0
        %2775 = vmatprep.subr.mxu0 0.0
        %2776 = vmatpush1.xpose.msra.mxu0 0.0
        %2777 = vmatprep.subr.mxu0 0.0
        %2778 = vmatpush1.xpose.msra.mxu0 0.0
        %2779 = vmatprep.subr.mxu0 0.0
        %2780 = vmatpush1.xpose.msra.mxu0 0.0
        %2781 = vmatprep.subr.mxu0 0.0
        %2782 = vmatpush1.xpose.msra.mxu0 0.0
        %2783 = vmatprep.subr.mxu0 0.0
        %2784 = vmatpush1.xpose.msra.mxu0 0.0
        %2785 = vmatprep.subr.mxu0 0.0
        %2786 = vmatpush1.xpose.msra.mxu0 0.0
        %2787 = vmatprep.subr.mxu0 0.0
        %2788 = vmatpush1.xpose.msra.mxu0 0.0
        %2789 = vmatprep.subr.mxu0 0.0
        %2790 = vmatpush1.xpose.msra.mxu0 0.0
        %2791 = vmatprep.subr.mxu0 0.0
        %2792 = vmatpush1.xpose.msra.mxu0 0.0
        %2793 = vmatprep.subr.mxu0 0.0
        %2794 = vmatpush1.xpose.msra.mxu0 0.0
        %2795 = vmatprep.subr.mxu0 0.0
        %2796 = vmatpush1.xpose.msra.mxu0 0.0
        %2797 = vmatprep.subr.mxu0 0.0
        %2798 = vmatpush1.xpose.msra.mxu0 0.0
        %2799 = vmatprep.subr.mxu0 0.0
        %2800 = vmatpush1.xpose.msra.mxu0 0.0
        %2801 = vmatprep.subr.mxu0 0.0
        %2802 = vmatpush1.xpose.msra.mxu0 0.0
        %2803 = vmatprep.subr.mxu0 0.0
        %2804 = vmatpush1.xpose.msra.mxu0 0.0
        %2805 = vmatprep.subr.mxu0 0.0
        %2806 = vmatpush1.xpose.msra.mxu0 0.0
        %2807 = vmatprep.mubr.f32.mxu0 0.0
        %2808 = vmatmul.mubr.f32.gmra.mrb[0].mxu0 %v2738
        %v2809 = vpop.f32.mrb[0].mxu0
        %v2810 = vadd.f32 0.0, %v2809
        %v2811 = vpop.f32.mrb[0].mxu0
        %2812 = vdwg.mxu0
        %v2814 = vsel %vm595, %v2613, 0
        %v2817 = vsel %vm595, %v2519, 0
        %2819 = vmatprep.subr.mxu0 0.0
        %2820 = vmatpush1.xpose.msra.mxu0 %v2817
        %2821 = vmatprep.subr.mxu0 0.0
        %2822 = vmatpush1.xpose.msra.mxu0 0.0
        %2823 = vmatprep.subr.mxu0 0.0
        %2824 = vmatpush1.xpose.msra.mxu0 0.0
        %2825 = vmatprep.subr.mxu0 0.0
        %2826 = vmatpush1.xpose.msra.mxu0 0.0
        %2827 = vmatprep.subr.mxu0 0.0
        %2828 = vmatpush1.xpose.msra.mxu0 0.0
        %2829 = vmatprep.subr.mxu0 0.0
        %2830 = vmatpush1.xpose.msra.mxu0 0.0
        %2831 = vmatprep.subr.mxu0 0.0
        %2832 = vmatpush1.xpose.msra.mxu0 0.0
        %2833 = vmatprep.subr.mxu0 0.0
        %2834 = vmatpush1.xpose.msra.mxu0 0.0
        %2835 = vmatprep.subr.mxu0 0.0
        %2836 = vmatpush1.xpose.msra.mxu0 0.0
        %2837 = vmatprep.subr.mxu0 0.0
        %2838 = vmatpush1.xpose.msra.mxu0 0.0
        %2839 = vmatprep.subr.mxu0 0.0
        %2840 = vmatpush1.xpose.msra.mxu0 0.0
        %2841 = vmatprep.subr.mxu0 0.0
        %2842 = vmatpush1.xpose.msra.mxu0 0.0
        %2843 = vmatprep.subr.mxu0 0.0
        %2844 = vmatpush1.xpose.msra.mxu0 0.0
        %2845 = vmatprep.subr.mxu0 0.0
        %2846 = vmatpush1.xpose.msra.mxu0 0.0
        %2847 = vmatprep.subr.mxu0 0.0
        %2848 = vmatpush1.xpose.msra.mxu0 0.0
        %2849 = vmatprep.subr.mxu0 0.0
        %2850 = vmatpush1.xpose.msra.mxu0 0.0
        %2851 = vmatprep.subr.mxu0 0.0
        %2852 = vmatpush1.xpose.msra.mxu0 0.0
        %2853 = vmatprep.subr.mxu0 0.0
        %2854 = vmatpush1.xpose.msra.mxu0 0.0
        %2855 = vmatprep.subr.mxu0 0.0
        %2856 = vmatpush1.xpose.msra.mxu0 0.0
        %2857 = vmatprep.subr.mxu0 0.0
        %2858 = vmatpush1.xpose.msra.mxu0 0.0
        %2859 = vmatprep.subr.mxu0 0.0
        %2860 = vmatpush1.xpose.msra.mxu0 0.0
        %2861 = vmatprep.subr.mxu0 0.0
        %2862 = vmatpush1.xpose.msra.mxu0 0.0
        %2863 = vmatprep.subr.mxu0 0.0
        %2864 = vmatpush1.xpose.msra.mxu0 0.0
        %2865 = vmatprep.subr.mxu0 0.0
        %2866 = vmatpush1.xpose.msra.mxu0 0.0
        %2867 = vmatprep.subr.mxu0 0.0
        %2868 = vmatpush1.xpose.msra.mxu0 0.0
        %2869 = vmatprep.subr.mxu0 0.0
        %2870 = vmatpush1.xpose.msra.mxu0 0.0
        %2871 = vmatprep.subr.mxu0 0.0
        %2872 = vmatpush1.xpose.msra.mxu0 0.0
        %2873 = vmatprep.subr.mxu0 0.0
        %2874 = vmatpush1.xpose.msra.mxu0 0.0
        %2875 = vmatprep.subr.mxu0 0.0
        %2876 = vmatpush1.xpose.msra.mxu0 0.0
        %2877 = vmatprep.subr.mxu0 0.0
        %2878 = vmatpush1.xpose.msra.mxu0 0.0
        %2879 = vmatprep.subr.mxu0 0.0
        %2880 = vmatpush1.xpose.msra.mxu0 0.0
        %2881 = vmatprep.subr.mxu0 0.0
        %2882 = vmatpush1.xpose.msra.mxu0 0.0
        %2883 = vmatprep.mubr.f32.mxu0 0.0
        %2884 = vmatmul.mubr.f32.gmra.mrb[0].mxu0 %v2814
        %v2885 = vpop.f32.mrb[0].mxu0
        %v2886 = vadd.f32 0.0, %v2885
        %v2887 = vpop.f32.mrb[0].mxu0
        %2888 = vdwg.mxu0
        %v2890 = vsel %vm595, %v2645, 0
        %v2893 = vsel %vm595, %v2520, 0
        %2895 = vmatprep.subr.mxu0 0.0
        %2896 = vmatpush1.xpose.msra.mxu0 %v2893
        %2897 = vmatprep.subr.mxu0 0.0
        %2898 = vmatpush1.xpose.msra.mxu0 0.0
        %2899 = vmatprep.subr.mxu0 0.0
        %2900 = vmatpush1.xpose.msra.mxu0 0.0
        %2901 = vmatprep.subr.mxu0 0.0
        %2902 = vmatpush1.xpose.msra.mxu0 0.0
        %2903 = vmatprep.subr.mxu0 0.0
        %2904 = vmatpush1.xpose.msra.mxu0 0.0
        %2905 = vmatprep.subr.mxu0 0.0
        %2906 = vmatpush1.xpose.msra.mxu0 0.0
        %2907 = vmatprep.subr.mxu0 0.0
        %2908 = vmatpush1.xpose.msra.mxu0 0.0
        %2909 = vmatprep.subr.mxu0 0.0
        %2910 = vmatpush1.xpose.msra.mxu0 0.0
        %2911 = vmatprep.subr.mxu0 0.0
        %2912 = vmatpush1.xpose.msra.mxu0 0.0
        %2913 = vmatprep.subr.mxu0 0.0
        %2914 = vmatpush1.xpose.msra.mxu0 0.0
        %2915 = vmatprep.subr.mxu0 0.0
        %2916 = vmatpush1.xpose.msra.mxu0 0.0
        %2917 = vmatprep.subr.mxu0 0.0
        %2918 = vmatpush1.xpose.msra.mxu0 0.0
        %2919 = vmatprep.subr.mxu0 0.0
        %2920 = vmatpush1.xpose.msra.mxu0 0.0
        %2921 = vmatprep.subr.mxu0 0.0
        %2922 = vmatpush1.xpose.msra.mxu0 0.0
        %2923 = vmatprep.subr.mxu0 0.0
        %2924 = vmatpush1.xpose.msra.mxu0 0.0
        %2925 = vmatprep.subr.mxu0 0.0
        %2926 = vmatpush1.xpose.msra.mxu0 0.0
        %2927 = vmatprep.subr.mxu0 0.0
        %2928 = vmatpush1.xpose.msra.mxu0 0.0
        %2929 = vmatprep.subr.mxu0 0.0
        %2930 = vmatpush1.xpose.msra.mxu0 0.0
        %2931 = vmatprep.subr.mxu0 0.0
        %2932 = vmatpush1.xpose.msra.mxu0 0.0
        %2933 = vmatprep.subr.mxu0 0.0
        %2934 = vmatpush1.xpose.msra.mxu0 0.0
        %2935 = vmatprep.subr.mxu0 0.0
        %2936 = vmatpush1.xpose.msra.mxu0 0.0
        %2937 = vmatprep.subr.mxu0 0.0
        %2938 = vmatpush1.xpose.msra.mxu0 0.0
        %2939 = vmatprep.subr.mxu0 0.0
        %2940 = vmatpush1.xpose.msra.mxu0 0.0
        %2941 = vmatprep.subr.mxu0 0.0
        %2942 = vmatpush1.xpose.msra.mxu0 0.0
        %2943 = vmatprep.subr.mxu0 0.0
        %2944 = vmatpush1.xpose.msra.mxu0 0.0
        %2945 = vmatprep.subr.mxu0 0.0
        %2946 = vmatpush1.xpose.msra.mxu0 0.0
        %2947 = vmatprep.subr.mxu0 0.0
        %2948 = vmatpush1.xpose.msra.mxu0 0.0
        %2949 = vmatprep.subr.mxu0 0.0
        %2950 = vmatpush1.xpose.msra.mxu0 0.0
        %2951 = vmatprep.subr.mxu0 0.0
        %2952 = vmatpush1.xpose.msra.mxu0 0.0
        %2953 = vmatprep.subr.mxu0 0.0
        %2954 = vmatpush1.xpose.msra.mxu0 0.0
        %2955 = vmatprep.subr.mxu0 0.0
        %2956 = vmatpush1.xpose.msra.mxu0 0.0
        %2957 = vmatprep.subr.mxu0 0.0
        %2958 = vmatpush1.xpose.msra.mxu0 0.0
        %2959 = vmatprep.mubr.f32.mxu0 0.0
        %2960 = vmatmul.mubr.f32.gmra.mrb[0].mxu0 %v2890
        %v2961 = vpop.f32.mrb[0].mxu0
        %v2962 = vadd.f32 0.0, %v2961
        %v2963 = vpop.f32.mrb[0].mxu0
        %2964 = vdwg.mxu0
        %2965 = vxpose.xlu0.b32.start [1/16] %v2734, 128
        %2966 = vxpose.xlu0.b32.cont [2/16] 0.0, 128
        %2967 = vxpose.xlu0.b32.cont [3/16] 0.0, 128
        %2968 = vxpose.xlu0.b32.cont [4/16] 0.0, 128
        %2969 = vxpose.xlu0.b32.cont [5/16] 0.0, 128
        %2970 = vxpose.xlu0.b32.cont [6/16] 0.0, 128
        %2971 = vxpose.xlu0.b32.cont [7/16] 0.0, 128
        %2972 = vxpose.xlu0.b32.cont [8/16] 0.0, 128
        %2973 = vxpose.xlu0.b32.cont [9/16] 0.0, 128
        %2974 = vxpose.xlu0.b32.cont [10/16] 0.0, 128
        %2975 = vxpose.xlu0.b32.cont [11/16] 0.0, 128
        %2976 = vxpose.xlu0.b32.cont [12/16] 0.0, 128
        %2977 = vxpose.xlu0.b32.cont [13/16] 0.0, 128
        %2978 = vxpose.xlu0.b32.cont [14/16] 0.0, 128
        %2979 = vxpose.xlu0.b32.cont [15/16] 0.0, 128
        %2980 = vxpose.xlu0.b32.end [16/16] 0.0, 128
        %v2981 = vpop.trf.xlu0
        %v2982 = vpop.trf.xlu0
        %v2983 = vpop.trf.xlu0
        %v2984 = vpop.trf.xlu0
        %v2985 = vpop.trf.xlu0
        %v2986 = vpop.trf.xlu0
        %v2987 = vpop.trf.xlu0
        %v2988 = vpop.trf.xlu0
        %v2989 = vpop.trf.xlu0
        %v2990 = vpop.trf.xlu0
        %v2991 = vpop.trf.xlu0
        %v2992 = vpop.trf.xlu0
        %v2993 = vpop.trf.xlu0
        %v2994 = vpop.trf.xlu0
        %v2995 = vpop.trf.xlu0
        %v2996 = vpop.trf.xlu0
        %2997 = vxpose.xlu0.b32.start [1/16] %v2810, 128
        %2998 = vxpose.xlu0.b32.cont [2/16] 0.0, 128
        %2999 = vxpose.xlu0.b32.cont [3/16] 0.0, 128
        %3000 = vxpose.xlu0.b32.cont [4/16] 0.0, 128
        %3001 = vxpose.xlu0.b32.cont [5/16] 0.0, 128
        %3002 = vxpose.xlu0.b32.cont [6/16] 0.0, 128
        %3003 = vxpose.xlu0.b32.cont [7/16] 0.0, 128
        %3004 = vxpose.xlu0.b32.cont [8/16] 0.0, 128
        %3005 = vxpose.xlu0.b32.cont [9/16] 0.0, 128
        %3006 = vxpose.xlu0.b32.cont [10/16] 0.0, 128
        %3007 = vxpose.xlu0.b32.cont [11/16] 0.0, 128
        %3008 = vxpose.xlu0.b32.cont [12/16] 0.0, 128
        %3009 = vxpose.xlu0.b32.cont [13/16] 0.0, 128
        %3010 = vxpose.xlu0.b32.cont [14/16] 0.0, 128
        %3011 = vxpose.xlu0.b32.cont [15/16] 0.0, 128
        %3012 = vxpose.xlu0.b32.end [16/16] 0.0, 128
        %v3013 = vpop.trf.xlu0
        %v3014 = vpop.trf.xlu0
        %v3015 = vpop.trf.xlu0
        %v3016 = vpop.trf.xlu0
        %v3017 = vpop.trf.xlu0
        %v3018 = vpop.trf.xlu0
        %v3019 = vpop.trf.xlu0
        %v3020 = vpop.trf.xlu0
        %v3021 = vpop.trf.xlu0
        %v3022 = vpop.trf.xlu0
        %v3023 = vpop.trf.xlu0
        %v3024 = vpop.trf.xlu0
        %v3025 = vpop.trf.xlu0
        %v3026 = vpop.trf.xlu0
        %v3027 = vpop.trf.xlu0
        %v3028 = vpop.trf.xlu0
        %3029 = vxpose.xlu0.b32.start [1/16] %v2886, 128
        %3030 = vxpose.xlu0.b32.cont [2/16] 0.0, 128
        %3031 = vxpose.xlu0.b32.cont [3/16] 0.0, 128
        %3032 = vxpose.xlu0.b32.cont [4/16] 0.0, 128
        %3033 = vxpose.xlu0.b32.cont [5/16] 0.0, 128
        %3034 = vxpose.xlu0.b32.cont [6/16] 0.0, 128
        %3035 = vxpose.xlu0.b32.cont [7/16] 0.0, 128
        %3036 = vxpose.xlu0.b32.cont [8/16] 0.0, 128
        %3037 = vxpose.xlu0.b32.cont [9/16] 0.0, 128
        %3038 = vxpose.xlu0.b32.cont [10/16] 0.0, 128
        %3039 = vxpose.xlu0.b32.cont [11/16] 0.0, 128
        %3040 = vxpose.xlu0.b32.cont [12/16] 0.0, 128
        %3041 = vxpose.xlu0.b32.cont [13/16] 0.0, 128
        %3042 = vxpose.xlu0.b32.cont [14/16] 0.0, 128
        %3043 = vxpose.xlu0.b32.cont [15/16] 0.0, 128
        %3044 = vxpose.xlu0.b32.end [16/16] 0.0, 128
        %v3045 = vpop.trf.xlu0
        %v3046 = vpop.trf.xlu0
        %v3047 = vpop.trf.xlu0
        %v3048 = vpop.trf.xlu0
        %v3049 = vpop.trf.xlu0
        %v3050 = vpop.trf.xlu0
        %v3051 = vpop.trf.xlu0
        %v3052 = vpop.trf.xlu0
        %v3053 = vpop.trf.xlu0
        %v3054 = vpop.trf.xlu0
        %v3055 = vpop.trf.xlu0
        %v3056 = vpop.trf.xlu0
        %v3057 = vpop.trf.xlu0
        %v3058 = vpop.trf.xlu0
        %v3059 = vpop.trf.xlu0
        %v3060 = vpop.trf.xlu0
        %3061 = vxpose.xlu0.b32.start [1/16] %v2962, 128
        %3062 = vxpose.xlu0.b32.cont [2/16] 0.0, 128
        %3063 = vxpose.xlu0.b32.cont [3/16] 0.0, 128
        %3064 = vxpose.xlu0.b32.cont [4/16] 0.0, 128
        %3065 = vxpose.xlu0.b32.cont [5/16] 0.0, 128
        %3066 = vxpose.xlu0.b32.cont [6/16] 0.0, 128
        %3067 = vxpose.xlu0.b32.cont [7/16] 0.0, 128
        %3068 = vxpose.xlu0.b32.cont [8/16] 0.0, 128
        %3069 = vxpose.xlu0.b32.cont [9/16] 0.0, 128
        %3070 = vxpose.xlu0.b32.cont [10/16] 0.0, 128
        %3071 = vxpose.xlu0.b32.cont [11/16] 0.0, 128
        %3072 = vxpose.xlu0.b32.cont [12/16] 0.0, 128
        %3073 = vxpose.xlu0.b32.cont [13/16] 0.0, 128
        %3074 = vxpose.xlu0.b32.cont [14/16] 0.0, 128
        %3075 = vxpose.xlu0.b32.cont [15/16] 0.0, 128
        %3076 = vxpose.xlu0.b32.end [16/16] 0.0, 128
        %v3077 = vpop.trf.xlu0
        %v3078 = vpop.trf.xlu0
        %v3079 = vpop.trf.xlu0
        %v3080 = vpop.trf.xlu0
        %v3081 = vpop.trf.xlu0
        %v3082 = vpop.trf.xlu0
        %v3083 = vpop.trf.xlu0
        %v3084 = vpop.trf.xlu0
        %v3085 = vpop.trf.xlu0
        %v3086 = vpop.trf.xlu0
        %v3087 = vpop.trf.xlu0
        %v3088 = vpop.trf.xlu0
        %v3089 = vpop.trf.xlu0
        %v3090 = vpop.trf.xlu0
        %v3091 = vpop.trf.xlu0
        %v3092 = vpop.trf.xlu0
        %v3093 = vcombine.low %v2981, %v3045
        %v3094 = vcombine.high %v2981, %v3045
        %v3096 = vunpack.c.l.s4 1983009808
        %v3097 = vunpack.c.0.s8 %v3096
        %v3098 = vlaneseq
        %v3099 = vshrl.u32 %v3098, 7
        %v3100 = vsub.s32 %v3097, %v3099
        %v3101 = vrot.slane %v3093, %v3100
        %v3103 = vunpack.c.l.s4 1983009808
        %v3104 = vunpack.c.0.s8 %v3103
        %v3105 = vlaneseq
        %v3106 = vshrl.u32 %v3105, 7
        %v3107 = vsub.s32 %v3104, %v3106
        %v3108 = vrot.slane %v3094, %v3107
        %v3109 = vcombine.low %v3013, %v3077
        %v3110 = vcombine.high %v3013, %v3077
        %v3112 = vunpack.c.l.s4 1983009808
        %v3113 = vunpack.c.0.s8 %v3112
        %v3114 = vlaneseq
        %v3115 = vshrl.u32 %v3114, 7
        %v3116 = vsub.s32 %v3113, %v3115
        %v3117 = vrot.slane %v3109, %v3116
        %v3119 = vunpack.c.l.s4 1983009808
        %v3120 = vunpack.c.0.s8 %v3119
        %v3121 = vlaneseq
        %v3122 = vshrl.u32 %v3121, 7
        %v3123 = vsub.s32 %v3120, %v3122
        %v3124 = vrot.slane %v3110, %v3123
        %v3125 = vcombine.low %v3101, %v3117
        %v3126 = vcombine.high %v3101, %v3117
        %v3128 = vunpack.c.l.s4 1934713408
        %v3129 = vunpack.c.0.s8 %v3128
        %v3130 = vlaneseq
        %v3131 = vshrl.u32 %v3130, 7
        %v3132 = vsub.s32 %v3129, %v3131
        %v3133 = vrot.slane %v3125, %v3132
        %v3135 = vunpack.c.l.s4 1934713408
        %v3136 = vunpack.c.0.s8 %v3135
        %v3137 = vlaneseq
        %v3138 = vshrl.u32 %v3137, 7
        %v3139 = vsub.s32 %v3136, %v3138
        %v3140 = vrot.slane %v3126, %v3139
        %v3141 = vcombine.low %v3108, %v3124
        %v3142 = vcombine.high %v3108, %v3124
        %v3144 = vunpack.c.l.s4 1934713408
        %v3145 = vunpack.c.0.s8 %v3144
        %v3146 = vlaneseq
        %v3147 = vshrl.u32 %v3146, 7
        %v3148 = vsub.s32 %v3145, %v3147
        %v3149 = vrot.slane %v3141, %v3148
        %v3151 = vunpack.c.l.s4 1934713408
        %v3152 = vunpack.c.0.s8 %v3151
        %v3153 = vlaneseq
        %v3154 = vshrl.u32 %v3153, 7
        %v3155 = vsub.s32 %v3152, %v3154
        %v3156 = vrot.slane %v3142, %v3155
        %v3157 = vcombine.high %v3133, 0.0
        %v3158 = vcombine.high %v3140, 0.0
        %v3159 = vcombine.high %v3149, 0.0
        %v3160 = vcombine.high %v3156, 0.0
        %v3161 = vcombine.low %v3133, %v3140
        %v3163 = vunpack.c.l.s4 1983009808
        %v3164 = vunpack.c.0.s8 %v3163
        %v3165 = vlaneseq
        %v3166 = vshrl.u32 %v3165, 7
        %v3167 = vsub.s32 %v3164, %v3166
        %v3168 = vrot.slane %v3161, %v3167
        %v3169 = vcombine.low %v3157, %v3158
        %v3171 = vunpack.c.l.s4 1983009808
        %v3172 = vunpack.c.0.s8 %v3171
        %v3173 = vlaneseq
        %v3174 = vshrl.u32 %v3173, 7
        %v3175 = vsub.s32 %v3172, %v3174
        %v3176 = vrot.slane %v3169, %v3175
        %v3177 = vcombine.low %v3149, %v3156
        %v3179 = vunpack.c.l.s4 1983009808
        %v3180 = vunpack.c.0.s8 %v3179
        %v3181 = vlaneseq
        %v3182 = vshrl.u32 %v3181, 7
        %v3183 = vsub.s32 %v3180, %v3182
        %v3184 = vrot.slane %v3177, %v3183
        %v3185 = vcombine.low %v3159, %v3160
        %v3187 = vunpack.c.l.s4 1983009808
        %v3188 = vunpack.c.0.s8 %v3187
        %v3189 = vlaneseq
        %v3190 = vshrl.u32 %v3189, 7
        %v3191 = vsub.s32 %v3188, %v3190
        %v3192 = vrot.slane %v3185, %v3191
        %v3193 = vcombine.low %v3168, %v3176
        %v3194 = vcombine.high %v3168, %v3176
        %v3196 = vunpack.c.l.s4 1934713408
        %v3197 = vunpack.c.0.s8 %v3196
        %v3198 = vlaneseq
        %v3199 = vshrl.u32 %v3198, 7
        %v3200 = vsub.s32 %v3197, %v3199
        %v3201 = vrot.slane %v3193, %v3200
        %v3203 = vunpack.c.l.s4 1934713408
        %v3204 = vunpack.c.0.s8 %v3203
        %v3205 = vlaneseq
        %v3206 = vshrl.u32 %v3205, 7
        %v3207 = vsub.s32 %v3204, %v3206
        %v3208 = vrot.slane %v3194, %v3207
        %v3209 = vcombine.low %v3184, %v3192
        %v3210 = vcombine.high %v3184, %v3192
        %v3212 = vunpack.c.l.s4 1934713408
        %v3213 = vunpack.c.0.s8 %v3212
        %v3214 = vlaneseq
        %v3215 = vshrl.u32 %v3214, 7
        %v3216 = vsub.s32 %v3213, %v3215
        %v3217 = vrot.slane %v3209, %v3216
        %v3219 = vunpack.c.l.s4 1934713408
        %v3220 = vunpack.c.0.s8 %v3219
        %v3221 = vlaneseq
        %v3222 = vshrl.u32 %v3221, 7
        %v3223 = vsub.s32 %v3220, %v3222
        %v3224 = vrot.slane %v3210, %v3223
        %v3225 = vcombine.low %v3201, %v3217
        %v3226 = vcombine.high %v3201, %v3217
        %v3227 = vcombine.low %v3208, %v3224
        %v3228 = vcombine.high %v3208, %v3224
        %3230 = vrot.lane.b32.xlu0 %v3226, 8
        %v3231 = vpop.permute.xlu0 %3230
        %3234 = vrot.lane.b32.xlu0 %v3227, 16
        %v3235 = vpop.permute.xlu0 %3234
        %3238 = vrot.lane.b32.xlu0 %v3228, 24
        %v3239 = vpop.permute.xlu0 %3238
        %v3241 = vsel %vm595, %v3225, %v3231
        %v3242 = vsel %vm1649, %v3241, %v3235
        %v3243 = vsel %vm1651, %v3242, %v3239
        %s3244 = scalar_lea.vmem %s3, 32
        %v3245 = vld [vmem:[%s3244] sm:$0xff]
        %v3246 = vld [vmem:[%s3244 + $0x8] sm:$0xff]
        %v3247 = vld [vmem:[%s3244 + $0x10] sm:$0xff]
        %v3248 = vld [vmem:[%s3244 + $0x18] sm:$0xff]
        %v3249 = vlaneseq
        %v3250 = vshrl.u32 %v3249, 7
        %v3251 = vsub.s32 1, %v3250
        %v3252 = vrot.slane %v1959, %v3251
        %v3254 = vsel %vm335, %v3243, 0
        %3256 = vmatprep.subr.mxu0 0.0
        %3257 = vmatpush1.msra.mxu0 %v3245
        %3258 = vmatprep.subr.mxu0 0.0
        %3259 = vmatpush1.msra.mxu0 %v3246
        %3260 = vmatprep.subr.mxu0 0.0
        %3261 = vmatpush1.msra.mxu0 %v3247
        %3262 = vmatprep.subr.mxu0 0.0
        %3263 = vmatpush1.msra.mxu0 %v3248
        %3264 = vmatprep.subr.mxu0 0.0
        %3265 = vmatpush1.msra.mxu0 0.0
        %3266 = vmatprep.subr.mxu0 0.0
        %3267 = vmatpush1.msra.mxu0 0.0
        %3268 = vmatprep.subr.mxu0 0.0
        %3269 = vmatpush1.msra.mxu0 0.0
        %3270 = vmatprep.subr.mxu0 0.0
        %3271 = vmatpush1.msra.mxu0 0.0
        %3272 = vmatprep.subr.mxu0 0.0
        %3273 = vmatpush1.msra.mxu0 0.0
        %3274 = vmatprep.subr.mxu0 0.0
        %3275 = vmatpush1.msra.mxu0 0.0
        %3276 = vmatprep.subr.mxu0 0.0
        %3277 = vmatpush1.msra.mxu0 0.0
        %3278 = vmatprep.subr.mxu0 0.0
        %3279 = vmatpush1.msra.mxu0 0.0
        %3280 = vmatprep.subr.mxu0 0.0
        %3281 = vmatpush1.msra.mxu0 0.0
        %3282 = vmatprep.subr.mxu0 0.0
        %3283 = vmatpush1.msra.mxu0 0.0
        %3284 = vmatprep.subr.mxu0 0.0
        %3285 = vmatpush1.msra.mxu0 0.0
        %3286 = vmatprep.subr.mxu0 0.0
        %3287 = vmatpush1.msra.mxu0 0.0
        %3288 = vmatprep.subr.mxu0 0.0
        %3289 = vmatpush1.msra.mxu0 0.0
        %3290 = vmatprep.subr.mxu0 0.0
        %3291 = vmatpush1.msra.mxu0 0.0
        %3292 = vmatprep.subr.mxu0 0.0
        %3293 = vmatpush1.msra.mxu0 0.0
        %3294 = vmatprep.subr.mxu0 0.0
        %3295 = vmatpush1.msra.mxu0 0.0
        %3296 = vmatprep.subr.mxu0 0.0
        %3297 = vmatpush1.msra.mxu0 0.0
        %3298 = vmatprep.subr.mxu0 0.0
        %3299 = vmatpush1.msra.mxu0 0.0
        %3300 = vmatprep.subr.mxu0 0.0
        %3301 = vmatpush1.msra.mxu0 0.0
        %3302 = vmatprep.subr.mxu0 0.0
        %3303 = vmatpush1.msra.mxu0 0.0
        %3304 = vmatprep.subr.mxu0 0.0
        %3305 = vmatpush1.msra.mxu0 0.0
        %3306 = vmatprep.subr.mxu0 0.0
        %3307 = vmatpush1.msra.mxu0 0.0
        %3308 = vmatprep.subr.mxu0 0.0
        %3309 = vmatpush1.msra.mxu0 0.0
        %3310 = vmatprep.subr.mxu0 0.0
        %3311 = vmatpush1.msra.mxu0 0.0
        %3312 = vmatprep.subr.mxu0 0.0
        %3313 = vmatpush1.msra.mxu0 0.0
        %3314 = vmatprep.subr.mxu0 0.0
        %3315 = vmatpush1.msra.mxu0 0.0
        %3316 = vmatprep.subr.mxu0 0.0
        %3317 = vmatpush1.msra.mxu0 0.0
        %3318 = vmatprep.subr.mxu0 0.0
        %3319 = vmatpush1.msra.mxu0 0.0
        %3320 = vmatprep.mubr.f32.mxu0 0.0
        %3321 = vmatmul.mubr.f32.gmra.mrb[0].mxu0 %v3254
        %v3322 = vpop.f32.mrb[0].mxu0
        %v3323 = vadd.f32 %v3252, %v3322
        %v3324 = vpop.f32.mrb[0].mxu0
        %3325 = vdwg.mxu0
        %v3326 = vadd.f32 %v3323, %v1957
        %v3327 = vsel %vm335, %v3326, 0.0
        %3328 = vadd.xlane.f32.xlu0 %v3327
        %v3329 = vpop.xlane.xlu0 %3328
        %v3330 = vmul.f32 %v3329, %v339
        %v3331 = vsub.f32 %v3326, %v3330
        %v3332 = vmul.f32 %v3331, %v3331
        %v3333 = vsel %vm335, %v3332, 0.0
        %3334 = vadd.xlane.f32.xlu0 %v3333
        %v3335 = vpop.xlane.xlu0 %3334
        %v3336 = vmul.f32 %v3335, %v339
        %v3337 = vadd.f32 %v3336, 1e-12
        %v3338 = vrsqrt.pop %v3337
        %v3339 = vmul.f32 %v3331, %v3338
        %v3340 = vlaneseq
        %v3341 = vshrl.u32 %v3340, 7
        %v3342 = vsub.s32 2, %v3341
        %v3343 = vrot.slane %v1959, %v3342
        %v3344 = vmul.f32 %v3339, %v3343
        %v3345 = vlaneseq
        %v3346 = vshrl.u32 %v3345, 7
        %v3347 = vsub.s32 3, %v3346
        %v3348 = vrot.slane %v1959, %v3347
        %v3349 = vadd.f32 %v3344, %v3348
        %s3350 = scalar_lea.vmem %s4, 32
        %v3351 = vld [vmem:[%s3350] sm:$0xff]
        %v3352 = vld [vmem:[%s3350 + $0x8] sm:$0xff]
        %v3353 = vld [vmem:[%s3350 + $0x10] sm:$0xff]
        %v3354 = vld [vmem:[%s3350 + $0x18] sm:$0xff]
        %v3355 = vlaneseq
        %v3356 = vshrl.u32 %v3355, 7
        %v3357 = vsub.s32 4, %v3356
        %v3358 = vrot.slane %v1959, %v3357
        %v3360 = vsel %vm335, %v3349, 0
        %3362 = vmatprep.subr.mxu0 0.0
        %3363 = vmatpush1.msra.mxu0 %v3351
        %3364 = vmatprep.subr.mxu0 0.0
        %3365 = vmatpush1.msra.mxu0 %v3352
        %3366 = vmatprep.subr.mxu0 0.0
        %3367 = vmatpush1.msra.mxu0 %v3353
        %3368 = vmatprep.subr.mxu0 0.0
        %3369 = vmatpush1.msra.mxu0 %v3354
        %3370 = vmatprep.subr.mxu0 0.0
        %3371 = vmatpush1.msra.mxu0 0.0
        %3372 = vmatprep.subr.mxu0 0.0
        %3373 = vmatpush1.msra.mxu0 0.0
        %3374 = vmatprep.subr.mxu0 0.0
        %3375 = vmatpush1.msra.mxu0 0.0
        %3376 = vmatprep.subr.mxu0 0.0
        %3377 = vmatpush1.msra.mxu0 0.0
        %3378 = vmatprep.subr.mxu0 0.0
        %3379 = vmatpush1.msra.mxu0 0.0
        %3380 = vmatprep.subr.mxu0 0.0
        %3381 = vmatpush1.msra.mxu0 0.0
        %3382 = vmatprep.subr.mxu0 0.0
        %3383 = vmatpush1.msra.mxu0 0.0
        %3384 = vmatprep.subr.mxu0 0.0
        %3385 = vmatpush1.msra.mxu0 0.0
        %3386 = vmatprep.subr.mxu0 0.0
        %3387 = vmatpush1.msra.mxu0 0.0
        %3388 = vmatprep.subr.mxu0 0.0
        %3389 = vmatpush1.msra.mxu0 0.0
        %3390 = vmatprep.subr.mxu0 0.0
        %3391 = vmatpush1.msra.mxu0 0.0
        %3392 = vmatprep.subr.mxu0 0.0
        %3393 = vmatpush1.msra.mxu0 0.0
        %3394 = vmatprep.subr.mxu0 0.0
        %3395 = vmatpush1.msra.mxu0 0.0
        %3396 = vmatprep.subr.mxu0 0.0
        %3397 = vmatpush1.msra.mxu0 0.0
        %3398 = vmatprep.subr.mxu0 0.0
        %3399 = vmatpush1.msra.mxu0 0.0
        %3400 = vmatprep.subr.mxu0 0.0
        %3401 = vmatpush1.msra.mxu0 0.0
        %3402 = vmatprep.subr.mxu0 0.0
        %3403 = vmatpush1.msra.mxu0 0.0
        %3404 = vmatprep.subr.mxu0 0.0
        %3405 = vmatpush1.msra.mxu0 0.0
        %3406 = vmatprep.subr.mxu0 0.0
        %3407 = vmatpush1.msra.mxu0 0.0
        %3408 = vmatprep.subr.mxu0 0.0
        %3409 = vmatpush1.msra.mxu0 0.0
        %3410 = vmatprep.subr.mxu0 0.0
        %3411 = vmatpush1.msra.mxu0 0.0
        %3412 = vmatprep.subr.mxu0 0.0
        %3413 = vmatpush1.msra.mxu0 0.0
        %3414 = vmatprep.subr.mxu0 0.0
        %3415 = vmatpush1.msra.mxu0 0.0
        %3416 = vmatprep.subr.mxu0 0.0
        %3417 = vmatpush1.msra.mxu0 0.0
        %3418 = vmatprep.subr.mxu0 0.0
        %3419 = vmatpush1.msra.mxu0 0.0
        %3420 = vmatprep.subr.mxu0 0.0
        %3421 = vmatpush1.msra.mxu0 0.0
        %3422 = vmatprep.subr.mxu0 0.0
        %3423 = vmatpush1.msra.mxu0 0.0
        %3424 = vmatprep.subr.mxu0 0.0
        %3425 = vmatpush1.msra.mxu0 0.0
        %3426 = vmatprep.mubr.f32.mxu0 0.0
        %3427 = vmatmul.mubr.f32.gmra.mrb[0].mxu0 %v3360
        %v3428 = vpop.f32.mrb[0].mxu0
        %v3429 = vadd.f32 %v3358, %v3428
        %v3430 = vpop.f32.mrb[0].mxu0
        %3431 = vdwg.mxu0
        %v3432 = vmul.f32 %v3429, 0.5
        %v3433 = vmul.f32 %v3429, 0.044715
        %v3434 = vmul.f32 %v3433, %v3429
        %v3435 = vmul.f32 %v3434, %v3429
        %v3436 = vadd.f32 %v3429, %v3435
        %v3437 = vmul.f32 %v3436, 0.7978846
        %v3438 = vtanh.pop %v3437
        %v3439 = vadd.f32 %v3438, 1.0
        %v3440 = vmul.f32 %v3432, %v3439
        %s3441 = scalar_lea.vmem %s5, 64
        %v3442 = vld [vmem:[%s3441] sm:$0xff]
        %v3443 = vld [vmem:[%s3441 + $0x8] sm:$0xff]
        %v3444 = vld [vmem:[%s3441 + $0x10] sm:$0xff]
        %v3445 = vld [vmem:[%s3441 + $0x18] sm:$0xff]
        %v3446 = vld [vmem:[%s3441 + $0x20] sm:$0xff]
        %v3447 = vld [vmem:[%s3441 + $0x28] sm:$0xff]
        %v3448 = vld [vmem:[%s3441 + $0x30] sm:$0xff]
        %v3449 = vld [vmem:[%s3441 + $0x38] sm:$0xff]
        %v3450 = vlaneseq
        %v3451 = vshrl.u32 %v3450, 7
        %v3452 = vsub.s32 5, %v3451
        %v3453 = vrot.slane %v1959, %v3452
        %v3455 = vsel %vm1860, %v3440, 0
        %3457 = vmatprep.subr.mxu0 0.0
        %3458 = vmatpush1.msra.mxu0 %v3442
        %3459 = vmatprep.subr.mxu0 0.0
        %3460 = vmatpush1.msra.mxu0 %v3443
        %3461 = vmatprep.subr.mxu0 0.0
        %3462 = vmatpush1.msra.mxu0 %v3444
        %3463 = vmatprep.subr.mxu0 0.0
        %3464 = vmatpush1.msra.mxu0 %v3445
        %3465 = vmatprep.subr.mxu0 0.0
        %3466 = vmatpush1.msra.mxu0 %v3446
        %3467 = vmatprep.subr.mxu0 0.0
        %3468 = vmatpush1.msra.mxu0 %v3447
        %3469 = vmatprep.subr.mxu0 0.0
        %3470 = vmatpush1.msra.mxu0 %v3448
        %3471 = vmatprep.subr.mxu0 0.0
        %3472 = vmatpush1.msra.mxu0 %v3449
        %3473 = vmatprep.subr.mxu0 0.0
        %3474 = vmatpush1.msra.mxu0 0.0
        %3475 = vmatprep.subr.mxu0 0.0
        %3476 = vmatpush1.msra.mxu0 0.0
        %3477 = vmatprep.subr.mxu0 0.0
        %3478 = vmatpush1.msra.mxu0 0.0
        %3479 = vmatprep.subr.mxu0 0.0
        %3480 = vmatpush1.msra.mxu0 0.0
        %3481 = vmatprep.subr.mxu0 0.0
        %3482 = vmatpush1.msra.mxu0 0.0
        %3483 = vmatprep.subr.mxu0 0.0
        %3484 = vmatpush1.msra.mxu0 0.0
        %3485 = vmatprep.subr.mxu0 0.0
        %3486 = vmatpush1.msra.mxu0 0.0
        %3487 = vmatprep.subr.mxu0 0.0
        %3488 = vmatpush1.msra.mxu0 0.0
        %3489 = vmatprep.subr.mxu0 0.0
        %3490 = vmatpush1.msra.mxu0 0.0
        %3491 = vmatprep.subr.mxu0 0.0
        %3492 = vmatpush1.msra.mxu0 0.0
        %3493 = vmatprep.subr.mxu0 0.0
        %3494 = vmatpush1.msra.mxu0 0.0
        %3495 = vmatprep.subr.mxu0 0.0
        %3496 = vmatpush1.msra.mxu0 0.0
        %3497 = vmatprep.subr.mxu0 0.0
        %3498 = vmatpush1.msra.mxu0 0.0
        %3499 = vmatprep.subr.mxu0 0.0
        %3500 = vmatpush1.msra.mxu0 0.0
        %3501 = vmatprep.subr.mxu0 0.0
        %3502 = vmatpush1.msra.mxu0 0.0
        %3503 = vmatprep.subr.mxu0 0.0
        %3504 = vmatpush1.msra.mxu0 0.0
        %3505 = vmatprep.subr.mxu0 0.0
        %3506 = vmatpush1.msra.mxu0 0.0
        %3507 = vmatprep.subr.mxu0 0.0
        %3508 = vmatpush1.msra.mxu0 0.0
        %3509 = vmatprep.subr.mxu0 0.0
        %3510 = vmatpush1.msra.mxu0 0.0
        %3511 = vmatprep.subr.mxu0 0.0
        %3512 = vmatpush1.msra.mxu0 0.0
        %3513 = vmatprep.subr.mxu0 0.0
        %3514 = vmatpush1.msra.mxu0 0.0
        %3515 = vmatprep.subr.mxu0 0.0
        %3516 = vmatpush1.msra.mxu0 0.0
        %3517 = vmatprep.subr.mxu0 0.0
        %3518 = vmatpush1.msra.mxu0 0.0
        %3519 = vmatprep.subr.mxu0 0.0
        %3520 = vmatpush1.msra.mxu0 0.0
        %3521 = vmatprep.mubr.f32.mxu0 0.0
        %3522 = vmatmul.mubr.f32.gmra.mrb[0].mxu0 %v3455
        %v3523 = vpop.f32.mrb[0].mxu0
        %v3524 = vadd.f32 %v3453, %v3523
        %v3525 = vpop.f32.mrb[0].mxu0
        %3526 = vdwg.mxu0
        %v3527 = vadd.f32 %v3524, %v3349
        %v3528 = vsel %vm335, %v3527, 0.0
        %3529 = vadd.xlane.f32.xlu0 %v3528
        %v3530 = vpop.xlane.xlu0 %3529
        %v3531 = vmul.f32 %v3530, %v339
        %v3532 = vsub.f32 %v3527, %v3531
        %v3533 = vmul.f32 %v3532, %v3532
        %v3534 = vsel %vm335, %v3533, 0.0
        %3535 = vadd.xlane.f32.xlu0 %v3534
        %v3536 = vpop.xlane.xlu0 %3535
        %v3537 = vmul.f32 %v3536, %v339
        %v3538 = vadd.f32 %v3537, 1e-12
        %v3539 = vrsqrt.pop %v3538
        %v3540 = vmul.f32 %v3532, %v3539
        %v3541 = vlaneseq
        %v3542 = vshrl.u32 %v3541, 7
        %v3543 = vsub.s32 6, %v3542
        %v3544 = vrot.slane %v1959, %v3543
        %v3545 = vmul.f32 %v3540, %v3544
        %v3546 = vlaneseq
        %v3547 = vshrl.u32 %v3546, 7
        %v3548 = vsub.s32 7, %v3547
        %v3549 = vrot.slane %v1959, %v3548
        %v3550 = vadd.f32 %v3545, %v3549
        %v3551 = vld [vmem:[%s7] sm:$0xff]
        %v3552 = vld [vmem:[%s7 + $0x8] sm:$0xff]
        %v3553 = vld [vmem:[%s7 + $0x10] sm:$0xff]
        %v3554 = vld [vmem:[%s7 + $0x18] sm:$0xff]
        %v3555 = vlaneseq
        %v3556 = vshrl.u32 %v3555, 7
        %v3557 = vsub.s32 2, %v3556
        %v3558 = vrot.slane %v333, %v3557
        %v3560 = vsel %vm335, %v3550, 0
        %3562 = vmatprep.subr.mxu0 0.0
        %3563 = vmatpush1.msra.mxu0 %v3551
        %3564 = vmatprep.subr.mxu0 0.0
        %3565 = vmatpush1.msra.mxu0 %v3552
        %3566 = vmatprep.subr.mxu0 0.0
        %3567 = vmatpush1.msra.mxu0 %v3553
        %3568 = vmatprep.subr.mxu0 0.0
        %3569 = vmatpush1.msra.mxu0 %v3554
        %3570 = vmatprep.subr.mxu0 0.0
        %3571 = vmatpush1.msra.mxu0 0.0
        %3572 = vmatprep.subr.mxu0 0.0
        %3573 = vmatpush1.msra.mxu0 0.0
        %3574 = vmatprep.subr.mxu0 0.0
        %3575 = vmatpush1.msra.mxu0 0.0
        %3576 = vmatprep.subr.mxu0 0.0
        %3577 = vmatpush1.msra.mxu0 0.0
        %3578 = vmatprep.subr.mxu0 0.0
        %3579 = vmatpush1.msra.mxu0 0.0
        %3580 = vmatprep.subr.mxu0 0.0
        %3581 = vmatpush1.msra.mxu0 0.0
        %3582 = vmatprep.subr.mxu0 0.0
        %3583 = vmatpush1.msra.mxu0 0.0
        %3584 = vmatprep.subr.mxu0 0.0
        %3585 = vmatpush1.msra.mxu0 0.0
        %3586 = vmatprep.subr.mxu0 0.0
        %3587 = vmatpush1.msra.mxu0 0.0
        %3588 = vmatprep.subr.mxu0 0.0
        %3589 = vmatpush1.msra.mxu0 0.0
        %3590 = vmatprep.subr.mxu0 0.0
        %3591 = vmatpush1.msra.mxu0 0.0
        %3592 = vmatprep.subr.mxu0 0.0
        %3593 = vmatpush1.msra.mxu0 0.0
        %3594 = vmatprep.subr.mxu0 0.0
        %3595 = vmatpush1.msra.mxu0 0.0
        %3596 = vmatprep.subr.mxu0 0.0
        %3597 = vmatpush1.msra.mxu0 0.0
        %3598 = vmatprep.subr.mxu0 0.0
        %3599 = vmatpush1.msra.mxu0 0.0
        %3600 = vmatprep.subr.mxu0 0.0
        %3601 = vmatpush1.msra.mxu0 0.0
        %3602 = vmatprep.subr.mxu0 0.0
        %3603 = vmatpush1.msra.mxu0 0.0
        %3604 = vmatprep.subr.mxu0 0.0
        %3605 = vmatpush1.msra.mxu0 0.0
        %3606 = vmatprep.subr.mxu0 0.0
        %3607 = vmatpush1.msra.mxu0 0.0
        %3608 = vmatprep.subr.mxu0 0.0
        %3609 = vmatpush1.msra.mxu0 0.0
        %3610 = vmatprep.subr.mxu0 0.0
        %3611 = vmatpush1.msra.mxu0 0.0
        %3612 = vmatprep.subr.mxu0 0.0
        %3613 = vmatpush1.msra.mxu0 0.0
        %3614 = vmatprep.subr.mxu0 0.0
        %3615 = vmatpush1.msra.mxu0 0.0
        %3616 = vmatprep.subr.mxu0 0.0
        %3617 = vmatpush1.msra.mxu0 0.0
        %3618 = vmatprep.subr.mxu0 0.0
        %3619 = vmatpush1.msra.mxu0 0.0
        %3620 = vmatprep.subr.mxu0 0.0
        %3621 = vmatpush1.msra.mxu0 0.0
        %3622 = vmatprep.subr.mxu0 0.0
        %3623 = vmatpush1.msra.mxu0 0.0
        %3624 = vmatprep.subr.mxu0 0.0
        %3625 = vmatpush1.msra.mxu0 0.0
        %3626 = vmatprep.mubr.f32.mxu0 0.0
        %3627 = vmatmul.mubr.f32.gmra.mrb[0].mxu0 %v3560
        %v3628 = vpop.f32.mrb[0].mxu0
        %v3629 = vadd.f32 %v3558, %v3628
        %v3630 = vpop.f32.mrb[0].mxu0
        %3631 = vdwg.mxu0
        %v3632 = vld [vmem:[%s332] sm:$0xff]
        %3633 = vmax.xlane.f32.xlu0 %v3629
        %v3634 = vpop.xlane.xlu0 %3633
        %v3635 = vsub.f32 %v3629, %v3634
        %v3636 = vmul.f32 %v3635, 1.442695
        %v3637 = vpow.pop %v3636
        %3638 = vadd.xlane.f32.xlu0 %v3637
        %v3639 = vpop.xlane.xlu0 %3638
        %v3640 = vlog2.pop %v3639
        %v3641 = vmul.f32 %v3640, 0.6931472
        %v3642 = vadd.f32 %v3634, %v3641
        %v3643 = vmul.f32 %v3629, %v3632
        %3644 = vadd.xlane.f32.xlu0 %v3643
        %v3645 = vpop.xlane.xlu0 %3644
        %v3646 = vsub.f32 %v3642, %v3645
        %vm3647 = vcmask 7168
        %v3648 = vsel %vm3647, %v3646, 0.0
        %3649 = vadd.xlane.f32.xlu0 %v3648
        %v3650 = vpop.xlane.xlu0 %3649
        %v3651 = vrot.slane %v3650, 4
        %v3652 = vadd.f32 %v3650, %v3651
        %v3653 = vrot.slane %v3652, 2
        %v3654 = vadd.f32 %v3652, %v3653
        %v3655 = vrot.slane %v3654, 1
        %v3656 = vadd.f32 %v3654, %v3655
        %s3657 = vtos %v3656
        %s3658 = smul.u32 %s21, 128
        %s3659 = scalar_lea.smem [#allocation2], %s3658
        %3660 = sst [smem:[%s3659]] %s3657
        // Predicated region
        $region57: #{_forward_train.1} parent=55 // pred_check
          %p3661 = pneg %p233
        $region58: #{_forward_train.1} parent=55 // pred_check_branch
          %3663 = sbr.rel (%p3661) target = $region60
        $region59: #{_forward_train.1} parent=55 // pred_region
          %s3665 = ssub.s32 32, 32
          %3666 = vsyncadd [#allocation3], %s3665
          %s3668 = sshll.u32 %s9, 4
          %s3669 = int_to_ptr.vmem [resolvable:$true] %s3668
          %3671 = dma.smem_to_vmem [#allocation2], 32, %s3669, [#allocation3]
        $region60: #{_forward_train.1} parent=55 // pred_fallthru
          _
        // Predicated region
        $region61: #{_forward_train.1} parent=55 // pred_check
          %p3672 = pneg %p233
        $region62: #{_forward_train.1} parent=55 // pred_check_branch
          %3674 = sbr.rel (%p3672) target = $region64
        $region63: #{_forward_train.1} parent=55 // pred_region
          %3675 = dma.done [#allocation3], 32
        $region64: #{_forward_train.1} parent=55 // pred_fallthru
          _
        %3676 = sfence
      $region56: #{_forward_train.1} parent=5 // pred_fallthru
        _
      %p3677 = scmp.le.s32.totalorder 2, %s16
      // Predicated region
      $region65: #{_forward_train.1} parent=5 // pred_check
        %p3678 = pneg %p3677
      $region66: #{_forward_train.1} parent=5 // pred_check_branch
        %3680 = sbr.rel (%p3678) target = $region68
      $region67: #{_forward_train.1} parent=5 // pred_region
        %s3681 = ssub.s32 %s16, 2
      $region68: #{_forward_train.1} parent=5 // pred_fallthru
        _
    $region6: #{_forward_train.1} parent=1 // loop_footer
      %s20 = sadd.s32 1, %s16
    $region7: #{_forward_train.1} parent=1 // loop_footer_branch
      %15 = sbr.rel target = $region3
    $region8: #{_forward_train.1} parent=1 // loop_exit
      _
    %3682 = vsyncpa [#allocation3], 1
    %s3683 = scalar_lea.sflag [#allocation3], 1
    %3684 = vsyncpa %s3683, 1

</llo_original>
